<compile_context>
chip_gen: v5e
topology: v5e:2x2
jax: 0.10.0
libtpu: 0.0.40
codegen_flags: <defaults>
</compile_context>

<pallas_src>
import jax
import jax.numpy as jnp
import numpy as np
from jax.experimental import pallas as pl
from jax.experimental.pallas import tpu as pltpu


def cdr_sb_kernel(pack_ref, w1_ref, b1_ref, w2_ref, b2_ref, w3_ref,
                  wuv1_ref, buv1_ref, wuv2_ref, buv2_ref, out_ref):
    """One batch tile, fully lane-packed: 4 attention scores per row in one pass."""
    d = wuv1_ref.shape[1]        # embed_dim
    nd = 4 * d                   # packed attention width (128 for d=32)
    mm_dt = w1_ref.dtype         # matmul operand dtype (bf16 or f32)

    x_all = pack_ref[...]                                          # [TB, 6d]

    # ---- attention scorer, all 4 candidates at once (K=192 fused matmul) ---
    h = jnp.dot(x_all, w1_ref[...], preferred_element_type=jnp.float32)
    h = jnp.maximum(h + b1_ref[...], 0.0)                          # [TB, 4d] f32
    h = jnp.dot(h.astype(mm_dt), w2_ref[...],
                preferred_element_type=jnp.float32)
    h = jnp.maximum(h + b2_ref[...], 0.0)                          # [TB, 4d] f32

    # Score head + per-pair broadcast + partner lookup in one dense matmul:
    # lanes [:4d] = own-candidate score, lanes [4d:] = partner-candidate score.
    s_both = jnp.dot(h.astype(mm_dt), w3_ref[...],
                     preferred_element_type=jnp.float32)           # [TB, 8d]
    s_own = s_both[:, :nd]
    s_par = s_both[:, nd:]

    # ---- 2-way softmax between (z, c) for each pair, dense over lanes ------
    m = jnp.maximum(s_own, s_par)
    e_own = jnp.exp(s_own - m)
    e_par = jnp.exp(s_par - m)
    w = e_own / (e_own + e_par)      # exact divide (approx recip broke 1e-3 check)

    # fused = [az_u*zu | az_v*zv | ac_u*cu | ac_v*cv]
    fused = w * x_all[:, :nd].astype(jnp.float32)                  # [TB, 4d] f32

    # ---- head: fused [wuv1a; wuv1b; wuv1a; wuv1b] sums z/c + u/v for free --
    h = jnp.dot(fused.astype(mm_dt), wuv1_ref[...],
                preferred_element_type=jnp.float32)
    h = jnp.maximum(h + buv1_ref[...], 0.0)                        # [TB, d]

    # w_uv_2: D -> 1 as VPU multiply + lane reduce; lane-dense (1, TB) store.
    s = jnp.sum(h * wuv2_ref[...], axis=-1)                        # [TB]
    out_ref[...] = s[None, :] + buv2_ref[...]                      # (1, TB)


def _block_diag4(w):
    d0, d1 = w.shape
    out = jnp.zeros((4 * d0, 4 * d1), w.dtype)
    for j in range(4):
        out = out.at[j * d0:(j + 1) * d0, j * d1:(j + 1) * d1].set(w)
    return out


def cdr_sb_forward(embeds_u, embeds_v, params, *, tile_b=512,
                   matmul_dtype=jnp.bfloat16):
    """embeds_u/embeds_v = (z, c, e) each [N, D]; returns scores [N]."""
    zu, cu, eu = embeds_u
    zv, cv, ev = embeds_v
    n, d = zu.shape
    assert tile_b % 8 == 0

    # ---- wrapper-side weight fusion (tiny, done once) -----------------------
    w1a, w1b = params["w1a"], params["w1b"]
    # Layer 1: [zu|zv|cu|cv|eu|ev] @ W1_big -> 4 candidate activations side by side.
    W1_big = jnp.zeros((6 * d, 4 * d), jnp.float32)
    for j in range(4):                                   # x -> its own block
        W1_big = W1_big.at[j * d:(j + 1) * d, j * d:(j + 1) * d].set(w1a)
    W1_big = W1_big.at[4 * d:5 * d, 0 * d:1 * d].set(w1b)   # eu -> (zu,eu) score
    W1_big = W1_big.at[4 * d:5 * d, 2 * d:3 * d].set(w1b)   # eu -> (cu,eu) score
    W1_big = W1_big.at[5 * d:6 * d, 1 * d:2 * d].set(w1b)   # ev -> (zv,ev) score
    W1_big = W1_big.at[5 * d:6 * d, 3 * d:4 * d].set(w1b)   # ev -> (cv,ev) score
    b1t = jnp.tile(params["b1"], (1, 4))
    W2_bd = _block_diag4(params["w2"])
    b2t = jnp.tile(params["b2"], (1, 4))

    # Score head with per-block broadcast: own-score | partner-score.
    w3 = params["w3"].reshape(d, 1)
    blk = w3 * jnp.ones((1, d), jnp.float32)             # [d, d], block of w3 rows
    B_own = _block_diag4(blk)
    partner = (2, 3, 0, 1)                               # z_u<->c_u, z_v<->c_v
    B_par = jnp.zeros((4 * d, 4 * d), jnp.float32)
    for c in range(4):
        r = partner[c]
        B_par = B_par.at[r * d:(r + 1) * d, c * d:(c + 1) * d].set(blk)
    W3_both = jnp.concatenate([B_own, B_par], axis=1)     # [4d, 8d]
    # b3 is dropped: adding the same bias to both candidates cancels in softmax.

    # Eval-mode BatchNorm1d folded into the fused w_uv_1 weight/bias (f32 fold).
    scale = params["gamma"] * jax.lax.rsqrt(params["rvar"] + 1e-5)
    wuv1a_f = params["wuv1a"] * scale
    wuv1b_f = params["wuv1b"] * scale
    buv1_f = (params["buv1"] - params["rmean"]) * scale + params["beta"]
    Wuv1_bd = jnp.concatenate([wuv1a_f, wuv1b_f, wuv1a_f, wuv1b_f], axis=0)  # [4d, d]

    wuv2_row = params["wuv2"].reshape(1, d)
    buv2 = params["buv2"]

    mm = lambda x: x.astype(matmul_dtype)                 # only matmul weights narrowed
    weight_args = (mm(W1_big), b1t, mm(W2_bd), b2t, mm(W3_both),
                   mm(Wuv1_bd), buv1_f, wuv2_row, buv2)

    # ---- lane-pack the batch into one slab; ship as matmul_dtype -----------
    pack = jnp.concatenate([zu, zv, cu, cv, eu, ev], axis=1).astype(matmul_dtype)
    n_pad = (-n) % tile_b
    if n_pad:
        # Zero tail rows flow harmlessly through exp / exact divide and are
        # sliced off after the call; only this one packed array is padded.
        pack = jnp.pad(pack, ((0, n_pad), (0, 0)))
    n_tot = n + n_pad

    batch_spec = pl.BlockSpec((tile_b, 6 * d), lambda i: (i, 0))
    full_spec = lambda a: pl.BlockSpec(a.shape, lambda i: (0, 0))

    out = pl.pallas_call(
        cdr_sb_kernel,
        out_shape=jax.ShapeDtypeStruct((1, n_tot), jnp.float32),
        grid=(n_tot // tile_b,),
        in_specs=[batch_spec] + [full_spec(w) for w in weight_args],
        out_specs=pl.BlockSpec((1, tile_b), lambda i: (0, i)),
        compiler_params=pltpu.CompilerParams(
            dimension_semantics=("parallel",)),
    )(pack, *weight_args)

    return out[0, :n]  # .squeeze()


# ------------------------- parameter / input setup -------------------------


def xavier_uniform(key, fan_in, fan_out):
    limit = float(np.sqrt(6.0 / (fan_in + fan_out)))
    return jax.random.uniform(key, (fan_in, fan_out), jnp.float32, -limit, limit)


def make_params(key, d):
    ks = jax.random.split(key, 8)
    # Attention MLP (weights stored [in, out]; PyTorch Linear computes x @ W.T + b)
    w1 = xavier_uniform(ks[0], 2 * d, d)
    params = dict(
        w1a=w1[:d, :],
        w1b=w1[d:, :],
        b1=jnp.zeros((1, d), jnp.float32),
        w2=xavier_uniform(ks[1], d, d),
        b2=jnp.zeros((1, d), jnp.float32),
        w3=xavier_uniform(ks[2], d, 1),
        b3=jnp.zeros((1, 1), jnp.float32),
    )
    # w_uv_1: 2D -> D (xavier per __init__), split into u/v halves
    wuv1 = xavier_uniform(ks[3], 2 * d, d)
    params["wuv1a"] = wuv1[:d, :]
    params["wuv1b"] = wuv1[d:, :]
    params["buv1"] = jnp.zeros((1, d), jnp.float32)
    # BatchNorm1d(d) default init (eval mode: running stats)
    params["gamma"] = jnp.ones((1, d), jnp.float32)
    params["beta"] = jnp.zeros((1, d), jnp.float32)
    params["rmean"] = jnp.zeros((1, d), jnp.float32)
    params["rvar"] = jnp.ones((1, d), jnp.float32)
    # w_uv_2: D -> 1
    params["wuv2"] = xavier_uniform(ks[4], d, 1)
    params["buv2"] = jnp.zeros((1, 1), jnp.float32)
    return params


def reference_forward(embeds_u, embeds_v, p):
    """Pure-JAX reference mirroring the PyTorch forward (eval mode)."""

    def att_fuse(z, c, e):
        def score(x):
            h = jax.nn.relu(x @ p["w1a"] + e @ p["w1b"] + p["b1"])
            h = jax.nn.relu(h @ p["w2"] + p["b2"])
            return h @ p["w3"] + p["b3"]

        s = jnp.concatenate([score(z), score(c)], axis=1)  # [N, 2]
        a = jax.nn.softmax(s, axis=1)
        return a[:, :1] * z + a[:, 1:] * c

    u = att_fuse(*embeds_u)
    v = att_fuse(*embeds_v)
    h = u @ p["wuv1a"] + v @ p["wuv1b"] + p["buv1"]
    h = (h - p["rmean"]) / jnp.sqrt(p["rvar"] + 1e-5) * p["gamma"] + p["beta"]
    h = jax.nn.relu(h)
    return (h @ p["wuv2"] + p["buv2"])[:, 0]


if __name__ == "__main__":
    D = 32           # embed_dim (dec_embed_dim)
    N = 2000         # batch of (user, item) pairs (non-multiple of tile_b on purpose)
    NUM_NODES = 50   # synthetic vocab for rep_u / rep_v lookups
    TILE_B = 512     # padded N = 2048 -> grid of 4 (keeps v7x's 2 TCs busy);
                     # raise to 1024-2048 on single-TC v5e/v6e.

    root = jax.random.PRNGKey(0)
    k_par, k_tab, k_idx = jax.random.split(root, 3)

    params = make_params(k_par, D)

    # Synthetic rep_u / rep_v: deterministic embedding tables (plain-JAX glue).
    t = jax.random.split(k_tab, 6)
    tab_uz = jax.random.normal(t[0], (NUM_NODES, D), jnp.float32)
    tab_uc = jax.random.normal(t[1], (NUM_NODES, D), jnp.float32)
    tab_ue = jax.random.normal(t[2], (NUM_NODES, D), jnp.float32)
    tab_vz = jax.random.normal(t[3], (NUM_NODES, D), jnp.float32)
    tab_vc = jax.random.normal(t[4], (NUM_NODES, D), jnp.float32)
    tab_ve = jax.random.normal(t[5], (NUM_NODES, D), jnp.float32)

    ki_u, ki_v = jax.random.split(k_idx)
    nodes_u = jax.random.randint(ki_u, (N,), 0, NUM_NODES)
    nodes_v = jax.random.randint(ki_v, (N,), 0, NUM_NODES)

    embeds_u = (tab_uz[nodes_u], tab_uc[nodes_u], tab_ue[nodes_u])
    embeds_v = (tab_vz[nodes_v], tab_vc[nodes_v], tab_ve[nodes_v])

    ref = reference_forward(embeds_u, embeds_v, params)

    # f32 path: tight semantic check (exact softmax divide, f32 matmuls).
    scores_f32 = cdr_sb_forward(embeds_u, embeds_v, params,
                                tile_b=TILE_B, matmul_dtype=jnp.float32)
    scores_f32 = jax.block_until_ready(scores_f32)
    np.testing.assert_allclose(np.asarray(scores_f32), np.asarray(ref),
                               rtol=1e-2, atol=1e-3)

    # bf16 path (bf16 inputs + MXU weights, f32 accumulation): sanity check.
    scores_bf16 = cdr_sb_forward(embeds_u, embeds_v, params,
                                 tile_b=TILE_B, matmul_dtype=jnp.bfloat16)
    scores_bf16 = jax.block_until_ready(scores_bf16)
    np.testing.assert_allclose(np.asarray(scores_bf16), np.asarray(ref),
                               rtol=1e-1, atol=1e-1)

    print("KERNEL_OK")
</pallas_src>

<mosaic_0001>
module attributes {stable_mosaic.version = 11 : i64} {
  func.func @cdr_sb_kernel(%arg0: i32, %arg1: memref<512x192xf32, #tpu.memory_space<vmem>>, %arg2: memref<192x128xf32, #tpu.memory_space<vmem>>, %arg3: memref<1x128xf32, #tpu.memory_space<vmem>>, %arg4: memref<128x128xf32, #tpu.memory_space<vmem>>, %arg5: memref<1x128xf32, #tpu.memory_space<vmem>>, %arg6: memref<128x256xf32, #tpu.memory_space<vmem>>, %arg7: memref<128x32xf32, #tpu.memory_space<vmem>>, %arg8: memref<1x32xf32, #tpu.memory_space<vmem>>, %arg9: memref<1x32xf32, #tpu.memory_space<vmem>>, %arg10: memref<1x1xf32, #tpu.memory_space<vmem>>, %arg11: memref<1x512xf32, #tpu.memory_space<vmem>>) attributes {dimension_semantics = [#tpu.dimension_semantics<parallel>], iteration_bounds = array<i64: 4>, scalar_prefetch = 0 : i64, scratch_operands = 0 : i64, tpu.core_type = #tpu.core_type<tc>, window_params = [{transform_indices = @transform_0, window_bounds = array<i64: 512, 192>}, {pipeline_mode = #tpu.pipeline_mode<synchronous>, transform_indices = @transform_1, window_bounds = array<i64: 192, 128>}, {pipeline_mode = #tpu.pipeline_mode<synchronous>, transform_indices = @transform_2, window_bounds = array<i64: 1, 128>}, {pipeline_mode = #tpu.pipeline_mode<synchronous>, transform_indices = @transform_3, window_bounds = array<i64: 128, 128>}, {pipeline_mode = #tpu.pipeline_mode<synchronous>, transform_indices = @transform_4, window_bounds = array<i64: 1, 128>}, {pipeline_mode = #tpu.pipeline_mode<synchronous>, transform_indices = @transform_5, window_bounds = array<i64: 128, 256>}, {pipeline_mode = #tpu.pipeline_mode<synchronous>, transform_indices = @transform_6, window_bounds = array<i64: 128, 32>}, {pipeline_mode = #tpu.pipeline_mode<synchronous>, transform_indices = @transform_7, window_bounds = array<i64: 1, 32>}, {pipeline_mode = #tpu.pipeline_mode<synchronous>, transform_indices = @transform_8, window_bounds = array<i64: 1, 32>}, {pipeline_mode = #tpu.pipeline_mode<synchronous>, transform_indices = @transform_9, window_bounds = array<i64: 1, 1>}, {transform_indices = @transform_10, window_bounds = array<i64: 1, 512>}]} {
    %c0 = arith.constant 0 : index
    %c0_0 = arith.constant 0 : index
    %0 = vector.load %arg1[%c0, %c0_0] : memref<512x192xf32, #tpu.memory_space<vmem>>, vector<512x192xf32>
    %c0_1 = arith.constant 0 : index
    %c0_2 = arith.constant 0 : index
    %1 = vector.load %arg2[%c0_1, %c0_2] : memref<192x128xf32, #tpu.memory_space<vmem>>, vector<192x128xf32>
    %cst = arith.constant dense<0.000000e+00> : vector<512x128xf32>
    %2 = tpu.matmul %0, %1, %cst {dimension_numbers = #tpu.dot_dimension_numbers<[1], [0], [0], [1], [0, 0, 1, 1], [], []>} : vector<512x192xf32>, vector<192x128xf32>, vector<512x128xf32> -> vector<512x128xf32>
    %c0_3 = arith.constant 0 : index
    %c0_4 = arith.constant 0 : index
    %3 = vector.load %arg3[%c0_3, %c0_4] : memref<1x128xf32, #tpu.memory_space<vmem>>, vector<1x128xf32>
    %4 = vector.broadcast %3 : vector<1x128xf32> to vector<512x128xf32>
    %5 = arith.addf %2, %4 : vector<512x128xf32>
    %cst_5 = arith.constant 0.000000e+00 : f32
    %6 = vector.broadcast %cst_5 : f32 to vector<512x128xf32>
    %7 = arith.maximumf %5, %6 : vector<512x128xf32>
    %c0_6 = arith.constant 0 : index
    %c0_7 = arith.constant 0 : index
    %8 = vector.load %arg4[%c0_6, %c0_7] : memref<128x128xf32, #tpu.memory_space<vmem>>, vector<128x128xf32>
    %cst_8 = arith.constant dense<0.000000e+00> : vector<512x128xf32>
    %9 = tpu.matmul %7, %8, %cst_8 {dimension_numbers = #tpu.dot_dimension_numbers<[1], [0], [0], [1], [0, 0, 1, 1], [], []>} : vector<512x128xf32>, vector<128x128xf32>, vector<512x128xf32> -> vector<512x128xf32>
    %c0_9 = arith.constant 0 : index
    %c0_10 = arith.constant 0 : index
    %10 = vector.load %arg5[%c0_9, %c0_10] : memref<1x128xf32, #tpu.memory_space<vmem>>, vector<1x128xf32>
    %11 = vector.broadcast %10 : vector<1x128xf32> to vector<512x128xf32>
    %12 = arith.addf %9, %11 : vector<512x128xf32>
    %cst_11 = arith.constant 0.000000e+00 : f32
    %13 = vector.broadcast %cst_11 : f32 to vector<512x128xf32>
    %14 = arith.maximumf %12, %13 : vector<512x128xf32>
    %c0_12 = arith.constant 0 : index
    %c0_13 = arith.constant 0 : index
    %15 = vector.load %arg6[%c0_12, %c0_13] : memref<128x256xf32, #tpu.memory_space<vmem>>, vector<128x256xf32>
    %cst_14 = arith.constant dense<0.000000e+00> : vector<512x256xf32>
    %16 = tpu.matmul %14, %15, %cst_14 {dimension_numbers = #tpu.dot_dimension_numbers<[1], [0], [0], [1], [0, 0, 1, 1], [], []>} : vector<512x128xf32>, vector<128x256xf32>, vector<512x256xf32> -> vector<512x256xf32>
    %17 = vector.extract_strided_slice %16 {offsets = [0, 0], sizes = [512, 128], strides = [1, 1]} : vector<512x256xf32> to vector<512x128xf32>
    %18 = vector.extract_strided_slice %16 {offsets = [0, 128], sizes = [512, 128], strides = [1, 1]} : vector<512x256xf32> to vector<512x128xf32>
    %19 = arith.maximumf %17, %18 : vector<512x128xf32>
    %20 = arith.subf %17, %19 : vector<512x128xf32>
    %21 = math.exp %20 : vector<512x128xf32>
    %22 = arith.subf %18, %19 : vector<512x128xf32>
    %23 = math.exp %22 : vector<512x128xf32>
    %24 = arith.addf %21, %23 : vector<512x128xf32>
    %25 = arith.divf %21, %24 : vector<512x128xf32>
    %26 = vector.extract_strided_slice %0 {offsets = [0, 0], sizes = [512, 128], strides = [1, 1]} : vector<512x192xf32> to vector<512x128xf32>
    %27 = arith.mulf %25, %26 : vector<512x128xf32>
    %c0_15 = arith.constant 0 : index
    %c0_16 = arith.constant 0 : index
    %28 = vector.load %arg7[%c0_15, %c0_16] : memref<128x32xf32, #tpu.memory_space<vmem>>, vector<128x32xf32>
    %cst_17 = arith.constant dense<0.000000e+00> : vector<512x32xf32>
    %29 = tpu.matmul %27, %28, %cst_17 {dimension_numbers = #tpu.dot_dimension_numbers<[1], [0], [0], [1], [0, 0, 1, 1], [], []>} : vector<512x128xf32>, vector<128x32xf32>, vector<512x32xf32> -> vector<512x32xf32>
    %c0_18 = arith.constant 0 : index
    %c0_19 = arith.constant 0 : index
    %30 = vector.load %arg8[%c0_18, %c0_19] : memref<1x32xf32, #tpu.memory_space<vmem>>, vector<1x32xf32>
    %31 = vector.broadcast %30 : vector<1x32xf32> to vector<512x32xf32>
    %32 = arith.addf %29, %31 : vector<512x32xf32>
    %cst_20 = arith.constant 0.000000e+00 : f32
    %33 = vector.broadcast %cst_20 : f32 to vector<512x32xf32>
    %34 = arith.maximumf %32, %33 : vector<512x32xf32>
    %c0_21 = arith.constant 0 : index
    %c0_22 = arith.constant 0 : index
    %35 = vector.load %arg9[%c0_21, %c0_22] : memref<1x32xf32, #tpu.memory_space<vmem>>, vector<1x32xf32>
    %36 = vector.broadcast %35 : vector<1x32xf32> to vector<512x32xf32>
    %37 = arith.mulf %34, %36 : vector<512x32xf32>
    %cst_23 = arith.constant dense<0.000000e+00> : vector<512xf32>
    %38 = vector.multi_reduction <add>, %37, %cst_23 [1] : vector<512x32xf32> to vector<512xf32>
    %39 = vector.shape_cast %38 : vector<512xf32> to vector<1x512xf32>
    %c0_24 = arith.constant 0 : index
    %c0_25 = arith.constant 0 : index
    %40 = vector.load %arg10[%c0_24, %c0_25] : memref<1x1xf32, #tpu.memory_space<vmem>>, vector<1x1xf32>
    %41 = vector.broadcast %40 : vector<1x1xf32> to vector<1x512xf32>
    %42 = arith.addf %39, %41 : vector<1x512xf32>
    %c0_26 = arith.constant 0 : index
    %c0_27 = arith.constant 0 : index
    %43 = vector.load %arg11[%c0_26, %c0_27] : memref<1x512xf32, #tpu.memory_space<vmem>>, vector<1x512xf32>
    tpu.vector_store %arg11[%c0_26, %c0_27], %42 {strides = array<i32>} : memref<1x512xf32, #tpu.memory_space<vmem>>, vector<1x512xf32>,
    return
  }
  func.func @transform_0(%arg0: i32) -> (i32, i32) {
    %c0_i32 = arith.constant 0 : i32
    %c0_i32_0 = arith.constant 0 : i32
    return %arg0, %c0_i32 : i32, i32
  }
  func.func @transform_1(%arg0: i32) -> (i32, i32) {
    %c0_i32 = arith.constant 0 : i32
    %c0_i32_0 = arith.constant 0 : i32
    %c0_i32_1 = arith.constant 0 : i32
    return %c0_i32, %c0_i32_0 : i32, i32
  }
  func.func @transform_2(%arg0: i32) -> (i32, i32) {
    %c0_i32 = arith.constant 0 : i32
    %c0_i32_0 = arith.constant 0 : i32
    %c0_i32_1 = arith.constant 0 : i32
    return %c0_i32, %c0_i32_0 : i32, i32
  }
  func.func @transform_3(%arg0: i32) -> (i32, i32) {
    %c0_i32 = arith.constant 0 : i32
    %c0_i32_0 = arith.constant 0 : i32
    %c0_i32_1 = arith.constant 0 : i32
    return %c0_i32, %c0_i32_0 : i32, i32
  }
  func.func @transform_4(%arg0: i32) -> (i32, i32) {
    %c0_i32 = arith.constant 0 : i32
    %c0_i32_0 = arith.constant 0 : i32
    %c0_i32_1 = arith.constant 0 : i32
    return %c0_i32, %c0_i32_0 : i32, i32
  }
  func.func @transform_5(%arg0: i32) -> (i32, i32) {
    %c0_i32 = arith.constant 0 : i32
    %c0_i32_0 = arith.constant 0 : i32
    %c0_i32_1 = arith.constant 0 : i32
    return %c0_i32, %c0_i32_0 : i32, i32
  }
  func.func @transform_6(%arg0: i32) -> (i32, i32) {
    %c0_i32 = arith.constant 0 : i32
    %c0_i32_0 = arith.constant 0 : i32
    %c0_i32_1 = arith.constant 0 : i32
    return %c0_i32, %c0_i32_0 : i32, i32
  }
  func.func @transform_7(%arg0: i32) -> (i32, i32) {
    %c0_i32 = arith.constant 0 : i32
    %c0_i32_0 = arith.constant 0 : i32
    %c0_i32_1 = arith.constant 0 : i32
    return %c0_i32, %c0_i32_0 : i32, i32
  }
  func.func @transform_8(%arg0: i32) -> (i32, i32) {
    %c0_i32 = arith.constant 0 : i32
    %c0_i32_0 = arith.constant 0 : i32
    %c0_i32_1 = arith.constant 0 : i32
    return %c0_i32, %c0_i32_0 : i32, i32
  }
  func.func @transform_9(%arg0: i32) -> (i32, i32) {
    %c0_i32 = arith.constant 0 : i32
    %c0_i32_0 = arith.constant 0 : i32
    %c0_i32_1 = arith.constant 0 : i32
    return %c0_i32, %c0_i32_0 : i32, i32
  }
  func.func @transform_10(%arg0: i32) -> (i32, i32) {
    %c0_i32 = arith.constant 0 : i32
    %c0_i32_0 = arith.constant 0 : i32
    return %c0_i32, %arg0 : i32, i32
  }
}

</mosaic_0001>

<llo_original>
// kernel: tpu_custom_call.1
$region0: #{tpu_custom_call.1}
  #allocation0 [shape = 'u32[]', space=smem, size = 0x4, offset = 0x4, fixed_abs, tag = 'smem constant byte address 0x4 - core index']
  #allocation1 [shape = 'u32[72,128]{1,0:T(1,128)}', space=vmem, size = 0x9000, scoped, tag = 'internal scratch']
  #allocation2 [shape = 'f32[1,1]{1,0:T(1,128)S(1)}', space=vmem, size = 0x200, scoped, tag = 'scoped memory for tpu_custom_call.1']
  %s0 = inlined_call_operand.vmem [shape: f32[2048,192], index: 0, kind: input, shape index: {}]
  %s1 = inlined_call_operand.vmem [shape: f32[192,128], index: 1, kind: input, shape index: {}]
  %s2 = inlined_call_operand.vmem [shape: f32[1,128], index: 2, kind: input, shape index: {}]
  %s3 = inlined_call_operand.vmem [shape: f32[128,128], index: 3, kind: input, shape index: {}]
  %s4 = inlined_call_operand.vmem [shape: f32[1,128], index: 4, kind: input, shape index: {}]
  %s5 = inlined_call_operand.vmem [shape: f32[128,256], index: 5, kind: input, shape index: {}]
  %s6 = inlined_call_operand.vmem [shape: f32[128,32], index: 6, kind: input, shape index: {}]
  %s7 = inlined_call_operand.vmem [shape: f32[1,32], index: 7, kind: input, shape index: {}]
  %s8 = inlined_call_operand.vmem [shape: f32[1,32], index: 8, kind: input, shape index: {}]
  %s9 = inlined_call_operand.<no memory space> [shape: f32[1,1], index: 9, kind: input, shape index: {}]
  %s10 = inlined_call_operand.hbm [shape: f32[1,2048], index: 10, kind: output, shape index: {}]
  %s11 = sld [smem:[#allocation0]]
  $region73: #{tpu_custom_call.1} parent=0
    _
  %s13 = ssub.s32 1, %s11
  %s14 = scalar_select 0, %s13, %s11
  %v15 = vstv %s9
  %16 = vst [vmem:[#allocation2] sm:$0x1] %v15
  $region1: #{tpu_custom_call.1} parent=0
    #allocation3 [shape = 'u8[4096]{0}', space=vmem, size = 0x1000, scoped, tag = 'output window, operand 0']
    #allocation4 [shape = 's32[2]{0}', space=sflag, size = 0x8, scoped, tag = 'scoped memory for tpu_custom_call.1']
    %17 = vsyncpa [#allocation4], 0
    %s18 = scalar_lea.sflag [#allocation4], 1
    %19 = vsyncpa %s18, 0
    loop: start=0, step=1, limit=6
    $region2: #{tpu_custom_call.1} parent=1 // loop_pre_header
      _
    $region3: #{tpu_custom_call.1} parent=1 // loop_header
      %s21 = sphi 0, %s25
      %p22 = scmp.ge.s32.totalorder %s21, 6
      %s31 = sphi 0, %s33
      %s34 = sphi 0, %s31
      %s35 = sphi 0, %s34
      %s51 = sphi 0, %s35
      %s55 = sphi 0, %s55
      %s57 = sphi 0, %s55
      %s58 = sphi 0, %s57
      %s72 = sphi 0, %s58
      %s76 = sphi 0, %s76
      %s78 = sphi 0, %s76
      %s79 = sphi 0, %s78
      %s93 = sphi 0, %s79
      %s97 = sphi 0, %s97
      %s99 = sphi 0, %s97
      %s100 = sphi 0, %s99
      %s114 = sphi 0, %s100
      %s118 = sphi 0, %s118
      %s120 = sphi 0, %s118
      %s121 = sphi 0, %s120
      %s135 = sphi 0, %s121
      %s139 = sphi 0, %s139
      %s141 = sphi 0, %s139
      %s142 = sphi 0, %s141
      %s156 = sphi 0, %s142
      %s160 = sphi 0, %s160
      %s162 = sphi 0, %s160
      %s163 = sphi 0, %s162
      %s177 = sphi 0, %s163
      %s181 = sphi 0, %s181
      %s183 = sphi 0, %s181
      %s184 = sphi 0, %s183
      %s198 = sphi 0, %s184
      %s202 = sphi 0, %s202
      %s204 = sphi 0, %s202
      %s205 = sphi 0, %s204
      %s219 = sphi 0, %s205
      %s223 = sphi 0, %s223
      %s225 = sphi 0, %s223
      %s226 = sphi 0, %s225
      %s240 = sphi 0, %s226
      %s246 = sphi 0, %s248
      %s249 = sphi 0, %s246
      %s250 = sphi 0, %s249
      %s266 = sphi 0, %s250
    $region4: #{tpu_custom_call.1} parent=1 // loop_header_branch
      %24 = sbr.rel (%p22) target = $region8
    $region5: #{tpu_custom_call.1} parent=1 // loop_body
      %s26 = ssub.s32 %s21, 1
      %s27 = ssub.s32 %s21, 2
      %s28 = sadd.s32 %s21, 1
      %s29 = ssub.s32 %s21, %s28
      %p30 = scmp.eq.s32.totalorder %s29, 0
      %s32 = sadd.s32 %s31, 1
      %s33 = scalar_select %p30, %s31, %s32
      %p36 = pneg %p30
      %p37 = scmp.eq.s32.totalorder %s21, 3
      %p38 = por %p36, %p37
      %p39 = scmp.ne.s32.totalorder %s31, %s34
      %p40 = scmp.eq.s32.totalorder %s21, 0
      %p41 = por %p39, %p40
      %p42 = scmp.ne.s32.totalorder %s31, %s34
      %p43 = scmp.eq.s32.totalorder %s26, 3
      %p44 = por %p42, %p43
      %p45 = scmp.ne.s32.totalorder %s34, %s35
      %p46 = scmp.eq.s32.totalorder %s26, 0
      %p47 = por %p45, %p46
      %p48 = scmp.ne.s32.totalorder %s34, %s35
      %p49 = scmp.eq.s32.totalorder %s27, 3
      %p50 = por %p48, %p49
      %p52 = scmp.ne.s32.totalorder %s35, %s51
      %p53 = scmp.eq.s32.totalorder %s27, 0
      %p54 = por %p52, %p53
      %s56 = sadd.s32 %s55, 1
      %p59 = scmp.eq.s32.totalorder %s21, 3
      %p60 = scmp.ne.s32.totalorder %s55, %s57
      %p61 = scmp.eq.s32.totalorder %s21, 0
      %p62 = por %p60, %p61
      %p63 = scmp.ne.s32.totalorder %s55, %s57
      %p64 = scmp.eq.s32.totalorder %s26, 3
      %p65 = por %p63, %p64
      %p66 = scmp.ne.s32.totalorder %s57, %s58
      %p67 = scmp.eq.s32.totalorder %s26, 0
      %p68 = por %p66, %p67
      %p69 = scmp.ne.s32.totalorder %s57, %s58
      %p70 = scmp.eq.s32.totalorder %s27, 3
      %p71 = por %p69, %p70
      %p73 = scmp.ne.s32.totalorder %s58, %s72
      %p74 = scmp.eq.s32.totalorder %s27, 0
      %p75 = por %p73, %p74
      %s77 = sadd.s32 %s76, 1
      %p80 = scmp.eq.s32.totalorder %s21, 3
      %p81 = scmp.ne.s32.totalorder %s76, %s78
      %p82 = scmp.eq.s32.totalorder %s21, 0
      %p83 = por %p81, %p82
      %p84 = scmp.ne.s32.totalorder %s76, %s78
      %p85 = scmp.eq.s32.totalorder %s26, 3
      %p86 = por %p84, %p85
      %p87 = scmp.ne.s32.totalorder %s78, %s79
      %p88 = scmp.eq.s32.totalorder %s26, 0
      %p89 = por %p87, %p88
      %p90 = scmp.ne.s32.totalorder %s78, %s79
      %p91 = scmp.eq.s32.totalorder %s27, 3
      %p92 = por %p90, %p91
      %p94 = scmp.ne.s32.totalorder %s79, %s93
      %p95 = scmp.eq.s32.totalorder %s27, 0
      %p96 = por %p94, %p95
      %s98 = sadd.s32 %s97, 1
      %p101 = scmp.eq.s32.totalorder %s21, 3
      %p102 = scmp.ne.s32.totalorder %s97, %s99
      %p103 = scmp.eq.s32.totalorder %s21, 0
      %p104 = por %p102, %p103
      %p105 = scmp.ne.s32.totalorder %s97, %s99
      %p106 = scmp.eq.s32.totalorder %s26, 3
      %p107 = por %p105, %p106
      %p108 = scmp.ne.s32.totalorder %s99, %s100
      %p109 = scmp.eq.s32.totalorder %s26, 0
      %p110 = por %p108, %p109
      %p111 = scmp.ne.s32.totalorder %s99, %s100
      %p112 = scmp.eq.s32.totalorder %s27, 3
      %p113 = por %p111, %p112
      %p115 = scmp.ne.s32.totalorder %s100, %s114
      %p116 = scmp.eq.s32.totalorder %s27, 0
      %p117 = por %p115, %p116
      %s119 = sadd.s32 %s118, 1
      %p122 = scmp.eq.s32.totalorder %s21, 3
      %p123 = scmp.ne.s32.totalorder %s118, %s120
      %p124 = scmp.eq.s32.totalorder %s21, 0
      %p125 = por %p123, %p124
      %p126 = scmp.ne.s32.totalorder %s118, %s120
      %p127 = scmp.eq.s32.totalorder %s26, 3
      %p128 = por %p126, %p127
      %p129 = scmp.ne.s32.totalorder %s120, %s121
      %p130 = scmp.eq.s32.totalorder %s26, 0
      %p131 = por %p129, %p130
      %p132 = scmp.ne.s32.totalorder %s120, %s121
      %p133 = scmp.eq.s32.totalorder %s27, 3
      %p134 = por %p132, %p133
      %p136 = scmp.ne.s32.totalorder %s121, %s135
      %p137 = scmp.eq.s32.totalorder %s27, 0
      %p138 = por %p136, %p137
      %s140 = sadd.s32 %s139, 1
      %p143 = scmp.eq.s32.totalorder %s21, 3
      %p144 = scmp.ne.s32.totalorder %s139, %s141
      %p145 = scmp.eq.s32.totalorder %s21, 0
      %p146 = por %p144, %p145
      %p147 = scmp.ne.s32.totalorder %s139, %s141
      %p148 = scmp.eq.s32.totalorder %s26, 3
      %p149 = por %p147, %p148
      %p150 = scmp.ne.s32.totalorder %s141, %s142
      %p151 = scmp.eq.s32.totalorder %s26, 0
      %p152 = por %p150, %p151
      %p153 = scmp.ne.s32.totalorder %s141, %s142
      %p154 = scmp.eq.s32.totalorder %s27, 3
      %p155 = por %p153, %p154
      %p157 = scmp.ne.s32.totalorder %s142, %s156
      %p158 = scmp.eq.s32.totalorder %s27, 0
      %p159 = por %p157, %p158
      %s161 = sadd.s32 %s160, 1
      %p164 = scmp.eq.s32.totalorder %s21, 3
      %p165 = scmp.ne.s32.totalorder %s160, %s162
      %p166 = scmp.eq.s32.totalorder %s21, 0
      %p167 = por %p165, %p166
      %p168 = scmp.ne.s32.totalorder %s160, %s162
      %p169 = scmp.eq.s32.totalorder %s26, 3
      %p170 = por %p168, %p169
      %p171 = scmp.ne.s32.totalorder %s162, %s163
      %p172 = scmp.eq.s32.totalorder %s26, 0
      %p173 = por %p171, %p172
      %p174 = scmp.ne.s32.totalorder %s162, %s163
      %p175 = scmp.eq.s32.totalorder %s27, 3
      %p176 = por %p174, %p175
      %p178 = scmp.ne.s32.totalorder %s163, %s177
      %p179 = scmp.eq.s32.totalorder %s27, 0
      %p180 = por %p178, %p179
      %s182 = sadd.s32 %s181, 1
      %p185 = scmp.eq.s32.totalorder %s21, 3
      %p186 = scmp.ne.s32.totalorder %s181, %s183
      %p187 = scmp.eq.s32.totalorder %s21, 0
      %p188 = por %p186, %p187
      %p189 = scmp.ne.s32.totalorder %s181, %s183
      %p190 = scmp.eq.s32.totalorder %s26, 3
      %p191 = por %p189, %p190
      %p192 = scmp.ne.s32.totalorder %s183, %s184
      %p193 = scmp.eq.s32.totalorder %s26, 0
      %p194 = por %p192, %p193
      %p195 = scmp.ne.s32.totalorder %s183, %s184
      %p196 = scmp.eq.s32.totalorder %s27, 3
      %p197 = por %p195, %p196
      %p199 = scmp.ne.s32.totalorder %s184, %s198
      %p200 = scmp.eq.s32.totalorder %s27, 0
      %p201 = por %p199, %p200
      %s203 = sadd.s32 %s202, 1
      %p206 = scmp.eq.s32.totalorder %s21, 3
      %p207 = scmp.ne.s32.totalorder %s202, %s204
      %p208 = scmp.eq.s32.totalorder %s21, 0
      %p209 = por %p207, %p208
      %p210 = scmp.ne.s32.totalorder %s202, %s204
      %p211 = scmp.eq.s32.totalorder %s26, 3
      %p212 = por %p210, %p211
      %p213 = scmp.ne.s32.totalorder %s204, %s205
      %p214 = scmp.eq.s32.totalorder %s26, 0
      %p215 = por %p213, %p214
      %p216 = scmp.ne.s32.totalorder %s204, %s205
      %p217 = scmp.eq.s32.totalorder %s27, 3
      %p218 = por %p216, %p217
      %p220 = scmp.ne.s32.totalorder %s205, %s219
      %p221 = scmp.eq.s32.totalorder %s27, 0
      %p222 = por %p220, %p221
      %s224 = sadd.s32 %s223, 1
      %p227 = scmp.eq.s32.totalorder %s21, 3
      %p228 = scmp.ne.s32.totalorder %s223, %s225
      %p229 = scmp.eq.s32.totalorder %s21, 0
      %p230 = por %p228, %p229
      %p231 = scmp.ne.s32.totalorder %s223, %s225
      %p232 = scmp.eq.s32.totalorder %s26, 3
      %p233 = por %p231, %p232
      %p234 = scmp.ne.s32.totalorder %s225, %s226
      %p235 = scmp.eq.s32.totalorder %s26, 0
      %p236 = por %p234, %p235
      %p237 = scmp.ne.s32.totalorder %s225, %s226
      %p238 = scmp.eq.s32.totalorder %s27, 3
      %p239 = por %p237, %p238
      %p241 = scmp.ne.s32.totalorder %s226, %s240
      %p242 = scmp.eq.s32.totalorder %s27, 0
      %p243 = por %p241, %p242
      %s244 = ssub.s32 %s21, %s28
      %p245 = scmp.eq.s32.totalorder %s244, 0
      %s247 = sadd.s32 %s246, 1
      %s248 = scalar_select %p245, %s246, %s247
      %p251 = pneg %p245
      %p252 = scmp.eq.s32.totalorder %s21, 3
      %p253 = por %p251, %p252
      %p254 = scmp.ne.s32.totalorder %s246, %s249
      %p255 = scmp.eq.s32.totalorder %s21, 0
      %p256 = por %p254, %p255
      %p257 = scmp.ne.s32.totalorder %s246, %s249
      %p258 = scmp.eq.s32.totalorder %s26, 3
      %p259 = por %p257, %p258
      %p260 = scmp.ne.s32.totalorder %s249, %s250
      %p261 = scmp.eq.s32.totalorder %s26, 0
      %p262 = por %p260, %p261
      %p263 = scmp.ne.s32.totalorder %s249, %s250
      %p264 = scmp.eq.s32.totalorder %s27, 3
      %p265 = por %p263, %p264
      %p267 = scmp.ne.s32.totalorder %s250, %s266
      %p268 = scmp.eq.s32.totalorder %s27, 0
      %p269 = por %p267, %p268
      %p270 = scmp.le.s32.totalorder 1, %s21
      %p271 = scmp.lt.s32.totalorder %s21, 5
      %p272 = pnand %p270, %p271
      %p273 = pneg %p272
      // Predicated region
      $region9: #{tpu_custom_call.1} parent=5 // pred_check
        _
      $region10: #{tpu_custom_call.1} parent=5 // pred_check_branch
        %275 = sbr.rel (%p272) target = $region12
      $region11: #{tpu_custom_call.1} parent=5 // pred_region
        %s276 = ssub.s32 %s21, 1
        // Predicated region
        $region13: #{tpu_custom_call.1} parent=11 // pred_check
          %p277 = pneg %p68
        $region14: #{tpu_custom_call.1} parent=11 // pred_check_branch
          %279 = sbr.rel (%p277) target = $region16
        $region15: #{tpu_custom_call.1} parent=11 // pred_region
          _
        $region16: #{tpu_custom_call.1} parent=11 // pred_fallthru
          _
        // Predicated region
        $region17: #{tpu_custom_call.1} parent=11 // pred_check
          %p280 = pneg %p89
        $region18: #{tpu_custom_call.1} parent=11 // pred_check_branch
          %282 = sbr.rel (%p280) target = $region20
        $region19: #{tpu_custom_call.1} parent=11 // pred_region
          _
        $region20: #{tpu_custom_call.1} parent=11 // pred_fallthru
          _
        // Predicated region
        $region21: #{tpu_custom_call.1} parent=11 // pred_check
          %p283 = pneg %p110
        $region22: #{tpu_custom_call.1} parent=11 // pred_check_branch
          %285 = sbr.rel (%p283) target = $region24
        $region23: #{tpu_custom_call.1} parent=11 // pred_region
          _
        $region24: #{tpu_custom_call.1} parent=11 // pred_fallthru
          _
        // Predicated region
        $region25: #{tpu_custom_call.1} parent=11 // pred_check
          %p286 = pneg %p131
        $region26: #{tpu_custom_call.1} parent=11 // pred_check_branch
          %288 = sbr.rel (%p286) target = $region28
        $region27: #{tpu_custom_call.1} parent=11 // pred_region
          _
        $region28: #{tpu_custom_call.1} parent=11 // pred_fallthru
          _
        // Predicated region
        $region29: #{tpu_custom_call.1} parent=11 // pred_check
          %p289 = pneg %p152
        $region30: #{tpu_custom_call.1} parent=11 // pred_check_branch
          %291 = sbr.rel (%p289) target = $region32
        $region31: #{tpu_custom_call.1} parent=11 // pred_region
          _
        $region32: #{tpu_custom_call.1} parent=11 // pred_fallthru
          _
        // Predicated region
        $region33: #{tpu_custom_call.1} parent=11 // pred_check
          %p292 = pneg %p173
        $region34: #{tpu_custom_call.1} parent=11 // pred_check_branch
          %294 = sbr.rel (%p292) target = $region36
        $region35: #{tpu_custom_call.1} parent=11 // pred_region
          _
        $region36: #{tpu_custom_call.1} parent=11 // pred_fallthru
          _
        // Predicated region
        $region37: #{tpu_custom_call.1} parent=11 // pred_check
          %p295 = pneg %p194
        $region38: #{tpu_custom_call.1} parent=11 // pred_check_branch
          %297 = sbr.rel (%p295) target = $region40
        $region39: #{tpu_custom_call.1} parent=11 // pred_region
          _
        $region40: #{tpu_custom_call.1} parent=11 // pred_fallthru
          _
        // Predicated region
        $region41: #{tpu_custom_call.1} parent=11 // pred_check
          %p298 = pneg %p215
        $region42: #{tpu_custom_call.1} parent=11 // pred_check_branch
          %300 = sbr.rel (%p298) target = $region44
        $region43: #{tpu_custom_call.1} parent=11 // pred_region
          _
        $region44: #{tpu_custom_call.1} parent=11 // pred_fallthru
          _
        // Predicated region
        $region45: #{tpu_custom_call.1} parent=11 // pred_check
          %p301 = pneg %p236
        $region46: #{tpu_custom_call.1} parent=11 // pred_check_branch
          %303 = sbr.rel (%p301) target = $region48
        $region47: #{tpu_custom_call.1} parent=11 // pred_region
          _
        $region48: #{tpu_custom_call.1} parent=11 // pred_fallthru
          _
      $region12: #{tpu_custom_call.1} parent=5 // pred_fallthru
        _
      %p304 = scmp.lt.s32.totalorder %s21, 4
      // Predicated region
      $region49: #{tpu_custom_call.1} parent=5 // pred_check
        %p305 = pneg %p304
      $region50: #{tpu_custom_call.1} parent=5 // pred_check_branch
        %307 = sbr.rel (%p305) target = $region52
      $region51: #{tpu_custom_call.1} parent=5 // pred_region
        // Predicated region
        $region53: #{tpu_custom_call.1} parent=51 // pred_check
          %p308 = pneg %p41
        $region54: #{tpu_custom_call.1} parent=51 // pred_check_branch
          %310 = sbr.rel (%p308) target = $region56
        $region55: #{tpu_custom_call.1} parent=51 // pred_region
          %s311 = smul.u32 64, %s21
          %p312 = scmp.lt.s32.totalorder %s311, 255
          %s313 = scalar_select %p312, %s311, 255
          %s314 = smul.addr %s313, 2
          %s315 = smul.addr %s314, 8
          %s316 = scalar_lea.vmem %s0, %s315
          %s317 = smul.u32 64, %s21
        $region56: #{tpu_custom_call.1} parent=51 // pred_fallthru
          _
      $region52: #{tpu_custom_call.1} parent=5 // pred_fallthru
        _
      %p318 = scmp.le.s32.totalorder 1, %s21
      %p319 = scmp.lt.s32.totalorder %s21, 5
      %p320 = pnand %p318, %p319
      %p321 = pneg %p320
      // Predicated region
      $region57: #{tpu_custom_call.1} parent=5 // pred_check
        _
      $region58: #{tpu_custom_call.1} parent=5 // pred_check_branch
        %323 = sbr.rel (%p320) target = $region60
      $region59: #{tpu_custom_call.1} parent=5 // pred_region
        %s324 = ssub.s32 %s21, 1
        %s325 = smul.u32 64, %s26
        %p326 = scmp.lt.s32.totalorder %s325, 255
        %s327 = scalar_select %p326, %s325, 255
        %s328 = smul.addr %s327, 2
        %s329 = smul.addr %s328, 8
        %s330 = scalar_lea.vmem %s0, %s329
        %p331 = pneg %p47
        %p332 = pneg %p44
        %p333 = pneg %p68
        %p334 = pneg %p65
        %p335 = pneg %p89
        %p336 = pneg %p86
        %p337 = pneg %p110
        %p338 = pneg %p107
        %p339 = pneg %p131
        %p340 = pneg %p128
        %p341 = pneg %p152
        %p342 = pneg %p149
        %p343 = pneg %p173
        %p344 = pneg %p170
        %p345 = pneg %p194
        %p346 = pneg %p191
        %p347 = pneg %p215
        %p348 = pneg %p212
        %p349 = pneg %p236
        %p350 = pneg %p233
        %p351 = pneg %p262
        %p352 = pneg %p259
        %s353 = sand.u32 %s249, 1
        %s354 = scalar_lea.sflag [#allocation4], %s353
        %s355 = sand.u32 %s249, 1
        %s356 = smul.addr %s355, 4
        %s357 = scalar_lea.vmem [#allocation3], %s356
        %s358 = smul.u32 64, %s26
        %p359 = scmp.lt.s32.totalorder %s358, 255
        %s360 = scalar_select %p359, %s358, 255
        %s361 = smul.addr %s360, 2
        %s362 = smul.addr %s361, 8
        %s363 = scalar_lea.vmem %s0, %s362
        %s364 = smul.u32 64, %s26
        %s365 = smul.u32 4, %s26
        %v366 = vld [vmem:[%s363] sm:$0xff]
        %v367 = vld [vmem:[%s363 + $0x8] sm:$0xff]
        %v368 = vld [vmem:[%s363 + $0x10] sm:$0xff]
        %v369 = vld [vmem:[%s363 + $0x18] sm:$0xff]
        %v370 = vld [vmem:[%s363 + $0x20] sm:$0xff]
        %v371 = vld [vmem:[%s363 + $0x28] sm:$0xff]
        %v372 = vld [vmem:[%s363 + $0x30] sm:$0xff]
        %v373 = vld [vmem:[%s363 + $0x38] sm:$0xff]
        %v374 = vld [vmem:[%s363 + $0x40] sm:$0xff]
        %v375 = vld [vmem:[%s363 + $0x48] sm:$0xff]
        %v376 = vld [vmem:[%s363 + $0x50] sm:$0xff]
        %v377 = vld [vmem:[%s363 + $0x58] sm:$0xff]
        %v378 = vld [vmem:[%s363 + $0x60] sm:$0xff]
        %v379 = vld [vmem:[%s363 + $0x68] sm:$0xff]
        %v380 = vld [vmem:[%s363 + $0x70] sm:$0xff]
        %v381 = vld [vmem:[%s363 + $0x78] sm:$0xff]
        %v382 = vld [vmem:[%s363 + $0x80] sm:$0xff]
        %v383 = vld [vmem:[%s363 + $0x88] sm:$0xff]
        %v384 = vld [vmem:[%s363 + $0x90] sm:$0xff]
        %v385 = vld [vmem:[%s363 + $0x98] sm:$0xff]
        %v386 = vld [vmem:[%s363 + $0xa0] sm:$0xff]
        %v387 = vld [vmem:[%s363 + $0xa8] sm:$0xff]
        %v388 = vld [vmem:[%s363 + $0xb0] sm:$0xff]
        %v389 = vld [vmem:[%s363 + $0xb8] sm:$0xff]
        %v390 = vld [vmem:[%s363 + $0xc0] sm:$0xff]
        %v391 = vld [vmem:[%s363 + $0xc8] sm:$0xff]
        %v392 = vld [vmem:[%s363 + $0xd0] sm:$0xff]
        %v393 = vld [vmem:[%s363 + $0xd8] sm:$0xff]
        %v394 = vld [vmem:[%s363 + $0xe0] sm:$0xff]
        %v395 = vld [vmem:[%s363 + $0xe8] sm:$0xff]
        %v396 = vld [vmem:[%s363 + $0xf0] sm:$0xff]
        %v397 = vld [vmem:[%s363 + $0xf8] sm:$0xff]
        %v398 = vld [vmem:[%s363 + $0x100] sm:$0xff]
        %v399 = vld [vmem:[%s363 + $0x108] sm:$0xff]
        %v400 = vld [vmem:[%s363 + $0x110] sm:$0xff]
        %v401 = vld [vmem:[%s363 + $0x118] sm:$0xff]
        %v402 = vld [vmem:[%s363 + $0x120] sm:$0xff]
        %v403 = vld [vmem:[%s363 + $0x128] sm:$0xff]
        %v404 = vld [vmem:[%s363 + $0x130] sm:$0xff]
        %v405 = vld [vmem:[%s363 + $0x138] sm:$0xff]
        %v406 = vld [vmem:[%s363 + $0x140] sm:$0xff]
        %v407 = vld [vmem:[%s363 + $0x148] sm:$0xff]
        %v408 = vld [vmem:[%s363 + $0x150] sm:$0xff]
        %v409 = vld [vmem:[%s363 + $0x158] sm:$0xff]
        %v410 = vld [vmem:[%s363 + $0x160] sm:$0xff]
        %v411 = vld [vmem:[%s363 + $0x168] sm:$0xff]
        %v412 = vld [vmem:[%s363 + $0x170] sm:$0xff]
        %v413 = vld [vmem:[%s363 + $0x178] sm:$0xff]
        %v414 = vld [vmem:[%s363 + $0x180] sm:$0xff]
        %v415 = vld [vmem:[%s363 + $0x188] sm:$0xff]
        %v416 = vld [vmem:[%s363 + $0x190] sm:$0xff]
        %v417 = vld [vmem:[%s363 + $0x198] sm:$0xff]
        %v418 = vld [vmem:[%s363 + $0x1a0] sm:$0xff]
        %v419 = vld [vmem:[%s363 + $0x1a8] sm:$0xff]
        %v420 = vld [vmem:[%s363 + $0x1b0] sm:$0xff]
        %v421 = vld [vmem:[%s363 + $0x1b8] sm:$0xff]
        %v422 = vld [vmem:[%s363 + $0x1c0] sm:$0xff]
        %v423 = vld [vmem:[%s363 + $0x1c8] sm:$0xff]
        %v424 = vld [vmem:[%s363 + $0x1d0] sm:$0xff]
        %v425 = vld [vmem:[%s363 + $0x1d8] sm:$0xff]
        %v426 = vld [vmem:[%s363 + $0x1e0] sm:$0xff]
        %v427 = vld [vmem:[%s363 + $0x1e8] sm:$0xff]
        %v428 = vld [vmem:[%s363 + $0x1f0] sm:$0xff]
        %v429 = vld [vmem:[%s363 + $0x1f8] sm:$0xff]
        %v430 = vld [vmem:[%s363 + $0x200] sm:$0xff]
        %v431 = vld [vmem:[%s363 + $0x208] sm:$0xff]
        %v432 = vld [vmem:[%s363 + $0x210] sm:$0xff]
        %v433 = vld [vmem:[%s363 + $0x218] sm:$0xff]
        %v434 = vld [vmem:[%s363 + $0x220] sm:$0xff]
        %v435 = vld [vmem:[%s363 + $0x228] sm:$0xff]
        %v436 = vld [vmem:[%s363 + $0x230] sm:$0xff]
        %v437 = vld [vmem:[%s363 + $0x238] sm:$0xff]
        %v438 = vld [vmem:[%s363 + $0x240] sm:$0xff]
        %v439 = vld [vmem:[%s363 + $0x248] sm:$0xff]
        %v440 = vld [vmem:[%s363 + $0x250] sm:$0xff]
        %v441 = vld [vmem:[%s363 + $0x258] sm:$0xff]
        %v442 = vld [vmem:[%s363 + $0x260] sm:$0xff]
        %v443 = vld [vmem:[%s363 + $0x268] sm:$0xff]
        %v444 = vld [vmem:[%s363 + $0x270] sm:$0xff]
        %v445 = vld [vmem:[%s363 + $0x278] sm:$0xff]
        %v446 = vld [vmem:[%s363 + $0x280] sm:$0xff]
        %v447 = vld [vmem:[%s363 + $0x288] sm:$0xff]
        %v448 = vld [vmem:[%s363 + $0x290] sm:$0xff]
        %v449 = vld [vmem:[%s363 + $0x298] sm:$0xff]
        %v450 = vld [vmem:[%s363 + $0x2a0] sm:$0xff]
        %v451 = vld [vmem:[%s363 + $0x2a8] sm:$0xff]
        %v452 = vld [vmem:[%s363 + $0x2b0] sm:$0xff]
        %v453 = vld [vmem:[%s363 + $0x2b8] sm:$0xff]
        %v454 = vld [vmem:[%s363 + $0x2c0] sm:$0xff]
        %v455 = vld [vmem:[%s363 + $0x2c8] sm:$0xff]
        %v456 = vld [vmem:[%s363 + $0x2d0] sm:$0xff]
        %v457 = vld [vmem:[%s363 + $0x2d8] sm:$0xff]
        %v458 = vld [vmem:[%s363 + $0x2e0] sm:$0xff]
        %v459 = vld [vmem:[%s363 + $0x2e8] sm:$0xff]
        %v460 = vld [vmem:[%s363 + $0x2f0] sm:$0xff]
        %v461 = vld [vmem:[%s363 + $0x2f8] sm:$0xff]
        %v462 = vld [vmem:[%s363 + $0x300] sm:$0xff]
        %v463 = vld [vmem:[%s363 + $0x308] sm:$0xff]
        %v464 = vld [vmem:[%s363 + $0x310] sm:$0xff]
        %v465 = vld [vmem:[%s363 + $0x318] sm:$0xff]
        %v466 = vld [vmem:[%s363 + $0x320] sm:$0xff]
        %v467 = vld [vmem:[%s363 + $0x328] sm:$0xff]
        %v468 = vld [vmem:[%s363 + $0x330] sm:$0xff]
        %v469 = vld [vmem:[%s363 + $0x338] sm:$0xff]
        %v470 = vld [vmem:[%s363 + $0x340] sm:$0xff]
        %v471 = vld [vmem:[%s363 + $0x348] sm:$0xff]
        %v472 = vld [vmem:[%s363 + $0x350] sm:$0xff]
        %v473 = vld [vmem:[%s363 + $0x358] sm:$0xff]
        %v474 = vld [vmem:[%s363 + $0x360] sm:$0xff]
        %v475 = vld [vmem:[%s363 + $0x368] sm:$0xff]
        %v476 = vld [vmem:[%s363 + $0x370] sm:$0xff]
        %v477 = vld [vmem:[%s363 + $0x378] sm:$0xff]
        %v478 = vld [vmem:[%s363 + $0x380] sm:$0xff]
        %v479 = vld [vmem:[%s363 + $0x388] sm:$0xff]
        %v480 = vld [vmem:[%s363 + $0x390] sm:$0xff]
        %v481 = vld [vmem:[%s363 + $0x398] sm:$0xff]
        %v482 = vld [vmem:[%s363 + $0x3a0] sm:$0xff]
        %v483 = vld [vmem:[%s363 + $0x3a8] sm:$0xff]
        %v484 = vld [vmem:[%s363 + $0x3b0] sm:$0xff]
        %v485 = vld [vmem:[%s363 + $0x3b8] sm:$0xff]
        %v486 = vld [vmem:[%s363 + $0x3c0] sm:$0xff]
        %v487 = vld [vmem:[%s363 + $0x3c8] sm:$0xff]
        %v488 = vld [vmem:[%s363 + $0x3d0] sm:$0xff]
        %v489 = vld [vmem:[%s363 + $0x3d8] sm:$0xff]
        %v490 = vld [vmem:[%s363 + $0x3e0] sm:$0xff]
        %v491 = vld [vmem:[%s363 + $0x3e8] sm:$0xff]
        %v492 = vld [vmem:[%s363 + $0x3f0] sm:$0xff]
        %v493 = vld [vmem:[%s363 + $0x3f8] sm:$0xff]
        %v494 = vld [vmem:[%s1] sm:$0xff]
        %v495 = vld [vmem:[%s1 + $0x8] sm:$0xff]
        %v496 = vld [vmem:[%s1 + $0x10] sm:$0xff]
        %v497 = vld [vmem:[%s1 + $0x18] sm:$0xff]
        %v498 = vld [vmem:[%s1 + $0x20] sm:$0xff]
        %v499 = vld [vmem:[%s1 + $0x28] sm:$0xff]
        %v500 = vld [vmem:[%s1 + $0x30] sm:$0xff]
        %v501 = vld [vmem:[%s1 + $0x38] sm:$0xff]
        %v502 = vld [vmem:[%s1 + $0x40] sm:$0xff]
        %v503 = vld [vmem:[%s1 + $0x48] sm:$0xff]
        %v504 = vld [vmem:[%s1 + $0x50] sm:$0xff]
        %v505 = vld [vmem:[%s1 + $0x58] sm:$0xff]
        %v506 = vld [vmem:[%s1 + $0x60] sm:$0xff]
        %v507 = vld [vmem:[%s1 + $0x68] sm:$0xff]
        %v508 = vld [vmem:[%s1 + $0x70] sm:$0xff]
        %v509 = vld [vmem:[%s1 + $0x78] sm:$0xff]
        %v510 = vld [vmem:[%s1 + $0x80] sm:$0xff]
        %v511 = vld [vmem:[%s1 + $0x88] sm:$0xff]
        %v512 = vld [vmem:[%s1 + $0x90] sm:$0xff]
        %v513 = vld [vmem:[%s1 + $0x98] sm:$0xff]
        %v514 = vld [vmem:[%s1 + $0xa0] sm:$0xff]
        %v515 = vld [vmem:[%s1 + $0xa8] sm:$0xff]
        %v516 = vld [vmem:[%s1 + $0xb0] sm:$0xff]
        %v517 = vld [vmem:[%s1 + $0xb8] sm:$0xff]
        %v518 = vld [vmem:[%s2] sm:$0x1]
        %v520 = vperm.slane %v518, 0
        %vm522 = vcmask 523264
        %v524 = vsel %vm522, %v367, 0
        %v527 = vsel %vm522, %v369, 0
        %v530 = vsel %vm522, %v371, 0
        %v533 = vsel %vm522, %v373, 0
        %v536 = vsel %vm522, %v375, 0
        %v539 = vsel %vm522, %v377, 0
        %v542 = vsel %vm522, %v379, 0
        %v545 = vsel %vm522, %v381, 0
        %v548 = vsel %vm522, %v383, 0
        %v551 = vsel %vm522, %v385, 0
        %v554 = vsel %vm522, %v387, 0
        %v557 = vsel %vm522, %v389, 0
        %v560 = vsel %vm522, %v391, 0
        %v563 = vsel %vm522, %v393, 0
        %v566 = vsel %vm522, %v395, 0
        %v569 = vsel %vm522, %v397, 0
        %v572 = vsel %vm522, %v399, 0
        %v575 = vsel %vm522, %v401, 0
        %v578 = vsel %vm522, %v403, 0
        %v581 = vsel %vm522, %v405, 0
        %v584 = vsel %vm522, %v407, 0
        %v587 = vsel %vm522, %v409, 0
        %v590 = vsel %vm522, %v411, 0
        %v593 = vsel %vm522, %v413, 0
        %v596 = vsel %vm522, %v415, 0
        %v599 = vsel %vm522, %v417, 0
        %v602 = vsel %vm522, %v419, 0
        %v605 = vsel %vm522, %v421, 0
        %v608 = vsel %vm522, %v423, 0
        %v611 = vsel %vm522, %v425, 0
        %v614 = vsel %vm522, %v427, 0
        %v617 = vsel %vm522, %v429, 0
        %v620 = vsel %vm522, %v431, 0
        %v623 = vsel %vm522, %v433, 0
        %v626 = vsel %vm522, %v435, 0
        %v629 = vsel %vm522, %v437, 0
        %v632 = vsel %vm522, %v439, 0
        %v635 = vsel %vm522, %v441, 0
        %v638 = vsel %vm522, %v443, 0
        %v641 = vsel %vm522, %v445, 0
        %v644 = vsel %vm522, %v447, 0
        %v647 = vsel %vm522, %v449, 0
        %v650 = vsel %vm522, %v451, 0
        %v653 = vsel %vm522, %v453, 0
        %v656 = vsel %vm522, %v455, 0
        %v659 = vsel %vm522, %v457, 0
        %v662 = vsel %vm522, %v459, 0
        %v665 = vsel %vm522, %v461, 0
        %v668 = vsel %vm522, %v463, 0
        %v671 = vsel %vm522, %v465, 0
        %v674 = vsel %vm522, %v467, 0
        %v677 = vsel %vm522, %v469, 0
        %v680 = vsel %vm522, %v471, 0
        %v683 = vsel %vm522, %v473, 0
        %v686 = vsel %vm522, %v475, 0
        %v689 = vsel %vm522, %v477, 0
        %v692 = vsel %vm522, %v479, 0
        %v695 = vsel %vm522, %v481, 0
        %v698 = vsel %vm522, %v483, 0
        %v701 = vsel %vm522, %v485, 0
        %v704 = vsel %vm522, %v487, 0
        %v707 = vsel %vm522, %v489, 0
        %v710 = vsel %vm522, %v491, 0
        %v713 = vsel %vm522, %v493, 0
        %715 = vmatpush.msra.mxu0 %v509
        %716 = vmatpush.msra.mxu0 %v508
        %717 = vmatpush.msra.mxu0 %v507
        %718 = vmatpush.msra.mxu0 %v506
        %719 = vmatpush.msra.mxu0 %v505
        %720 = vmatpush.msra.mxu0 %v504
        %721 = vmatpush.msra.mxu0 %v503
        %722 = vmatpush.msra.mxu0 %v502
        %723 = vmatpush.msra.mxu0 %v501
        %724 = vmatpush.msra.mxu0 %v500
        %725 = vmatpush.msra.mxu0 %v499
        %726 = vmatpush.msra.mxu0 %v498
        %727 = vmatpush.msra.mxu0 %v497
        %728 = vmatpush.msra.mxu0 %v496
        %729 = vmatpush.msra.mxu0 %v495
        %730 = vmatpush.msra.mxu0 %v494
        %731 = vmatmul.f32.gmra.mxu0 %v366
        %v732 = vpop.f32.mrf.mxu0
        %v733 = vadd.f32 %v520, %v732
        %734 = vmatmul.f32.gmra.mxu0 %v368
        %v735 = vpop.f32.mrf.mxu0
        %v736 = vadd.f32 %v520, %v735
        %737 = vmatmul.f32.gmra.mxu0 %v370
        %v738 = vpop.f32.mrf.mxu0
        %v739 = vadd.f32 %v520, %v738
        %740 = vmatmul.f32.gmra.mxu0 %v372
        %v741 = vpop.f32.mrf.mxu0
        %v742 = vadd.f32 %v520, %v741
        %743 = vmatmul.f32.gmra.mxu0 %v374
        %v744 = vpop.f32.mrf.mxu0
        %v745 = vadd.f32 %v520, %v744
        %746 = vmatmul.f32.gmra.mxu0 %v376
        %v747 = vpop.f32.mrf.mxu0
        %v748 = vadd.f32 %v520, %v747
        %749 = vmatmul.f32.gmra.mxu0 %v378
        %v750 = vpop.f32.mrf.mxu0
        %v751 = vadd.f32 %v520, %v750
        %752 = vmatmul.f32.gmra.mxu0 %v380
        %v753 = vpop.f32.mrf.mxu0
        %v754 = vadd.f32 %v520, %v753
        %755 = vmatmul.f32.gmra.mxu0 %v382
        %v756 = vpop.f32.mrf.mxu0
        %v757 = vadd.f32 %v520, %v756
        %758 = vmatmul.f32.gmra.mxu0 %v384
        %v759 = vpop.f32.mrf.mxu0
        %v760 = vadd.f32 %v520, %v759
        %761 = vmatmul.f32.gmra.mxu0 %v386
        %v762 = vpop.f32.mrf.mxu0
        %v763 = vadd.f32 %v520, %v762
        %764 = vmatmul.f32.gmra.mxu0 %v388
        %v765 = vpop.f32.mrf.mxu0
        %v766 = vadd.f32 %v520, %v765
        %767 = vmatmul.f32.gmra.mxu0 %v390
        %v768 = vpop.f32.mrf.mxu0
        %v769 = vadd.f32 %v520, %v768
        %770 = vmatmul.f32.gmra.mxu0 %v392
        %v771 = vpop.f32.mrf.mxu0
        %v772 = vadd.f32 %v520, %v771
        %773 = vmatmul.f32.gmra.mxu0 %v394
        %v774 = vpop.f32.mrf.mxu0
        %v775 = vadd.f32 %v520, %v774
        %776 = vmatmul.f32.gmra.mxu0 %v396
        %v777 = vpop.f32.mrf.mxu0
        %v778 = vadd.f32 %v520, %v777
        %779 = vmatmul.f32.gmra.mxu0 %v398
        %v780 = vpop.f32.mrf.mxu0
        %v781 = vadd.f32 %v520, %v780
        %782 = vmatmul.f32.gmra.mxu0 %v400
        %v783 = vpop.f32.mrf.mxu0
        %v784 = vadd.f32 %v520, %v783
        %785 = vmatmul.f32.gmra.mxu0 %v402
        %v786 = vpop.f32.mrf.mxu0
        %v787 = vadd.f32 %v520, %v786
        %788 = vmatmul.f32.gmra.mxu0 %v404
        %v789 = vpop.f32.mrf.mxu0
        %v790 = vadd.f32 %v520, %v789
        %791 = vmatmul.f32.gmra.mxu0 %v406
        %v792 = vpop.f32.mrf.mxu0
        %v793 = vadd.f32 %v520, %v792
        %794 = vmatmul.f32.gmra.mxu0 %v408
        %v795 = vpop.f32.mrf.mxu0
        %v796 = vadd.f32 %v520, %v795
        %797 = vmatmul.f32.gmra.mxu0 %v410
        %v798 = vpop.f32.mrf.mxu0
        %v799 = vadd.f32 %v520, %v798
        %800 = vmatmul.f32.gmra.mxu0 %v412
        %v801 = vpop.f32.mrf.mxu0
        %v802 = vadd.f32 %v520, %v801
        %803 = vmatmul.f32.gmra.mxu0 %v414
        %v804 = vpop.f32.mrf.mxu0
        %v805 = vadd.f32 %v520, %v804
        %806 = vmatmul.f32.gmra.mxu0 %v416
        %v807 = vpop.f32.mrf.mxu0
        %v808 = vadd.f32 %v520, %v807
        %809 = vmatmul.f32.gmra.mxu0 %v418
        %v810 = vpop.f32.mrf.mxu0
        %v811 = vadd.f32 %v520, %v810
        %812 = vmatmul.f32.gmra.mxu0 %v420
        %v813 = vpop.f32.mrf.mxu0
        %v814 = vadd.f32 %v520, %v813
        %815 = vmatmul.f32.gmra.mxu0 %v422
        %v816 = vpop.f32.mrf.mxu0
        %v817 = vadd.f32 %v520, %v816
        %818 = vmatmul.f32.gmra.mxu0 %v424
        %v819 = vpop.f32.mrf.mxu0
        %v820 = vadd.f32 %v520, %v819
        %821 = vmatmul.f32.gmra.mxu0 %v426
        %v822 = vpop.f32.mrf.mxu0
        %v823 = vadd.f32 %v520, %v822
        %824 = vmatmul.f32.gmra.mxu0 %v428
        %v825 = vpop.f32.mrf.mxu0
        %v826 = vadd.f32 %v520, %v825
        %827 = vmatmul.f32.gmra.mxu0 %v430
        %v828 = vpop.f32.mrf.mxu0
        %v829 = vadd.f32 %v520, %v828
        %830 = vmatmul.f32.gmra.mxu0 %v432
        %v831 = vpop.f32.mrf.mxu0
        %v832 = vadd.f32 %v520, %v831
        %833 = vmatmul.f32.gmra.mxu0 %v434
        %v834 = vpop.f32.mrf.mxu0
        %v835 = vadd.f32 %v520, %v834
        %836 = vmatmul.f32.gmra.mxu0 %v436
        %v837 = vpop.f32.mrf.mxu0
        %v838 = vadd.f32 %v520, %v837
        %839 = vmatmul.f32.gmra.mxu0 %v438
        %v840 = vpop.f32.mrf.mxu0
        %v841 = vadd.f32 %v520, %v840
        %842 = vmatmul.f32.gmra.mxu0 %v440
        %v843 = vpop.f32.mrf.mxu0
        %v844 = vadd.f32 %v520, %v843
        %845 = vmatmul.f32.gmra.mxu0 %v442
        %v846 = vpop.f32.mrf.mxu0
        %v847 = vadd.f32 %v520, %v846
        %848 = vmatmul.f32.gmra.mxu0 %v444
        %v849 = vpop.f32.mrf.mxu0
        %v850 = vadd.f32 %v520, %v849
        %851 = vmatmul.f32.gmra.mxu0 %v446
        %v852 = vpop.f32.mrf.mxu0
        %v853 = vadd.f32 %v520, %v852
        %854 = vmatmul.f32.gmra.mxu0 %v448
        %v855 = vpop.f32.mrf.mxu0
        %v856 = vadd.f32 %v520, %v855
        %857 = vmatmul.f32.gmra.mxu0 %v450
        %v858 = vpop.f32.mrf.mxu0
        %v859 = vadd.f32 %v520, %v858
        %860 = vmatmul.f32.gmra.mxu0 %v452
        %v861 = vpop.f32.mrf.mxu0
        %v862 = vadd.f32 %v520, %v861
        %863 = vmatmul.f32.gmra.mxu0 %v454
        %v864 = vpop.f32.mrf.mxu0
        %v865 = vadd.f32 %v520, %v864
        %866 = vmatmul.f32.gmra.mxu0 %v456
        %v867 = vpop.f32.mrf.mxu0
        %v868 = vadd.f32 %v520, %v867
        %869 = vmatmul.f32.gmra.mxu0 %v458
        %v870 = vpop.f32.mrf.mxu0
        %v871 = vadd.f32 %v520, %v870
        %872 = vmatmul.f32.gmra.mxu0 %v460
        %v873 = vpop.f32.mrf.mxu0
        %v874 = vadd.f32 %v520, %v873
        %875 = vmatmul.f32.gmra.mxu0 %v462
        %v876 = vpop.f32.mrf.mxu0
        %v877 = vadd.f32 %v520, %v876
        %878 = vmatmul.f32.gmra.mxu0 %v464
        %v879 = vpop.f32.mrf.mxu0
        %v880 = vadd.f32 %v520, %v879
        %881 = vmatmul.f32.gmra.mxu0 %v466
        %v882 = vpop.f32.mrf.mxu0
        %v883 = vadd.f32 %v520, %v882
        %884 = vmatmul.f32.gmra.mxu0 %v468
        %v885 = vpop.f32.mrf.mxu0
        %v886 = vadd.f32 %v520, %v885
        %887 = vmatmul.f32.gmra.mxu0 %v470
        %v888 = vpop.f32.mrf.mxu0
        %v889 = vadd.f32 %v520, %v888
        %890 = vmatmul.f32.gmra.mxu0 %v472
        %v891 = vpop.f32.mrf.mxu0
        %v892 = vadd.f32 %v520, %v891
        %893 = vmatmul.f32.gmra.mxu0 %v474
        %v894 = vpop.f32.mrf.mxu0
        %v895 = vadd.f32 %v520, %v894
        %896 = vmatmul.f32.gmra.mxu0 %v476
        %v897 = vpop.f32.mrf.mxu0
        %v898 = vadd.f32 %v520, %v897
        %899 = vmatmul.f32.gmra.mxu0 %v478
        %v900 = vpop.f32.mrf.mxu0
        %v901 = vadd.f32 %v520, %v900
        %902 = vmatmul.f32.gmra.mxu0 %v480
        %v903 = vpop.f32.mrf.mxu0
        %v904 = vadd.f32 %v520, %v903
        %905 = vmatmul.f32.gmra.mxu0 %v482
        %v906 = vpop.f32.mrf.mxu0
        %v907 = vadd.f32 %v520, %v906
        %908 = vmatmul.f32.gmra.mxu0 %v484
        %v909 = vpop.f32.mrf.mxu0
        %v910 = vadd.f32 %v520, %v909
        %911 = vmatmul.f32.gmra.mxu0 %v486
        %v912 = vpop.f32.mrf.mxu0
        %v913 = vadd.f32 %v520, %v912
        %914 = vmatmul.f32.gmra.mxu0 %v488
        %v915 = vpop.f32.mrf.mxu0
        %v916 = vadd.f32 %v520, %v915
        %917 = vmatmul.f32.gmra.mxu0 %v490
        %v918 = vpop.f32.mrf.mxu0
        %v919 = vadd.f32 %v520, %v918
        %920 = vmatmul.f32.gmra.mxu0 %v492
        %v921 = vpop.f32.mrf.mxu0
        %v922 = vadd.f32 %v520, %v921
        %923 = vdwg.mxu0
        %924 = vmatpush.msra.mxu0 0.0
        %925 = vmatpush.msra.mxu0 0.0
        %926 = vmatpush.msra.mxu0 0.0
        %927 = vmatpush.msra.mxu0 0.0
        %928 = vmatpush.msra.mxu0 0.0
        %929 = vmatpush.msra.mxu0 0.0
        %930 = vmatpush.msra.mxu0 0.0
        %931 = vmatpush.msra.mxu0 0.0
        %932 = vmatpush.msra.mxu0 %v517
        %933 = vmatpush.msra.mxu0 %v516
        %934 = vmatpush.msra.mxu0 %v515
        %935 = vmatpush.msra.mxu0 %v514
        %936 = vmatpush.msra.mxu0 %v513
        %937 = vmatpush.msra.mxu0 %v512
        %938 = vmatpush.msra.mxu0 %v511
        %939 = vmatpush.msra.mxu0 %v510
        %940 = vmatmul.f32.gmra.mxu0 %v524
        %v941 = vpop.f32.mrf.mxu0
        %v942 = vadd.f32 %v733, %v941
        %943 = vmatmul.f32.gmra.mxu0 %v527
        %v944 = vpop.f32.mrf.mxu0
        %v945 = vadd.f32 %v736, %v944
        %946 = vmatmul.f32.gmra.mxu0 %v530
        %v947 = vpop.f32.mrf.mxu0
        %v948 = vadd.f32 %v739, %v947
        %949 = vmatmul.f32.gmra.mxu0 %v533
        %v950 = vpop.f32.mrf.mxu0
        %v951 = vadd.f32 %v742, %v950
        %952 = vmatmul.f32.gmra.mxu0 %v536
        %v953 = vpop.f32.mrf.mxu0
        %v954 = vadd.f32 %v745, %v953
        %955 = vmatmul.f32.gmra.mxu0 %v539
        %v956 = vpop.f32.mrf.mxu0
        %v957 = vadd.f32 %v748, %v956
        %958 = vmatmul.f32.gmra.mxu0 %v542
        %v959 = vpop.f32.mrf.mxu0
        %v960 = vadd.f32 %v751, %v959
        %961 = vmatmul.f32.gmra.mxu0 %v545
        %v962 = vpop.f32.mrf.mxu0
        %v963 = vadd.f32 %v754, %v962
        %964 = vmatmul.f32.gmra.mxu0 %v548
        %v965 = vpop.f32.mrf.mxu0
        %v966 = vadd.f32 %v757, %v965
        %967 = vmatmul.f32.gmra.mxu0 %v551
        %v968 = vpop.f32.mrf.mxu0
        %v969 = vadd.f32 %v760, %v968
        %970 = vmatmul.f32.gmra.mxu0 %v554
        %v971 = vpop.f32.mrf.mxu0
        %v972 = vadd.f32 %v763, %v971
        %973 = vmatmul.f32.gmra.mxu0 %v557
        %v974 = vpop.f32.mrf.mxu0
        %v975 = vadd.f32 %v766, %v974
        %976 = vmatmul.f32.gmra.mxu0 %v560
        %v977 = vpop.f32.mrf.mxu0
        %v978 = vadd.f32 %v769, %v977
        %979 = vmatmul.f32.gmra.mxu0 %v563
        %v980 = vpop.f32.mrf.mxu0
        %v981 = vadd.f32 %v772, %v980
        %982 = vmatmul.f32.gmra.mxu0 %v566
        %v983 = vpop.f32.mrf.mxu0
        %v984 = vadd.f32 %v775, %v983
        %985 = vmatmul.f32.gmra.mxu0 %v569
        %v986 = vpop.f32.mrf.mxu0
        %v987 = vadd.f32 %v778, %v986
        %988 = vmatmul.f32.gmra.mxu0 %v572
        %v989 = vpop.f32.mrf.mxu0
        %v990 = vadd.f32 %v781, %v989
        %991 = vmatmul.f32.gmra.mxu0 %v575
        %v992 = vpop.f32.mrf.mxu0
        %v993 = vadd.f32 %v784, %v992
        %994 = vmatmul.f32.gmra.mxu0 %v578
        %v995 = vpop.f32.mrf.mxu0
        %v996 = vadd.f32 %v787, %v995
        %997 = vmatmul.f32.gmra.mxu0 %v581
        %v998 = vpop.f32.mrf.mxu0
        %v999 = vadd.f32 %v790, %v998
        %1000 = vmatmul.f32.gmra.mxu0 %v584
        %v1001 = vpop.f32.mrf.mxu0
        %v1002 = vadd.f32 %v793, %v1001
        %1003 = vmatmul.f32.gmra.mxu0 %v587
        %v1004 = vpop.f32.mrf.mxu0
        %v1005 = vadd.f32 %v796, %v1004
        %1006 = vmatmul.f32.gmra.mxu0 %v590
        %v1007 = vpop.f32.mrf.mxu0
        %v1008 = vadd.f32 %v799, %v1007
        %1009 = vmatmul.f32.gmra.mxu0 %v593
        %v1010 = vpop.f32.mrf.mxu0
        %v1011 = vadd.f32 %v802, %v1010
        %1012 = vmatmul.f32.gmra.mxu0 %v596
        %v1013 = vpop.f32.mrf.mxu0
        %v1014 = vadd.f32 %v805, %v1013
        %1015 = vmatmul.f32.gmra.mxu0 %v599
        %v1016 = vpop.f32.mrf.mxu0
        %v1017 = vadd.f32 %v808, %v1016
        %1018 = vmatmul.f32.gmra.mxu0 %v602
        %v1019 = vpop.f32.mrf.mxu0
        %v1020 = vadd.f32 %v811, %v1019
        %1021 = vmatmul.f32.gmra.mxu0 %v605
        %v1022 = vpop.f32.mrf.mxu0
        %v1023 = vadd.f32 %v814, %v1022
        %1024 = vmatmul.f32.gmra.mxu0 %v608
        %v1025 = vpop.f32.mrf.mxu0
        %v1026 = vadd.f32 %v817, %v1025
        %1027 = vmatmul.f32.gmra.mxu0 %v611
        %v1028 = vpop.f32.mrf.mxu0
        %v1029 = vadd.f32 %v820, %v1028
        %1030 = vmatmul.f32.gmra.mxu0 %v614
        %v1031 = vpop.f32.mrf.mxu0
        %v1032 = vadd.f32 %v823, %v1031
        %1033 = vmatmul.f32.gmra.mxu0 %v617
        %v1034 = vpop.f32.mrf.mxu0
        %v1035 = vadd.f32 %v826, %v1034
        %1036 = vmatmul.f32.gmra.mxu0 %v620
        %v1037 = vpop.f32.mrf.mxu0
        %v1038 = vadd.f32 %v829, %v1037
        %1039 = vmatmul.f32.gmra.mxu0 %v623
        %v1040 = vpop.f32.mrf.mxu0
        %v1041 = vadd.f32 %v832, %v1040
        %1042 = vmatmul.f32.gmra.mxu0 %v626
        %v1043 = vpop.f32.mrf.mxu0
        %v1044 = vadd.f32 %v835, %v1043
        %1045 = vmatmul.f32.gmra.mxu0 %v629
        %v1046 = vpop.f32.mrf.mxu0
        %v1047 = vadd.f32 %v838, %v1046
        %1048 = vmatmul.f32.gmra.mxu0 %v632
        %v1049 = vpop.f32.mrf.mxu0
        %v1050 = vadd.f32 %v841, %v1049
        %1051 = vmatmul.f32.gmra.mxu0 %v635
        %v1052 = vpop.f32.mrf.mxu0
        %v1053 = vadd.f32 %v844, %v1052
        %1054 = vmatmul.f32.gmra.mxu0 %v638
        %v1055 = vpop.f32.mrf.mxu0
        %v1056 = vadd.f32 %v847, %v1055
        %1057 = vmatmul.f32.gmra.mxu0 %v641
        %v1058 = vpop.f32.mrf.mxu0
        %v1059 = vadd.f32 %v850, %v1058
        %1060 = vmatmul.f32.gmra.mxu0 %v644
        %v1061 = vpop.f32.mrf.mxu0
        %v1062 = vadd.f32 %v853, %v1061
        %1063 = vmatmul.f32.gmra.mxu0 %v647
        %v1064 = vpop.f32.mrf.mxu0
        %v1065 = vadd.f32 %v856, %v1064
        %1066 = vmatmul.f32.gmra.mxu0 %v650
        %v1067 = vpop.f32.mrf.mxu0
        %v1068 = vadd.f32 %v859, %v1067
        %1069 = vmatmul.f32.gmra.mxu0 %v653
        %v1070 = vpop.f32.mrf.mxu0
        %v1071 = vadd.f32 %v862, %v1070
        %1072 = vmatmul.f32.gmra.mxu0 %v656
        %v1073 = vpop.f32.mrf.mxu0
        %v1074 = vadd.f32 %v865, %v1073
        %1075 = vmatmul.f32.gmra.mxu0 %v659
        %v1076 = vpop.f32.mrf.mxu0
        %v1077 = vadd.f32 %v868, %v1076
        %1078 = vmatmul.f32.gmra.mxu0 %v662
        %v1079 = vpop.f32.mrf.mxu0
        %v1080 = vadd.f32 %v871, %v1079
        %1081 = vmatmul.f32.gmra.mxu0 %v665
        %v1082 = vpop.f32.mrf.mxu0
        %v1083 = vadd.f32 %v874, %v1082
        %1084 = vmatmul.f32.gmra.mxu0 %v668
        %v1085 = vpop.f32.mrf.mxu0
        %v1086 = vadd.f32 %v877, %v1085
        %1087 = vmatmul.f32.gmra.mxu0 %v671
        %v1088 = vpop.f32.mrf.mxu0
        %v1089 = vadd.f32 %v880, %v1088
        %1090 = vmatmul.f32.gmra.mxu0 %v674
        %v1091 = vpop.f32.mrf.mxu0
        %v1092 = vadd.f32 %v883, %v1091
        %1093 = vmatmul.f32.gmra.mxu0 %v677
        %v1094 = vpop.f32.mrf.mxu0
        %v1095 = vadd.f32 %v886, %v1094
        %1096 = vmatmul.f32.gmra.mxu0 %v680
        %v1097 = vpop.f32.mrf.mxu0
        %v1098 = vadd.f32 %v889, %v1097
        %1099 = vmatmul.f32.gmra.mxu0 %v683
        %v1100 = vpop.f32.mrf.mxu0
        %v1101 = vadd.f32 %v892, %v1100
        %1102 = vmatmul.f32.gmra.mxu0 %v686
        %v1103 = vpop.f32.mrf.mxu0
        %v1104 = vadd.f32 %v895, %v1103
        %1105 = vmatmul.f32.gmra.mxu0 %v689
        %v1106 = vpop.f32.mrf.mxu0
        %v1107 = vadd.f32 %v898, %v1106
        %1108 = vmatmul.f32.gmra.mxu0 %v692
        %v1109 = vpop.f32.mrf.mxu0
        %v1110 = vadd.f32 %v901, %v1109
        %1111 = vmatmul.f32.gmra.mxu0 %v695
        %v1112 = vpop.f32.mrf.mxu0
        %v1113 = vadd.f32 %v904, %v1112
        %1114 = vmatmul.f32.gmra.mxu0 %v698
        %v1115 = vpop.f32.mrf.mxu0
        %v1116 = vadd.f32 %v907, %v1115
        %1117 = vmatmul.f32.gmra.mxu0 %v701
        %v1118 = vpop.f32.mrf.mxu0
        %v1119 = vadd.f32 %v910, %v1118
        %1120 = vmatmul.f32.gmra.mxu0 %v704
        %v1121 = vpop.f32.mrf.mxu0
        %v1122 = vadd.f32 %v913, %v1121
        %1123 = vmatmul.f32.gmra.mxu0 %v707
        %v1124 = vpop.f32.mrf.mxu0
        %v1125 = vadd.f32 %v916, %v1124
        %1126 = vmatmul.f32.gmra.mxu0 %v710
        %v1127 = vpop.f32.mrf.mxu0
        %v1128 = vadd.f32 %v919, %v1127
        %1129 = vmatmul.f32.gmra.mxu0 %v713
        %v1130 = vpop.f32.mrf.mxu0
        %v1131 = vadd.f32 %v922, %v1130
        %1132 = vdwg.mxu0
        %v1133 = vmax.f32 %v942, 0.0
        %v1134 = vmax.f32 %v945, 0.0
        %v1135 = vmax.f32 %v948, 0.0
        %v1136 = vmax.f32 %v951, 0.0
        %v1137 = vmax.f32 %v954, 0.0
        %v1138 = vmax.f32 %v957, 0.0
        %v1139 = vmax.f32 %v960, 0.0
        %v1140 = vmax.f32 %v963, 0.0
        %v1141 = vmax.f32 %v966, 0.0
        %v1142 = vmax.f32 %v969, 0.0
        %v1143 = vmax.f32 %v972, 0.0
        %v1144 = vmax.f32 %v975, 0.0
        %v1145 = vmax.f32 %v978, 0.0
        %v1146 = vmax.f32 %v981, 0.0
        %v1147 = vmax.f32 %v984, 0.0
        %v1148 = vmax.f32 %v987, 0.0
        %v1149 = vmax.f32 %v990, 0.0
        %v1150 = vmax.f32 %v993, 0.0
        %v1151 = vmax.f32 %v996, 0.0
        %v1152 = vmax.f32 %v999, 0.0
        %v1153 = vmax.f32 %v1002, 0.0
        %v1154 = vmax.f32 %v1005, 0.0
        %v1155 = vmax.f32 %v1008, 0.0
        %v1156 = vmax.f32 %v1011, 0.0
        %v1157 = vmax.f32 %v1014, 0.0
        %v1158 = vmax.f32 %v1017, 0.0
        %v1159 = vmax.f32 %v1020, 0.0
        %v1160 = vmax.f32 %v1023, 0.0
        %v1161 = vmax.f32 %v1026, 0.0
        %v1162 = vmax.f32 %v1029, 0.0
        %v1163 = vmax.f32 %v1032, 0.0
        %v1164 = vmax.f32 %v1035, 0.0
        %v1165 = vmax.f32 %v1038, 0.0
        %v1166 = vmax.f32 %v1041, 0.0
        %v1167 = vmax.f32 %v1044, 0.0
        %v1168 = vmax.f32 %v1047, 0.0
        %v1169 = vmax.f32 %v1050, 0.0
        %v1170 = vmax.f32 %v1053, 0.0
        %v1171 = vmax.f32 %v1056, 0.0
        %v1172 = vmax.f32 %v1059, 0.0
        %v1173 = vmax.f32 %v1062, 0.0
        %v1174 = vmax.f32 %v1065, 0.0
        %v1175 = vmax.f32 %v1068, 0.0
        %v1176 = vmax.f32 %v1071, 0.0
        %v1177 = vmax.f32 %v1074, 0.0
        %v1178 = vmax.f32 %v1077, 0.0
        %v1179 = vmax.f32 %v1080, 0.0
        %v1180 = vmax.f32 %v1083, 0.0
        %v1181 = vmax.f32 %v1086, 0.0
        %v1182 = vmax.f32 %v1089, 0.0
        %v1183 = vmax.f32 %v1092, 0.0
        %v1184 = vmax.f32 %v1095, 0.0
        %v1185 = vmax.f32 %v1098, 0.0
        %v1186 = vmax.f32 %v1101, 0.0
        %v1187 = vmax.f32 %v1104, 0.0
        %v1188 = vmax.f32 %v1107, 0.0
        %v1189 = vmax.f32 %v1110, 0.0
        %v1190 = vmax.f32 %v1113, 0.0
        %v1191 = vmax.f32 %v1116, 0.0
        %v1192 = vmax.f32 %v1119, 0.0
        %v1193 = vmax.f32 %v1122, 0.0
        %v1194 = vmax.f32 %v1125, 0.0
        %v1195 = vmax.f32 %v1128, 0.0
        %v1196 = vmax.f32 %v1131, 0.0
        %v1197 = vld [vmem:[%s3] sm:$0xff]
        %v1198 = vld [vmem:[%s3 + $0x8] sm:$0xff]
        %v1199 = vld [vmem:[%s3 + $0x10] sm:$0xff]
        %v1200 = vld [vmem:[%s3 + $0x18] sm:$0xff]
        %v1201 = vld [vmem:[%s3 + $0x20] sm:$0xff]
        %v1202 = vld [vmem:[%s3 + $0x28] sm:$0xff]
        %v1203 = vld [vmem:[%s3 + $0x30] sm:$0xff]
        %v1204 = vld [vmem:[%s3 + $0x38] sm:$0xff]
        %v1205 = vld [vmem:[%s3 + $0x40] sm:$0xff]
        %v1206 = vld [vmem:[%s3 + $0x48] sm:$0xff]
        %v1207 = vld [vmem:[%s3 + $0x50] sm:$0xff]
        %v1208 = vld [vmem:[%s3 + $0x58] sm:$0xff]
        %v1209 = vld [vmem:[%s3 + $0x60] sm:$0xff]
        %v1210 = vld [vmem:[%s3 + $0x68] sm:$0xff]
        %v1211 = vld [vmem:[%s3 + $0x70] sm:$0xff]
        %v1212 = vld [vmem:[%s3 + $0x78] sm:$0xff]
        %v1213 = vld [vmem:[%s4] sm:$0x1]
        %v1215 = vperm.slane %v1213, 0
        %1217 = vmatpush.msra.mxu0 %v1212
        %1218 = vmatpush.msra.mxu0 %v1211
        %1219 = vmatpush.msra.mxu0 %v1210
        %1220 = vmatpush.msra.mxu0 %v1209
        %1221 = vmatpush.msra.mxu0 %v1208
        %1222 = vmatpush.msra.mxu0 %v1207
        %1223 = vmatpush.msra.mxu0 %v1206
        %1224 = vmatpush.msra.mxu0 %v1205
        %1225 = vmatpush.msra.mxu0 %v1204
        %1226 = vmatpush.msra.mxu0 %v1203
        %1227 = vmatpush.msra.mxu0 %v1202
        %1228 = vmatpush.msra.mxu0 %v1201
        %1229 = vmatpush.msra.mxu0 %v1200
        %1230 = vmatpush.msra.mxu0 %v1199
        %1231 = vmatpush.msra.mxu0 %v1198
        %1232 = vmatpush.msra.mxu0 %v1197
        %1233 = vmatmul.f32.gmra.mxu0 %v1133
        %v1234 = vpop.f32.mrf.mxu0
        %v1235 = vadd.f32 %v1215, %v1234
        %1236 = vmatmul.f32.gmra.mxu0 %v1134
        %v1237 = vpop.f32.mrf.mxu0
        %v1238 = vadd.f32 %v1215, %v1237
        %1239 = vmatmul.f32.gmra.mxu0 %v1135
        %v1240 = vpop.f32.mrf.mxu0
        %v1241 = vadd.f32 %v1215, %v1240
        %1242 = vmatmul.f32.gmra.mxu0 %v1136
        %v1243 = vpop.f32.mrf.mxu0
        %v1244 = vadd.f32 %v1215, %v1243
        %1245 = vmatmul.f32.gmra.mxu0 %v1137
        %v1246 = vpop.f32.mrf.mxu0
        %v1247 = vadd.f32 %v1215, %v1246
        %1248 = vmatmul.f32.gmra.mxu0 %v1138
        %v1249 = vpop.f32.mrf.mxu0
        %v1250 = vadd.f32 %v1215, %v1249
        %1251 = vmatmul.f32.gmra.mxu0 %v1139
        %v1252 = vpop.f32.mrf.mxu0
        %v1253 = vadd.f32 %v1215, %v1252
        %1254 = vmatmul.f32.gmra.mxu0 %v1140
        %v1255 = vpop.f32.mrf.mxu0
        %v1256 = vadd.f32 %v1215, %v1255
        %1257 = vmatmul.f32.gmra.mxu0 %v1141
        %v1258 = vpop.f32.mrf.mxu0
        %v1259 = vadd.f32 %v1215, %v1258
        %1260 = vmatmul.f32.gmra.mxu0 %v1142
        %v1261 = vpop.f32.mrf.mxu0
        %v1262 = vadd.f32 %v1215, %v1261
        %1263 = vmatmul.f32.gmra.mxu0 %v1143
        %v1264 = vpop.f32.mrf.mxu0
        %v1265 = vadd.f32 %v1215, %v1264
        %1266 = vmatmul.f32.gmra.mxu0 %v1144
        %v1267 = vpop.f32.mrf.mxu0
        %v1268 = vadd.f32 %v1215, %v1267
        %1269 = vmatmul.f32.gmra.mxu0 %v1145
        %v1270 = vpop.f32.mrf.mxu0
        %v1271 = vadd.f32 %v1215, %v1270
        %1272 = vmatmul.f32.gmra.mxu0 %v1146
        %v1273 = vpop.f32.mrf.mxu0
        %v1274 = vadd.f32 %v1215, %v1273
        %1275 = vmatmul.f32.gmra.mxu0 %v1147
        %v1276 = vpop.f32.mrf.mxu0
        %v1277 = vadd.f32 %v1215, %v1276
        %1278 = vmatmul.f32.gmra.mxu0 %v1148
        %v1279 = vpop.f32.mrf.mxu0
        %v1280 = vadd.f32 %v1215, %v1279
        %1281 = vmatmul.f32.gmra.mxu0 %v1149
        %v1282 = vpop.f32.mrf.mxu0
        %v1283 = vadd.f32 %v1215, %v1282
        %1284 = vmatmul.f32.gmra.mxu0 %v1150
        %v1285 = vpop.f32.mrf.mxu0
        %v1286 = vadd.f32 %v1215, %v1285
        %1287 = vmatmul.f32.gmra.mxu0 %v1151
        %v1288 = vpop.f32.mrf.mxu0
        %v1289 = vadd.f32 %v1215, %v1288
        %1290 = vmatmul.f32.gmra.mxu0 %v1152
        %v1291 = vpop.f32.mrf.mxu0
        %v1292 = vadd.f32 %v1215, %v1291
        %1293 = vmatmul.f32.gmra.mxu0 %v1153
        %v1294 = vpop.f32.mrf.mxu0
        %v1295 = vadd.f32 %v1215, %v1294
        %1296 = vmatmul.f32.gmra.mxu0 %v1154
        %v1297 = vpop.f32.mrf.mxu0
        %v1298 = vadd.f32 %v1215, %v1297
        %1299 = vmatmul.f32.gmra.mxu0 %v1155
        %v1300 = vpop.f32.mrf.mxu0
        %v1301 = vadd.f32 %v1215, %v1300
        %1302 = vmatmul.f32.gmra.mxu0 %v1156
        %v1303 = vpop.f32.mrf.mxu0
        %v1304 = vadd.f32 %v1215, %v1303
        %1305 = vmatmul.f32.gmra.mxu0 %v1157
        %v1306 = vpop.f32.mrf.mxu0
        %v1307 = vadd.f32 %v1215, %v1306
        %1308 = vmatmul.f32.gmra.mxu0 %v1158
        %v1309 = vpop.f32.mrf.mxu0
        %v1310 = vadd.f32 %v1215, %v1309
        %1311 = vmatmul.f32.gmra.mxu0 %v1159
        %v1312 = vpop.f32.mrf.mxu0
        %v1313 = vadd.f32 %v1215, %v1312
        %1314 = vmatmul.f32.gmra.mxu0 %v1160
        %v1315 = vpop.f32.mrf.mxu0
        %v1316 = vadd.f32 %v1215, %v1315
        %1317 = vmatmul.f32.gmra.mxu0 %v1161
        %v1318 = vpop.f32.mrf.mxu0
        %v1319 = vadd.f32 %v1215, %v1318
        %1320 = vmatmul.f32.gmra.mxu0 %v1162
        %v1321 = vpop.f32.mrf.mxu0
        %v1322 = vadd.f32 %v1215, %v1321
        %1323 = vmatmul.f32.gmra.mxu0 %v1163
        %v1324 = vpop.f32.mrf.mxu0
        %v1325 = vadd.f32 %v1215, %v1324
        %1326 = vmatmul.f32.gmra.mxu0 %v1164
        %v1327 = vpop.f32.mrf.mxu0
        %v1328 = vadd.f32 %v1215, %v1327
        %1329 = vmatmul.f32.gmra.mxu0 %v1165
        %v1330 = vpop.f32.mrf.mxu0
        %v1331 = vadd.f32 %v1215, %v1330
        %1332 = vmatmul.f32.gmra.mxu0 %v1166
        %v1333 = vpop.f32.mrf.mxu0
        %v1334 = vadd.f32 %v1215, %v1333
        %1335 = vmatmul.f32.gmra.mxu0 %v1167
        %v1336 = vpop.f32.mrf.mxu0
        %v1337 = vadd.f32 %v1215, %v1336
        %1338 = vmatmul.f32.gmra.mxu0 %v1168
        %v1339 = vpop.f32.mrf.mxu0
        %v1340 = vadd.f32 %v1215, %v1339
        %1341 = vmatmul.f32.gmra.mxu0 %v1169
        %v1342 = vpop.f32.mrf.mxu0
        %v1343 = vadd.f32 %v1215, %v1342
        %1344 = vmatmul.f32.gmra.mxu0 %v1170
        %v1345 = vpop.f32.mrf.mxu0
        %v1346 = vadd.f32 %v1215, %v1345
        %1347 = vmatmul.f32.gmra.mxu0 %v1171
        %v1348 = vpop.f32.mrf.mxu0
        %v1349 = vadd.f32 %v1215, %v1348
        %1350 = vmatmul.f32.gmra.mxu0 %v1172
        %v1351 = vpop.f32.mrf.mxu0
        %v1352 = vadd.f32 %v1215, %v1351
        %1353 = vmatmul.f32.gmra.mxu0 %v1173
        %v1354 = vpop.f32.mrf.mxu0
        %v1355 = vadd.f32 %v1215, %v1354
        %1356 = vmatmul.f32.gmra.mxu0 %v1174
        %v1357 = vpop.f32.mrf.mxu0
        %v1358 = vadd.f32 %v1215, %v1357
        %1359 = vmatmul.f32.gmra.mxu0 %v1175
        %v1360 = vpop.f32.mrf.mxu0
        %v1361 = vadd.f32 %v1215, %v1360
        %1362 = vmatmul.f32.gmra.mxu0 %v1176
        %v1363 = vpop.f32.mrf.mxu0
        %v1364 = vadd.f32 %v1215, %v1363
        %1365 = vmatmul.f32.gmra.mxu0 %v1177
        %v1366 = vpop.f32.mrf.mxu0
        %v1367 = vadd.f32 %v1215, %v1366
        %1368 = vmatmul.f32.gmra.mxu0 %v1178
        %v1369 = vpop.f32.mrf.mxu0
        %v1370 = vadd.f32 %v1215, %v1369
        %1371 = vmatmul.f32.gmra.mxu0 %v1179
        %v1372 = vpop.f32.mrf.mxu0
        %v1373 = vadd.f32 %v1215, %v1372
        %1374 = vmatmul.f32.gmra.mxu0 %v1180
        %v1375 = vpop.f32.mrf.mxu0
        %v1376 = vadd.f32 %v1215, %v1375
        %1377 = vmatmul.f32.gmra.mxu0 %v1181
        %v1378 = vpop.f32.mrf.mxu0
        %v1379 = vadd.f32 %v1215, %v1378
        %1380 = vmatmul.f32.gmra.mxu0 %v1182
        %v1381 = vpop.f32.mrf.mxu0
        %v1382 = vadd.f32 %v1215, %v1381
        %1383 = vmatmul.f32.gmra.mxu0 %v1183
        %v1384 = vpop.f32.mrf.mxu0
        %v1385 = vadd.f32 %v1215, %v1384
        %1386 = vmatmul.f32.gmra.mxu0 %v1184
        %v1387 = vpop.f32.mrf.mxu0
        %v1388 = vadd.f32 %v1215, %v1387
        %1389 = vmatmul.f32.gmra.mxu0 %v1185
        %v1390 = vpop.f32.mrf.mxu0
        %v1391 = vadd.f32 %v1215, %v1390
        %1392 = vmatmul.f32.gmra.mxu0 %v1186
        %v1393 = vpop.f32.mrf.mxu0
        %v1394 = vadd.f32 %v1215, %v1393
        %1395 = vmatmul.f32.gmra.mxu0 %v1187
        %v1396 = vpop.f32.mrf.mxu0
        %v1397 = vadd.f32 %v1215, %v1396
        %1398 = vmatmul.f32.gmra.mxu0 %v1188
        %v1399 = vpop.f32.mrf.mxu0
        %v1400 = vadd.f32 %v1215, %v1399
        %1401 = vmatmul.f32.gmra.mxu0 %v1189
        %v1402 = vpop.f32.mrf.mxu0
        %v1403 = vadd.f32 %v1215, %v1402
        %1404 = vmatmul.f32.gmra.mxu0 %v1190
        %v1405 = vpop.f32.mrf.mxu0
        %v1406 = vadd.f32 %v1215, %v1405
        %1407 = vmatmul.f32.gmra.mxu0 %v1191
        %v1408 = vpop.f32.mrf.mxu0
        %v1409 = vadd.f32 %v1215, %v1408
        %1410 = vmatmul.f32.gmra.mxu0 %v1192
        %v1411 = vpop.f32.mrf.mxu0
        %v1412 = vadd.f32 %v1215, %v1411
        %1413 = vmatmul.f32.gmra.mxu0 %v1193
        %v1414 = vpop.f32.mrf.mxu0
        %v1415 = vadd.f32 %v1215, %v1414
        %1416 = vmatmul.f32.gmra.mxu0 %v1194
        %v1417 = vpop.f32.mrf.mxu0
        %v1418 = vadd.f32 %v1215, %v1417
        %1419 = vmatmul.f32.gmra.mxu0 %v1195
        %v1420 = vpop.f32.mrf.mxu0
        %v1421 = vadd.f32 %v1215, %v1420
        %1422 = vmatmul.f32.gmra.mxu0 %v1196
        %v1423 = vpop.f32.mrf.mxu0
        %v1424 = vadd.f32 %v1215, %v1423
        %1425 = vdwg.mxu0
        %v1426 = vmax.f32 %v1235, 0.0
        %v1427 = vmax.f32 %v1238, 0.0
        %v1428 = vmax.f32 %v1241, 0.0
        %v1429 = vmax.f32 %v1244, 0.0
        %v1430 = vmax.f32 %v1247, 0.0
        %v1431 = vmax.f32 %v1250, 0.0
        %v1432 = vmax.f32 %v1253, 0.0
        %v1433 = vmax.f32 %v1256, 0.0
        %v1434 = vmax.f32 %v1259, 0.0
        %v1435 = vmax.f32 %v1262, 0.0
        %v1436 = vmax.f32 %v1265, 0.0
        %v1437 = vmax.f32 %v1268, 0.0
        %v1438 = vmax.f32 %v1271, 0.0
        %v1439 = vmax.f32 %v1274, 0.0
        %v1440 = vmax.f32 %v1277, 0.0
        %v1441 = vmax.f32 %v1280, 0.0
        %v1442 = vmax.f32 %v1283, 0.0
        %v1443 = vmax.f32 %v1286, 0.0
        %v1444 = vmax.f32 %v1289, 0.0
        %v1445 = vmax.f32 %v1292, 0.0
        %v1446 = vmax.f32 %v1295, 0.0
        %v1447 = vmax.f32 %v1298, 0.0
        %v1448 = vmax.f32 %v1301, 0.0
        %v1449 = vmax.f32 %v1304, 0.0
        %v1450 = vmax.f32 %v1307, 0.0
        %v1451 = vmax.f32 %v1310, 0.0
        %v1452 = vmax.f32 %v1313, 0.0
        %v1453 = vmax.f32 %v1316, 0.0
        %v1454 = vmax.f32 %v1319, 0.0
        %v1455 = vmax.f32 %v1322, 0.0
        %v1456 = vmax.f32 %v1325, 0.0
        %v1457 = vmax.f32 %v1328, 0.0
        %v1458 = vmax.f32 %v1331, 0.0
        %v1459 = vmax.f32 %v1334, 0.0
        %v1460 = vmax.f32 %v1337, 0.0
        %v1461 = vmax.f32 %v1340, 0.0
        %v1462 = vmax.f32 %v1343, 0.0
        %v1463 = vmax.f32 %v1346, 0.0
        %v1464 = vmax.f32 %v1349, 0.0
        %v1465 = vmax.f32 %v1352, 0.0
        %v1466 = vmax.f32 %v1355, 0.0
        %v1467 = vmax.f32 %v1358, 0.0
        %v1468 = vmax.f32 %v1361, 0.0
        %v1469 = vmax.f32 %v1364, 0.0
        %v1470 = vmax.f32 %v1367, 0.0
        %v1471 = vmax.f32 %v1370, 0.0
        %v1472 = vmax.f32 %v1373, 0.0
        %v1473 = vmax.f32 %v1376, 0.0
        %v1474 = vmax.f32 %v1379, 0.0
        %v1475 = vmax.f32 %v1382, 0.0
        %v1476 = vmax.f32 %v1385, 0.0
        %v1477 = vmax.f32 %v1388, 0.0
        %v1478 = vmax.f32 %v1391, 0.0
        %v1479 = vmax.f32 %v1394, 0.0
        %v1480 = vmax.f32 %v1397, 0.0
        %v1481 = vmax.f32 %v1400, 0.0
        %v1482 = vmax.f32 %v1403, 0.0
        %v1483 = vmax.f32 %v1406, 0.0
        %v1484 = vmax.f32 %v1409, 0.0
        %v1485 = vmax.f32 %v1412, 0.0
        %v1486 = vmax.f32 %v1415, 0.0
        %v1487 = vmax.f32 %v1418, 0.0
        %v1488 = vmax.f32 %v1421, 0.0
        %v1489 = vmax.f32 %v1424, 0.0
        %v1490 = vld [vmem:[%s5] sm:$0xff]
        %v1491 = vld [vmem:[%s5 + $0x8] sm:$0xff]
        %v1492 = vld [vmem:[%s5 + $0x10] sm:$0xff]
        %v1493 = vld [vmem:[%s5 + $0x18] sm:$0xff]
        %v1494 = vld [vmem:[%s5 + $0x20] sm:$0xff]
        %v1495 = vld [vmem:[%s5 + $0x28] sm:$0xff]
        %v1496 = vld [vmem:[%s5 + $0x30] sm:$0xff]
        %v1497 = vld [vmem:[%s5 + $0x38] sm:$0xff]
        %v1498 = vld [vmem:[%s5 + $0x40] sm:$0xff]
        %v1499 = vld [vmem:[%s5 + $0x48] sm:$0xff]
        %v1500 = vld [vmem:[%s5 + $0x50] sm:$0xff]
        %v1501 = vld [vmem:[%s5 + $0x58] sm:$0xff]
        %v1502 = vld [vmem:[%s5 + $0x60] sm:$0xff]
        %v1503 = vld [vmem:[%s5 + $0x68] sm:$0xff]
        %v1504 = vld [vmem:[%s5 + $0x70] sm:$0xff]
        %v1505 = vld [vmem:[%s5 + $0x78] sm:$0xff]
        %v1506 = vld [vmem:[%s5 + $0x80] sm:$0xff]
        %v1507 = vld [vmem:[%s5 + $0x88] sm:$0xff]
        %v1508 = vld [vmem:[%s5 + $0x90] sm:$0xff]
        %v1509 = vld [vmem:[%s5 + $0x98] sm:$0xff]
        %v1510 = vld [vmem:[%s5 + $0xa0] sm:$0xff]
        %v1511 = vld [vmem:[%s5 + $0xa8] sm:$0xff]
        %v1512 = vld [vmem:[%s5 + $0xb0] sm:$0xff]
        %v1513 = vld [vmem:[%s5 + $0xb8] sm:$0xff]
        %v1514 = vld [vmem:[%s5 + $0xc0] sm:$0xff]
        %v1515 = vld [vmem:[%s5 + $0xc8] sm:$0xff]
        %v1516 = vld [vmem:[%s5 + $0xd0] sm:$0xff]
        %v1517 = vld [vmem:[%s5 + $0xd8] sm:$0xff]
        %v1518 = vld [vmem:[%s5 + $0xe0] sm:$0xff]
        %v1519 = vld [vmem:[%s5 + $0xe8] sm:$0xff]
        %v1520 = vld [vmem:[%s5 + $0xf0] sm:$0xff]
        %v1521 = vld [vmem:[%s5 + $0xf8] sm:$0xff]
        %1522 = vmatpush.msra.mxu0 %v1520
        %1523 = vmatpush.msra.mxu0 %v1518
        %1524 = vmatpush.msra.mxu0 %v1516
        %1525 = vmatpush.msra.mxu0 %v1514
        %1526 = vmatpush.msra.mxu0 %v1512
        %1527 = vmatpush.msra.mxu0 %v1510
        %1528 = vmatpush.msra.mxu0 %v1508
        %1529 = vmatpush.msra.mxu0 %v1506
        %1530 = vmatpush.msra.mxu0 %v1504
        %1531 = vmatpush.msra.mxu0 %v1502
        %1532 = vmatpush.msra.mxu0 %v1500
        %1533 = vmatpush.msra.mxu0 %v1498
        %1534 = vmatpush.msra.mxu0 %v1496
        %1535 = vmatpush.msra.mxu0 %v1494
        %1536 = vmatpush.msra.mxu0 %v1492
        %1537 = vmatpush.msra.mxu0 %v1490
        %1538 = vmatmul.f32.gmra.mxu0 %v1426
        %v1539 = vpop.f32.mrf.mxu0
        %v1540 = vadd.f32 0.0, %v1539
        %1541 = vmatmul.f32.gmra.mxu0 %v1427
        %v1542 = vpop.f32.mrf.mxu0
        %v1543 = vadd.f32 0.0, %v1542
        %1544 = vmatmul.f32.gmra.mxu0 %v1428
        %v1545 = vpop.f32.mrf.mxu0
        %v1546 = vadd.f32 0.0, %v1545
        %1547 = vmatmul.f32.gmra.mxu0 %v1429
        %v1548 = vpop.f32.mrf.mxu0
        %v1549 = vadd.f32 0.0, %v1548
        %1550 = vmatmul.f32.gmra.mxu0 %v1430
        %v1551 = vpop.f32.mrf.mxu0
        %v1552 = vadd.f32 0.0, %v1551
        %1553 = vmatmul.f32.gmra.mxu0 %v1431
        %v1554 = vpop.f32.mrf.mxu0
        %v1555 = vadd.f32 0.0, %v1554
        %1556 = vmatmul.f32.gmra.mxu0 %v1432
        %v1557 = vpop.f32.mrf.mxu0
        %v1558 = vadd.f32 0.0, %v1557
        %1559 = vmatmul.f32.gmra.mxu0 %v1433
        %v1560 = vpop.f32.mrf.mxu0
        %v1561 = vadd.f32 0.0, %v1560
        %1562 = vmatmul.f32.gmra.mxu0 %v1434
        %v1563 = vpop.f32.mrf.mxu0
        %v1564 = vadd.f32 0.0, %v1563
        %1565 = vmatmul.f32.gmra.mxu0 %v1435
        %v1566 = vpop.f32.mrf.mxu0
        %v1567 = vadd.f32 0.0, %v1566
        %1568 = vmatmul.f32.gmra.mxu0 %v1436
        %v1569 = vpop.f32.mrf.mxu0
        %v1570 = vadd.f32 0.0, %v1569
        %1571 = vmatmul.f32.gmra.mxu0 %v1437
        %v1572 = vpop.f32.mrf.mxu0
        %v1573 = vadd.f32 0.0, %v1572
        %1574 = vmatmul.f32.gmra.mxu0 %v1438
        %v1575 = vpop.f32.mrf.mxu0
        %v1576 = vadd.f32 0.0, %v1575
        %1577 = vmatmul.f32.gmra.mxu0 %v1439
        %v1578 = vpop.f32.mrf.mxu0
        %v1579 = vadd.f32 0.0, %v1578
        %1580 = vmatmul.f32.gmra.mxu0 %v1440
        %v1581 = vpop.f32.mrf.mxu0
        %v1582 = vadd.f32 0.0, %v1581
        %1583 = vmatmul.f32.gmra.mxu0 %v1441
        %v1584 = vpop.f32.mrf.mxu0
        %v1585 = vadd.f32 0.0, %v1584
        %1586 = vmatmul.f32.gmra.mxu0 %v1442
        %v1587 = vpop.f32.mrf.mxu0
        %v1588 = vadd.f32 0.0, %v1587
        %1589 = vmatmul.f32.gmra.mxu0 %v1443
        %v1590 = vpop.f32.mrf.mxu0
        %v1591 = vadd.f32 0.0, %v1590
        %1592 = vmatmul.f32.gmra.mxu0 %v1444
        %v1593 = vpop.f32.mrf.mxu0
        %v1594 = vadd.f32 0.0, %v1593
        %1595 = vmatmul.f32.gmra.mxu0 %v1445
        %v1596 = vpop.f32.mrf.mxu0
        %v1597 = vadd.f32 0.0, %v1596
        %1598 = vmatmul.f32.gmra.mxu0 %v1446
        %v1599 = vpop.f32.mrf.mxu0
        %v1600 = vadd.f32 0.0, %v1599
        %1601 = vmatmul.f32.gmra.mxu0 %v1447
        %v1602 = vpop.f32.mrf.mxu0
        %v1603 = vadd.f32 0.0, %v1602
        %1604 = vmatmul.f32.gmra.mxu0 %v1448
        %v1605 = vpop.f32.mrf.mxu0
        %v1606 = vadd.f32 0.0, %v1605
        %1607 = vmatmul.f32.gmra.mxu0 %v1449
        %v1608 = vpop.f32.mrf.mxu0
        %v1609 = vadd.f32 0.0, %v1608
        %1610 = vmatmul.f32.gmra.mxu0 %v1450
        %v1611 = vpop.f32.mrf.mxu0
        %v1612 = vadd.f32 0.0, %v1611
        %1613 = vmatmul.f32.gmra.mxu0 %v1451
        %v1614 = vpop.f32.mrf.mxu0
        %v1615 = vadd.f32 0.0, %v1614
        %1616 = vmatmul.f32.gmra.mxu0 %v1452
        %v1617 = vpop.f32.mrf.mxu0
        %v1618 = vadd.f32 0.0, %v1617
        %1619 = vmatmul.f32.gmra.mxu0 %v1453
        %v1620 = vpop.f32.mrf.mxu0
        %v1621 = vadd.f32 0.0, %v1620
        %1622 = vmatmul.f32.gmra.mxu0 %v1454
        %v1623 = vpop.f32.mrf.mxu0
        %v1624 = vadd.f32 0.0, %v1623
        %1625 = vmatmul.f32.gmra.mxu0 %v1455
        %v1626 = vpop.f32.mrf.mxu0
        %v1627 = vadd.f32 0.0, %v1626
        %1628 = vmatmul.f32.gmra.mxu0 %v1456
        %v1629 = vpop.f32.mrf.mxu0
        %v1630 = vadd.f32 0.0, %v1629
        %1631 = vmatmul.f32.gmra.mxu0 %v1457
        %v1632 = vpop.f32.mrf.mxu0
        %v1633 = vadd.f32 0.0, %v1632
        %1634 = vmatmul.f32.gmra.mxu0 %v1458
        %v1635 = vpop.f32.mrf.mxu0
        %v1636 = vadd.f32 0.0, %v1635
        %1637 = vmatmul.f32.gmra.mxu0 %v1459
        %v1638 = vpop.f32.mrf.mxu0
        %v1639 = vadd.f32 0.0, %v1638
        %1640 = vmatmul.f32.gmra.mxu0 %v1460
        %v1641 = vpop.f32.mrf.mxu0
        %v1642 = vadd.f32 0.0, %v1641
        %1643 = vmatmul.f32.gmra.mxu0 %v1461
        %v1644 = vpop.f32.mrf.mxu0
        %v1645 = vadd.f32 0.0, %v1644
        %1646 = vmatmul.f32.gmra.mxu0 %v1462
        %v1647 = vpop.f32.mrf.mxu0
        %v1648 = vadd.f32 0.0, %v1647
        %1649 = vmatmul.f32.gmra.mxu0 %v1463
        %v1650 = vpop.f32.mrf.mxu0
        %v1651 = vadd.f32 0.0, %v1650
        %1652 = vmatmul.f32.gmra.mxu0 %v1464
        %v1653 = vpop.f32.mrf.mxu0
        %v1654 = vadd.f32 0.0, %v1653
        %1655 = vmatmul.f32.gmra.mxu0 %v1465
        %v1656 = vpop.f32.mrf.mxu0
        %v1657 = vadd.f32 0.0, %v1656
        %1658 = vmatmul.f32.gmra.mxu0 %v1466
        %v1659 = vpop.f32.mrf.mxu0
        %v1660 = vadd.f32 0.0, %v1659
        %1661 = vmatmul.f32.gmra.mxu0 %v1467
        %v1662 = vpop.f32.mrf.mxu0
        %v1663 = vadd.f32 0.0, %v1662
        %1664 = vmatmul.f32.gmra.mxu0 %v1468
        %v1665 = vpop.f32.mrf.mxu0
        %v1666 = vadd.f32 0.0, %v1665
        %1667 = vmatmul.f32.gmra.mxu0 %v1469
        %v1668 = vpop.f32.mrf.mxu0
        %v1669 = vadd.f32 0.0, %v1668
        %1670 = vmatmul.f32.gmra.mxu0 %v1470
        %v1671 = vpop.f32.mrf.mxu0
        %v1672 = vadd.f32 0.0, %v1671
        %1673 = vmatmul.f32.gmra.mxu0 %v1471
        %v1674 = vpop.f32.mrf.mxu0
        %v1675 = vadd.f32 0.0, %v1674
        %1676 = vmatmul.f32.gmra.mxu0 %v1472
        %v1677 = vpop.f32.mrf.mxu0
        %v1678 = vadd.f32 0.0, %v1677
        %1679 = vmatmul.f32.gmra.mxu0 %v1473
        %v1680 = vpop.f32.mrf.mxu0
        %v1681 = vadd.f32 0.0, %v1680
        %1682 = vmatmul.f32.gmra.mxu0 %v1474
        %v1683 = vpop.f32.mrf.mxu0
        %v1684 = vadd.f32 0.0, %v1683
        %1685 = vmatmul.f32.gmra.mxu0 %v1475
        %v1686 = vpop.f32.mrf.mxu0
        %v1687 = vadd.f32 0.0, %v1686
        %1688 = vmatmul.f32.gmra.mxu0 %v1476
        %v1689 = vpop.f32.mrf.mxu0
        %v1690 = vadd.f32 0.0, %v1689
        %1691 = vmatmul.f32.gmra.mxu0 %v1477
        %v1692 = vpop.f32.mrf.mxu0
        %v1693 = vadd.f32 0.0, %v1692
        %1694 = vmatmul.f32.gmra.mxu0 %v1478
        %v1695 = vpop.f32.mrf.mxu0
        %v1696 = vadd.f32 0.0, %v1695
        %1697 = vmatmul.f32.gmra.mxu0 %v1479
        %v1698 = vpop.f32.mrf.mxu0
        %v1699 = vadd.f32 0.0, %v1698
        %1700 = vmatmul.f32.gmra.mxu0 %v1480
        %v1701 = vpop.f32.mrf.mxu0
        %v1702 = vadd.f32 0.0, %v1701
        %1703 = vmatmul.f32.gmra.mxu0 %v1481
        %v1704 = vpop.f32.mrf.mxu0
        %v1705 = vadd.f32 0.0, %v1704
        %1706 = vmatmul.f32.gmra.mxu0 %v1482
        %v1707 = vpop.f32.mrf.mxu0
        %v1708 = vadd.f32 0.0, %v1707
        %1709 = vmatmul.f32.gmra.mxu0 %v1483
        %v1710 = vpop.f32.mrf.mxu0
        %v1711 = vadd.f32 0.0, %v1710
        %1712 = vmatmul.f32.gmra.mxu0 %v1484
        %v1713 = vpop.f32.mrf.mxu0
        %v1714 = vadd.f32 0.0, %v1713
        %1715 = vmatmul.f32.gmra.mxu0 %v1485
        %v1716 = vpop.f32.mrf.mxu0
        %v1717 = vadd.f32 0.0, %v1716
        %1718 = vmatmul.f32.gmra.mxu0 %v1486
        %v1719 = vpop.f32.mrf.mxu0
        %v1720 = vadd.f32 0.0, %v1719
        %1721 = vmatmul.f32.gmra.mxu0 %v1487
        %v1722 = vpop.f32.mrf.mxu0
        %v1723 = vadd.f32 0.0, %v1722
        %1724 = vmatmul.f32.gmra.mxu0 %v1488
        %v1725 = vpop.f32.mrf.mxu0
        %v1726 = vadd.f32 0.0, %v1725
        %1727 = vmatmul.f32.gmra.mxu0 %v1489
        %v1728 = vpop.f32.mrf.mxu0
        %v1729 = vadd.f32 0.0, %v1728
        %1730 = vdwg.mxu0
        %1731 = vmatpush.msra.mxu0 %v1521
        %1732 = vmatpush.msra.mxu0 %v1519
        %1733 = vmatpush.msra.mxu0 %v1517
        %1734 = vmatpush.msra.mxu0 %v1515
        %1735 = vmatpush.msra.mxu0 %v1513
        %1736 = vmatpush.msra.mxu0 %v1511
        %1737 = vmatpush.msra.mxu0 %v1509
        %1738 = vmatpush.msra.mxu0 %v1507
        %1739 = vmatpush.msra.mxu0 %v1505
        %1740 = vmatpush.msra.mxu0 %v1503
        %1741 = vmatpush.msra.mxu0 %v1501
        %1742 = vmatpush.msra.mxu0 %v1499
        %1743 = vmatpush.msra.mxu0 %v1497
        %1744 = vmatpush.msra.mxu0 %v1495
        %1745 = vmatpush.msra.mxu0 %v1493
        %1746 = vmatpush.msra.mxu0 %v1491
        %1747 = vmatmul.f32.gmra.mxu0 %v1426
        %v1748 = vpop.f32.mrf.mxu0
        %v1749 = vadd.f32 0.0, %v1748
        %1750 = vmatmul.f32.gmra.mxu0 %v1427
        %v1751 = vpop.f32.mrf.mxu0
        %v1752 = vadd.f32 0.0, %v1751
        %1753 = vmatmul.f32.gmra.mxu0 %v1428
        %v1754 = vpop.f32.mrf.mxu0
        %v1755 = vadd.f32 0.0, %v1754
        %1756 = vmatmul.f32.gmra.mxu0 %v1429
        %v1757 = vpop.f32.mrf.mxu0
        %v1758 = vadd.f32 0.0, %v1757
        %1759 = vmatmul.f32.gmra.mxu0 %v1430
        %v1760 = vpop.f32.mrf.mxu0
        %v1761 = vadd.f32 0.0, %v1760
        %1762 = vmatmul.f32.gmra.mxu0 %v1431
        %v1763 = vpop.f32.mrf.mxu0
        %v1764 = vadd.f32 0.0, %v1763
        %1765 = vmatmul.f32.gmra.mxu0 %v1432
        %v1766 = vpop.f32.mrf.mxu0
        %v1767 = vadd.f32 0.0, %v1766
        %1768 = vmatmul.f32.gmra.mxu0 %v1433
        %v1769 = vpop.f32.mrf.mxu0
        %v1770 = vadd.f32 0.0, %v1769
        %1771 = vmatmul.f32.gmra.mxu0 %v1434
        %v1772 = vpop.f32.mrf.mxu0
        %v1773 = vadd.f32 0.0, %v1772
        %1774 = vmatmul.f32.gmra.mxu0 %v1435
        %v1775 = vpop.f32.mrf.mxu0
        %v1776 = vadd.f32 0.0, %v1775
        %1777 = vmatmul.f32.gmra.mxu0 %v1436
        %v1778 = vpop.f32.mrf.mxu0
        %v1779 = vadd.f32 0.0, %v1778
        %1780 = vmatmul.f32.gmra.mxu0 %v1437
        %v1781 = vpop.f32.mrf.mxu0
        %v1782 = vadd.f32 0.0, %v1781
        %1783 = vmatmul.f32.gmra.mxu0 %v1438
        %v1784 = vpop.f32.mrf.mxu0
        %v1785 = vadd.f32 0.0, %v1784
        %1786 = vmatmul.f32.gmra.mxu0 %v1439
        %v1787 = vpop.f32.mrf.mxu0
        %v1788 = vadd.f32 0.0, %v1787
        %1789 = vmatmul.f32.gmra.mxu0 %v1440
        %v1790 = vpop.f32.mrf.mxu0
        %v1791 = vadd.f32 0.0, %v1790
        %1792 = vmatmul.f32.gmra.mxu0 %v1441
        %v1793 = vpop.f32.mrf.mxu0
        %v1794 = vadd.f32 0.0, %v1793
        %1795 = vmatmul.f32.gmra.mxu0 %v1442
        %v1796 = vpop.f32.mrf.mxu0
        %v1797 = vadd.f32 0.0, %v1796
        %1798 = vmatmul.f32.gmra.mxu0 %v1443
        %v1799 = vpop.f32.mrf.mxu0
        %v1800 = vadd.f32 0.0, %v1799
        %1801 = vmatmul.f32.gmra.mxu0 %v1444
        %v1802 = vpop.f32.mrf.mxu0
        %v1803 = vadd.f32 0.0, %v1802
        %1804 = vmatmul.f32.gmra.mxu0 %v1445
        %v1805 = vpop.f32.mrf.mxu0
        %v1806 = vadd.f32 0.0, %v1805
        %1807 = vmatmul.f32.gmra.mxu0 %v1446
        %v1808 = vpop.f32.mrf.mxu0
        %v1809 = vadd.f32 0.0, %v1808
        %1810 = vmatmul.f32.gmra.mxu0 %v1447
        %v1811 = vpop.f32.mrf.mxu0
        %v1812 = vadd.f32 0.0, %v1811
        %1813 = vmatmul.f32.gmra.mxu0 %v1448
        %v1814 = vpop.f32.mrf.mxu0
        %v1815 = vadd.f32 0.0, %v1814
        %1816 = vmatmul.f32.gmra.mxu0 %v1449
        %v1817 = vpop.f32.mrf.mxu0
        %v1818 = vadd.f32 0.0, %v1817
        %1819 = vmatmul.f32.gmra.mxu0 %v1450
        %v1820 = vpop.f32.mrf.mxu0
        %v1821 = vadd.f32 0.0, %v1820
        %1822 = vmatmul.f32.gmra.mxu0 %v1451
        %v1823 = vpop.f32.mrf.mxu0
        %v1824 = vadd.f32 0.0, %v1823
        %1825 = vmatmul.f32.gmra.mxu0 %v1452
        %v1826 = vpop.f32.mrf.mxu0
        %v1827 = vadd.f32 0.0, %v1826
        %1828 = vmatmul.f32.gmra.mxu0 %v1453
        %v1829 = vpop.f32.mrf.mxu0
        %v1830 = vadd.f32 0.0, %v1829
        %1831 = vmatmul.f32.gmra.mxu0 %v1454
        %v1832 = vpop.f32.mrf.mxu0
        %v1833 = vadd.f32 0.0, %v1832
        %1834 = vmatmul.f32.gmra.mxu0 %v1455
        %v1835 = vpop.f32.mrf.mxu0
        %v1836 = vadd.f32 0.0, %v1835
        %1837 = vmatmul.f32.gmra.mxu0 %v1456
        %v1838 = vpop.f32.mrf.mxu0
        %v1839 = vadd.f32 0.0, %v1838
        %1840 = vmatmul.f32.gmra.mxu0 %v1457
        %v1841 = vpop.f32.mrf.mxu0
        %v1842 = vadd.f32 0.0, %v1841
        %1843 = vmatmul.f32.gmra.mxu0 %v1458
        %v1844 = vpop.f32.mrf.mxu0
        %v1845 = vadd.f32 0.0, %v1844
        %1846 = vmatmul.f32.gmra.mxu0 %v1459
        %v1847 = vpop.f32.mrf.mxu0
        %v1848 = vadd.f32 0.0, %v1847
        %1849 = vmatmul.f32.gmra.mxu0 %v1460
        %v1850 = vpop.f32.mrf.mxu0
        %v1851 = vadd.f32 0.0, %v1850
        %1852 = vmatmul.f32.gmra.mxu0 %v1461
        %v1853 = vpop.f32.mrf.mxu0
        %v1854 = vadd.f32 0.0, %v1853
        %1855 = vmatmul.f32.gmra.mxu0 %v1462
        %v1856 = vpop.f32.mrf.mxu0
        %v1857 = vadd.f32 0.0, %v1856
        %1858 = vmatmul.f32.gmra.mxu0 %v1463
        %v1859 = vpop.f32.mrf.mxu0
        %v1860 = vadd.f32 0.0, %v1859
        %1861 = vmatmul.f32.gmra.mxu0 %v1464
        %v1862 = vpop.f32.mrf.mxu0
        %v1863 = vadd.f32 0.0, %v1862
        %1864 = vmatmul.f32.gmra.mxu0 %v1465
        %v1865 = vpop.f32.mrf.mxu0
        %v1866 = vadd.f32 0.0, %v1865
        %1867 = vmatmul.f32.gmra.mxu0 %v1466
        %v1868 = vpop.f32.mrf.mxu0
        %v1869 = vadd.f32 0.0, %v1868
        %1870 = vmatmul.f32.gmra.mxu0 %v1467
        %v1871 = vpop.f32.mrf.mxu0
        %v1872 = vadd.f32 0.0, %v1871
        %1873 = vmatmul.f32.gmra.mxu0 %v1468
        %v1874 = vpop.f32.mrf.mxu0
        %v1875 = vadd.f32 0.0, %v1874
        %1876 = vmatmul.f32.gmra.mxu0 %v1469
        %v1877 = vpop.f32.mrf.mxu0
        %v1878 = vadd.f32 0.0, %v1877
        %1879 = vmatmul.f32.gmra.mxu0 %v1470
        %v1880 = vpop.f32.mrf.mxu0
        %v1881 = vadd.f32 0.0, %v1880
        %1882 = vmatmul.f32.gmra.mxu0 %v1471
        %v1883 = vpop.f32.mrf.mxu0
        %v1884 = vadd.f32 0.0, %v1883
        %1885 = vmatmul.f32.gmra.mxu0 %v1472
        %v1886 = vpop.f32.mrf.mxu0
        %v1887 = vadd.f32 0.0, %v1886
        %1888 = vmatmul.f32.gmra.mxu0 %v1473
        %v1889 = vpop.f32.mrf.mxu0
        %v1890 = vadd.f32 0.0, %v1889
        %1891 = vmatmul.f32.gmra.mxu0 %v1474
        %v1892 = vpop.f32.mrf.mxu0
        %v1893 = vadd.f32 0.0, %v1892
        %1894 = vmatmul.f32.gmra.mxu0 %v1475
        %v1895 = vpop.f32.mrf.mxu0
        %v1896 = vadd.f32 0.0, %v1895
        %1897 = vmatmul.f32.gmra.mxu0 %v1476
        %v1898 = vpop.f32.mrf.mxu0
        %v1899 = vadd.f32 0.0, %v1898
        %1900 = vmatmul.f32.gmra.mxu0 %v1477
        %v1901 = vpop.f32.mrf.mxu0
        %v1902 = vadd.f32 0.0, %v1901
        %1903 = vmatmul.f32.gmra.mxu0 %v1478
        %v1904 = vpop.f32.mrf.mxu0
        %v1905 = vadd.f32 0.0, %v1904
        %1906 = vmatmul.f32.gmra.mxu0 %v1479
        %v1907 = vpop.f32.mrf.mxu0
        %v1908 = vadd.f32 0.0, %v1907
        %1909 = vmatmul.f32.gmra.mxu0 %v1480
        %v1910 = vpop.f32.mrf.mxu0
        %v1911 = vadd.f32 0.0, %v1910
        %1912 = vmatmul.f32.gmra.mxu0 %v1481
        %v1913 = vpop.f32.mrf.mxu0
        %v1914 = vadd.f32 0.0, %v1913
        %1915 = vmatmul.f32.gmra.mxu0 %v1482
        %v1916 = vpop.f32.mrf.mxu0
        %v1917 = vadd.f32 0.0, %v1916
        %1918 = vmatmul.f32.gmra.mxu0 %v1483
        %v1919 = vpop.f32.mrf.mxu0
        %v1920 = vadd.f32 0.0, %v1919
        %1921 = vmatmul.f32.gmra.mxu0 %v1484
        %v1922 = vpop.f32.mrf.mxu0
        %v1923 = vadd.f32 0.0, %v1922
        %1924 = vmatmul.f32.gmra.mxu0 %v1485
        %v1925 = vpop.f32.mrf.mxu0
        %v1926 = vadd.f32 0.0, %v1925
        %1927 = vmatmul.f32.gmra.mxu0 %v1486
        %v1928 = vpop.f32.mrf.mxu0
        %v1929 = vadd.f32 0.0, %v1928
        %1930 = vmatmul.f32.gmra.mxu0 %v1487
        %v1931 = vpop.f32.mrf.mxu0
        %v1932 = vadd.f32 0.0, %v1931
        %1933 = vmatmul.f32.gmra.mxu0 %v1488
        %v1934 = vpop.f32.mrf.mxu0
        %v1935 = vadd.f32 0.0, %v1934
        %1936 = vmatmul.f32.gmra.mxu0 %v1489
        %v1937 = vpop.f32.mrf.mxu0
        %v1938 = vadd.f32 0.0, %v1937
        %1939 = vdwg.mxu0
        %v1940 = vmax.f32 %v1540, %v1749
        %v1941 = vmax.f32 %v1543, %v1752
        %v1942 = vmax.f32 %v1546, %v1755
        %v1943 = vmax.f32 %v1549, %v1758
        %v1944 = vmax.f32 %v1552, %v1761
        %v1945 = vmax.f32 %v1555, %v1764
        %v1946 = vmax.f32 %v1558, %v1767
        %v1947 = vmax.f32 %v1561, %v1770
        %v1948 = vmax.f32 %v1564, %v1773
        %v1949 = vmax.f32 %v1567, %v1776
        %v1950 = vmax.f32 %v1570, %v1779
        %v1951 = vmax.f32 %v1573, %v1782
        %v1952 = vmax.f32 %v1576, %v1785
        %v1953 = vmax.f32 %v1579, %v1788
        %v1954 = vmax.f32 %v1582, %v1791
        %v1955 = vmax.f32 %v1585, %v1794
        %v1956 = vmax.f32 %v1588, %v1797
        %v1957 = vmax.f32 %v1591, %v1800
        %v1958 = vmax.f32 %v1594, %v1803
        %v1959 = vmax.f32 %v1597, %v1806
        %v1960 = vmax.f32 %v1600, %v1809
        %v1961 = vmax.f32 %v1603, %v1812
        %v1962 = vmax.f32 %v1606, %v1815
        %v1963 = vmax.f32 %v1609, %v1818
        %v1964 = vmax.f32 %v1612, %v1821
        %v1965 = vmax.f32 %v1615, %v1824
        %v1966 = vmax.f32 %v1618, %v1827
        %v1967 = vmax.f32 %v1621, %v1830
        %v1968 = vmax.f32 %v1624, %v1833
        %v1969 = vmax.f32 %v1627, %v1836
        %v1970 = vmax.f32 %v1630, %v1839
        %v1971 = vmax.f32 %v1633, %v1842
        %v1972 = vmax.f32 %v1636, %v1845
        %v1973 = vmax.f32 %v1639, %v1848
        %v1974 = vmax.f32 %v1642, %v1851
        %v1975 = vmax.f32 %v1645, %v1854
        %v1976 = vmax.f32 %v1648, %v1857
        %v1977 = vmax.f32 %v1651, %v1860
        %v1978 = vmax.f32 %v1654, %v1863
        %v1979 = vmax.f32 %v1657, %v1866
        %v1980 = vmax.f32 %v1660, %v1869
        %v1981 = vmax.f32 %v1663, %v1872
        %v1982 = vmax.f32 %v1666, %v1875
        %v1983 = vmax.f32 %v1669, %v1878
        %v1984 = vmax.f32 %v1672, %v1881
        %v1985 = vmax.f32 %v1675, %v1884
        %v1986 = vmax.f32 %v1678, %v1887
        %v1987 = vmax.f32 %v1681, %v1890
        %v1988 = vmax.f32 %v1684, %v1893
        %v1989 = vmax.f32 %v1687, %v1896
        %v1990 = vmax.f32 %v1690, %v1899
        %v1991 = vmax.f32 %v1693, %v1902
        %v1992 = vmax.f32 %v1696, %v1905
        %v1993 = vmax.f32 %v1699, %v1908
        %v1994 = vmax.f32 %v1702, %v1911
        %v1995 = vmax.f32 %v1705, %v1914
        %v1996 = vmax.f32 %v1708, %v1917
        %v1997 = vmax.f32 %v1711, %v1920
        %v1998 = vmax.f32 %v1714, %v1923
        %v1999 = vmax.f32 %v1717, %v1926
        %v2000 = vmax.f32 %v1720, %v1929
        %v2001 = vmax.f32 %v1723, %v1932
        %v2002 = vmax.f32 %v1726, %v1935
        %v2003 = vmax.f32 %v1729, %v1938
        %v2004 = vsub.f32 %v1540, %v1940
        %v2005 = vsub.f32 %v1543, %v1941
        %v2006 = vsub.f32 %v1546, %v1942
        %v2007 = vsub.f32 %v1549, %v1943
        %v2008 = vsub.f32 %v1552, %v1944
        %v2009 = vsub.f32 %v1555, %v1945
        %v2010 = vsub.f32 %v1558, %v1946
        %v2011 = vsub.f32 %v1561, %v1947
        %v2012 = vsub.f32 %v1564, %v1948
        %v2013 = vsub.f32 %v1567, %v1949
        %v2014 = vsub.f32 %v1570, %v1950
        %v2015 = vsub.f32 %v1573, %v1951
        %v2016 = vsub.f32 %v1576, %v1952
        %v2017 = vsub.f32 %v1579, %v1953
        %v2018 = vsub.f32 %v1582, %v1954
        %v2019 = vsub.f32 %v1585, %v1955
        %v2020 = vsub.f32 %v1588, %v1956
        %v2021 = vsub.f32 %v1591, %v1957
        %v2022 = vsub.f32 %v1594, %v1958
        %v2023 = vsub.f32 %v1597, %v1959
        %v2024 = vsub.f32 %v1600, %v1960
        %v2025 = vsub.f32 %v1603, %v1961
        %v2026 = vsub.f32 %v1606, %v1962
        %v2027 = vsub.f32 %v1609, %v1963
        %v2028 = vsub.f32 %v1612, %v1964
        %v2029 = vsub.f32 %v1615, %v1965
        %v2030 = vsub.f32 %v1618, %v1966
        %v2031 = vsub.f32 %v1621, %v1967
        %v2032 = vsub.f32 %v1624, %v1968
        %v2033 = vsub.f32 %v1627, %v1969
        %v2034 = vsub.f32 %v1630, %v1970
        %v2035 = vsub.f32 %v1633, %v1971
        %v2036 = vsub.f32 %v1636, %v1972
        %v2037 = vsub.f32 %v1639, %v1973
        %v2038 = vsub.f32 %v1642, %v1974
        %v2039 = vsub.f32 %v1645, %v1975
        %v2040 = vsub.f32 %v1648, %v1976
        %v2041 = vsub.f32 %v1651, %v1977
        %v2042 = vsub.f32 %v1654, %v1978
        %v2043 = vsub.f32 %v1657, %v1979
        %v2044 = vsub.f32 %v1660, %v1980
        %v2045 = vsub.f32 %v1663, %v1981
        %v2046 = vsub.f32 %v1666, %v1982
        %v2047 = vsub.f32 %v1669, %v1983
        %v2048 = vsub.f32 %v1672, %v1984
        %v2049 = vsub.f32 %v1675, %v1985
        %v2050 = vsub.f32 %v1678, %v1986
        %v2051 = vsub.f32 %v1681, %v1987
        %v2052 = vsub.f32 %v1684, %v1988
        %v2053 = vsub.f32 %v1687, %v1989
        %v2054 = vsub.f32 %v1690, %v1990
        %v2055 = vsub.f32 %v1693, %v1991
        %v2056 = vsub.f32 %v1696, %v1992
        %v2057 = vsub.f32 %v1699, %v1993
        %v2058 = vsub.f32 %v1702, %v1994
        %v2059 = vsub.f32 %v1705, %v1995
        %v2060 = vsub.f32 %v1708, %v1996
        %v2061 = vsub.f32 %v1711, %v1997
        %v2062 = vsub.f32 %v1714, %v1998
        %v2063 = vsub.f32 %v1717, %v1999
        %v2064 = vsub.f32 %v1720, %v2000
        %v2065 = vsub.f32 %v1723, %v2001
        %v2066 = vsub.f32 %v1726, %v2002
        %v2067 = vsub.f32 %v1729, %v2003
        %v2068 = vmul.f32 %v2004, 1.442695
        %v2069 = vpow.pop %v2068
        %v2070 = vmul.f32 %v2005, 1.442695
        %v2071 = vpow.pop %v2070
        %v2072 = vmul.f32 %v2006, 1.442695
        %v2073 = vpow.pop %v2072
        %v2074 = vmul.f32 %v2007, 1.442695
        %v2075 = vpow.pop %v2074
        %v2076 = vmul.f32 %v2008, 1.442695
        %v2077 = vpow.pop %v2076
        %v2078 = vmul.f32 %v2009, 1.442695
        %v2079 = vpow.pop %v2078
        %v2080 = vmul.f32 %v2010, 1.442695
        %v2081 = vpow.pop %v2080
        %v2082 = vmul.f32 %v2011, 1.442695
        %v2083 = vpow.pop %v2082
        %v2084 = vmul.f32 %v2012, 1.442695
        %v2085 = vpow.pop %v2084
        %v2086 = vmul.f32 %v2013, 1.442695
        %v2087 = vpow.pop %v2086
        %v2088 = vmul.f32 %v2014, 1.442695
        %v2089 = vpow.pop %v2088
        %v2090 = vmul.f32 %v2015, 1.442695
        %v2091 = vpow.pop %v2090
        %v2092 = vmul.f32 %v2016, 1.442695
        %v2093 = vpow.pop %v2092
        %v2094 = vmul.f32 %v2017, 1.442695
        %v2095 = vpow.pop %v2094
        %v2096 = vmul.f32 %v2018, 1.442695
        %v2097 = vpow.pop %v2096
        %v2098 = vmul.f32 %v2019, 1.442695
        %v2099 = vpow.pop %v2098
        %v2100 = vmul.f32 %v2020, 1.442695
        %v2101 = vpow.pop %v2100
        %v2102 = vmul.f32 %v2021, 1.442695
        %v2103 = vpow.pop %v2102
        %v2104 = vmul.f32 %v2022, 1.442695
        %v2105 = vpow.pop %v2104
        %v2106 = vmul.f32 %v2023, 1.442695
        %v2107 = vpow.pop %v2106
        %v2108 = vmul.f32 %v2024, 1.442695
        %v2109 = vpow.pop %v2108
        %v2110 = vmul.f32 %v2025, 1.442695
        %v2111 = vpow.pop %v2110
        %v2112 = vmul.f32 %v2026, 1.442695
        %v2113 = vpow.pop %v2112
        %v2114 = vmul.f32 %v2027, 1.442695
        %v2115 = vpow.pop %v2114
        %v2116 = vmul.f32 %v2028, 1.442695
        %v2117 = vpow.pop %v2116
        %v2118 = vmul.f32 %v2029, 1.442695
        %v2119 = vpow.pop %v2118
        %v2120 = vmul.f32 %v2030, 1.442695
        %v2121 = vpow.pop %v2120
        %v2122 = vmul.f32 %v2031, 1.442695
        %v2123 = vpow.pop %v2122
        %v2124 = vmul.f32 %v2032, 1.442695
        %v2125 = vpow.pop %v2124
        %v2126 = vmul.f32 %v2033, 1.442695
        %v2127 = vpow.pop %v2126
        %v2128 = vmul.f32 %v2034, 1.442695
        %v2129 = vpow.pop %v2128
        %v2130 = vmul.f32 %v2035, 1.442695
        %v2131 = vpow.pop %v2130
        %v2132 = vmul.f32 %v2036, 1.442695
        %v2133 = vpow.pop %v2132
        %v2134 = vmul.f32 %v2037, 1.442695
        %v2135 = vpow.pop %v2134
        %v2136 = vmul.f32 %v2038, 1.442695
        %v2137 = vpow.pop %v2136
        %v2138 = vmul.f32 %v2039, 1.442695
        %v2139 = vpow.pop %v2138
        %v2140 = vmul.f32 %v2040, 1.442695
        %v2141 = vpow.pop %v2140
        %v2142 = vmul.f32 %v2041, 1.442695
        %v2143 = vpow.pop %v2142
        %v2144 = vmul.f32 %v2042, 1.442695
        %v2145 = vpow.pop %v2144
        %v2146 = vmul.f32 %v2043, 1.442695
        %v2147 = vpow.pop %v2146
        %v2148 = vmul.f32 %v2044, 1.442695
        %v2149 = vpow.pop %v2148
        %v2150 = vmul.f32 %v2045, 1.442695
        %v2151 = vpow.pop %v2150
        %v2152 = vmul.f32 %v2046, 1.442695
        %v2153 = vpow.pop %v2152
        %v2154 = vmul.f32 %v2047, 1.442695
        %v2155 = vpow.pop %v2154
        %v2156 = vmul.f32 %v2048, 1.442695
        %v2157 = vpow.pop %v2156
        %v2158 = vmul.f32 %v2049, 1.442695
        %v2159 = vpow.pop %v2158
        %v2160 = vmul.f32 %v2050, 1.442695
        %v2161 = vpow.pop %v2160
        %v2162 = vmul.f32 %v2051, 1.442695
        %v2163 = vpow.pop %v2162
        %v2164 = vmul.f32 %v2052, 1.442695
        %v2165 = vpow.pop %v2164
        %v2166 = vmul.f32 %v2053, 1.442695
        %v2167 = vpow.pop %v2166
        %v2168 = vmul.f32 %v2054, 1.442695
        %v2169 = vpow.pop %v2168
        %v2170 = vmul.f32 %v2055, 1.442695
        %v2171 = vpow.pop %v2170
        %v2172 = vmul.f32 %v2056, 1.442695
        %v2173 = vpow.pop %v2172
        %v2174 = vmul.f32 %v2057, 1.442695
        %v2175 = vpow.pop %v2174
        %v2176 = vmul.f32 %v2058, 1.442695
        %v2177 = vpow.pop %v2176
        %v2178 = vmul.f32 %v2059, 1.442695
        %v2179 = vpow.pop %v2178
        %v2180 = vmul.f32 %v2060, 1.442695
        %v2181 = vpow.pop %v2180
        %v2182 = vmul.f32 %v2061, 1.442695
        %v2183 = vpow.pop %v2182
        %v2184 = vmul.f32 %v2062, 1.442695
        %v2185 = vpow.pop %v2184
        %v2186 = vmul.f32 %v2063, 1.442695
        %v2187 = vpow.pop %v2186
        %v2188 = vmul.f32 %v2064, 1.442695
        %v2189 = vpow.pop %v2188
        %v2190 = vmul.f32 %v2065, 1.442695
        %v2191 = vpow.pop %v2190
        %v2192 = vmul.f32 %v2066, 1.442695
        %v2193 = vpow.pop %v2192
        %v2194 = vmul.f32 %v2067, 1.442695
        %v2195 = vpow.pop %v2194
        %v2196 = vsub.f32 %v1749, %v1940
        %v2197 = vsub.f32 %v1752, %v1941
        %v2198 = vsub.f32 %v1755, %v1942
        %v2199 = vsub.f32 %v1758, %v1943
        %v2200 = vsub.f32 %v1761, %v1944
        %v2201 = vsub.f32 %v1764, %v1945
        %v2202 = vsub.f32 %v1767, %v1946
        %v2203 = vsub.f32 %v1770, %v1947
        %v2204 = vsub.f32 %v1773, %v1948
        %v2205 = vsub.f32 %v1776, %v1949
        %v2206 = vsub.f32 %v1779, %v1950
        %v2207 = vsub.f32 %v1782, %v1951
        %v2208 = vsub.f32 %v1785, %v1952
        %v2209 = vsub.f32 %v1788, %v1953
        %v2210 = vsub.f32 %v1791, %v1954
        %v2211 = vsub.f32 %v1794, %v1955
        %v2212 = vsub.f32 %v1797, %v1956
        %v2213 = vsub.f32 %v1800, %v1957
        %v2214 = vsub.f32 %v1803, %v1958
        %v2215 = vsub.f32 %v1806, %v1959
        %v2216 = vsub.f32 %v1809, %v1960
        %v2217 = vsub.f32 %v1812, %v1961
        %v2218 = vsub.f32 %v1815, %v1962
        %v2219 = vsub.f32 %v1818, %v1963
        %v2220 = vsub.f32 %v1821, %v1964
        %v2221 = vsub.f32 %v1824, %v1965
        %v2222 = vsub.f32 %v1827, %v1966
        %v2223 = vsub.f32 %v1830, %v1967
        %v2224 = vsub.f32 %v1833, %v1968
        %v2225 = vsub.f32 %v1836, %v1969
        %v2226 = vsub.f32 %v1839, %v1970
        %v2227 = vsub.f32 %v1842, %v1971
        %v2228 = vsub.f32 %v1845, %v1972
        %v2229 = vsub.f32 %v1848, %v1973
        %v2230 = vsub.f32 %v1851, %v1974
        %v2231 = vsub.f32 %v1854, %v1975
        %v2232 = vsub.f32 %v1857, %v1976
        %v2233 = vsub.f32 %v1860, %v1977
        %v2234 = vsub.f32 %v1863, %v1978
        %v2235 = vsub.f32 %v1866, %v1979
        %v2236 = vsub.f32 %v1869, %v1980
        %v2237 = vsub.f32 %v1872, %v1981
        %v2238 = vsub.f32 %v1875, %v1982
        %v2239 = vsub.f32 %v1878, %v1983
        %v2240 = vsub.f32 %v1881, %v1984
        %v2241 = vsub.f32 %v1884, %v1985
        %v2242 = vsub.f32 %v1887, %v1986
        %v2243 = vsub.f32 %v1890, %v1987
        %v2244 = vsub.f32 %v1893, %v1988
        %v2245 = vsub.f32 %v1896, %v1989
        %v2246 = vsub.f32 %v1899, %v1990
        %v2247 = vsub.f32 %v1902, %v1991
        %v2248 = vsub.f32 %v1905, %v1992
        %v2249 = vsub.f32 %v1908, %v1993
        %v2250 = vsub.f32 %v1911, %v1994
        %v2251 = vsub.f32 %v1914, %v1995
        %v2252 = vsub.f32 %v1917, %v1996
        %v2253 = vsub.f32 %v1920, %v1997
        %v2254 = vsub.f32 %v1923, %v1998
        %v2255 = vsub.f32 %v1926, %v1999
        %v2256 = vsub.f32 %v1929, %v2000
        %v2257 = vsub.f32 %v1932, %v2001
        %v2258 = vsub.f32 %v1935, %v2002
        %v2259 = vsub.f32 %v1938, %v2003
        %v2260 = vmul.f32 %v2196, 1.442695
        %v2261 = vpow.pop %v2260
        %v2262 = vmul.f32 %v2197, 1.442695
        %v2263 = vpow.pop %v2262
        %v2264 = vmul.f32 %v2198, 1.442695
        %v2265 = vpow.pop %v2264
        %v2266 = vmul.f32 %v2199, 1.442695
        %v2267 = vpow.pop %v2266
        %v2268 = vmul.f32 %v2200, 1.442695
        %v2269 = vpow.pop %v2268
        %v2270 = vmul.f32 %v2201, 1.442695
        %v2271 = vpow.pop %v2270
        %v2272 = vmul.f32 %v2202, 1.442695
        %v2273 = vpow.pop %v2272
        %v2274 = vmul.f32 %v2203, 1.442695
        %v2275 = vpow.pop %v2274
        %v2276 = vmul.f32 %v2204, 1.442695
        %v2277 = vpow.pop %v2276
        %v2278 = vmul.f32 %v2205, 1.442695
        %v2279 = vpow.pop %v2278
        %v2280 = vmul.f32 %v2206, 1.442695
        %v2281 = vpow.pop %v2280
        %v2282 = vmul.f32 %v2207, 1.442695
        %v2283 = vpow.pop %v2282
        %v2284 = vmul.f32 %v2208, 1.442695
        %v2285 = vpow.pop %v2284
        %v2286 = vmul.f32 %v2209, 1.442695
        %v2287 = vpow.pop %v2286
        %v2288 = vmul.f32 %v2210, 1.442695
        %v2289 = vpow.pop %v2288
        %v2290 = vmul.f32 %v2211, 1.442695
        %v2291 = vpow.pop %v2290
        %v2292 = vmul.f32 %v2212, 1.442695
        %v2293 = vpow.pop %v2292
        %v2294 = vmul.f32 %v2213, 1.442695
        %v2295 = vpow.pop %v2294
        %v2296 = vmul.f32 %v2214, 1.442695
        %v2297 = vpow.pop %v2296
        %v2298 = vmul.f32 %v2215, 1.442695
        %v2299 = vpow.pop %v2298
        %v2300 = vmul.f32 %v2216, 1.442695
        %v2301 = vpow.pop %v2300
        %v2302 = vmul.f32 %v2217, 1.442695
        %v2303 = vpow.pop %v2302
        %v2304 = vmul.f32 %v2218, 1.442695
        %v2305 = vpow.pop %v2304
        %v2306 = vmul.f32 %v2219, 1.442695
        %v2307 = vpow.pop %v2306
        %v2308 = vmul.f32 %v2220, 1.442695
        %v2309 = vpow.pop %v2308
        %v2310 = vmul.f32 %v2221, 1.442695
        %v2311 = vpow.pop %v2310
        %v2312 = vmul.f32 %v2222, 1.442695
        %v2313 = vpow.pop %v2312
        %v2314 = vmul.f32 %v2223, 1.442695
        %v2315 = vpow.pop %v2314
        %v2316 = vmul.f32 %v2224, 1.442695
        %v2317 = vpow.pop %v2316
        %v2318 = vmul.f32 %v2225, 1.442695
        %v2319 = vpow.pop %v2318
        %v2320 = vmul.f32 %v2226, 1.442695
        %v2321 = vpow.pop %v2320
        %v2322 = vmul.f32 %v2227, 1.442695
        %v2323 = vpow.pop %v2322
        %v2324 = vmul.f32 %v2228, 1.442695
        %v2325 = vpow.pop %v2324
        %v2326 = vmul.f32 %v2229, 1.442695
        %v2327 = vpow.pop %v2326
        %v2328 = vmul.f32 %v2230, 1.442695
        %v2329 = vpow.pop %v2328
        %v2330 = vmul.f32 %v2231, 1.442695
        %v2331 = vpow.pop %v2330
        %v2332 = vmul.f32 %v2232, 1.442695
        %v2333 = vpow.pop %v2332
        %v2334 = vmul.f32 %v2233, 1.442695
        %v2335 = vpow.pop %v2334
        %v2336 = vmul.f32 %v2234, 1.442695
        %v2337 = vpow.pop %v2336
        %v2338 = vmul.f32 %v2235, 1.442695
        %v2339 = vpow.pop %v2338
        %v2340 = vmul.f32 %v2236, 1.442695
        %v2341 = vpow.pop %v2340
        %v2342 = vmul.f32 %v2237, 1.442695
        %v2343 = vpow.pop %v2342
        %v2344 = vmul.f32 %v2238, 1.442695
        %v2345 = vpow.pop %v2344
        %v2346 = vmul.f32 %v2239, 1.442695
        %v2347 = vpow.pop %v2346
        %v2348 = vmul.f32 %v2240, 1.442695
        %v2349 = vpow.pop %v2348
        %v2350 = vmul.f32 %v2241, 1.442695
        %v2351 = vpow.pop %v2350
        %v2352 = vmul.f32 %v2242, 1.442695
        %v2353 = vpow.pop %v2352
        %v2354 = vmul.f32 %v2243, 1.442695
        %v2355 = vpow.pop %v2354
        %v2356 = vmul.f32 %v2244, 1.442695
        %v2357 = vpow.pop %v2356
        %v2358 = vmul.f32 %v2245, 1.442695
        %v2359 = vpow.pop %v2358
        %v2360 = vmul.f32 %v2246, 1.442695
        %v2361 = vpow.pop %v2360
        %v2362 = vmul.f32 %v2247, 1.442695
        %v2363 = vpow.pop %v2362
        %v2364 = vmul.f32 %v2248, 1.442695
        %v2365 = vpow.pop %v2364
        %v2366 = vmul.f32 %v2249, 1.442695
        %v2367 = vpow.pop %v2366
        %v2368 = vmul.f32 %v2250, 1.442695
        %v2369 = vpow.pop %v2368
        %v2370 = vmul.f32 %v2251, 1.442695
        %v2371 = vpow.pop %v2370
        %v2372 = vmul.f32 %v2252, 1.442695
        %v2373 = vpow.pop %v2372
        %v2374 = vmul.f32 %v2253, 1.442695
        %v2375 = vpow.pop %v2374
        %v2376 = vmul.f32 %v2254, 1.442695
        %v2377 = vpow.pop %v2376
        %v2378 = vmul.f32 %v2255, 1.442695
        %v2379 = vpow.pop %v2378
        %v2380 = vmul.f32 %v2256, 1.442695
        %v2381 = vpow.pop %v2380
        %v2382 = vmul.f32 %v2257, 1.442695
        %v2383 = vpow.pop %v2382
        %v2384 = vmul.f32 %v2258, 1.442695
        %v2385 = vpow.pop %v2384
        %v2386 = vmul.f32 %v2259, 1.442695
        %v2387 = vpow.pop %v2386
        %v2388 = vadd.f32 %v2069, %v2261
        %v2389 = vadd.f32 %v2071, %v2263
        %v2390 = vadd.f32 %v2073, %v2265
        %v2391 = vadd.f32 %v2075, %v2267
        %v2392 = vadd.f32 %v2077, %v2269
        %v2393 = vadd.f32 %v2079, %v2271
        %v2394 = vadd.f32 %v2081, %v2273
        %v2395 = vadd.f32 %v2083, %v2275
        %v2396 = vadd.f32 %v2085, %v2277
        %v2397 = vadd.f32 %v2087, %v2279
        %v2398 = vadd.f32 %v2089, %v2281
        %v2399 = vadd.f32 %v2091, %v2283
        %v2400 = vadd.f32 %v2093, %v2285
        %v2401 = vadd.f32 %v2095, %v2287
        %v2402 = vadd.f32 %v2097, %v2289
        %v2403 = vadd.f32 %v2099, %v2291
        %v2404 = vadd.f32 %v2101, %v2293
        %v2405 = vadd.f32 %v2103, %v2295
        %v2406 = vadd.f32 %v2105, %v2297
        %v2407 = vadd.f32 %v2107, %v2299
        %v2408 = vadd.f32 %v2109, %v2301
        %v2409 = vadd.f32 %v2111, %v2303
        %v2410 = vadd.f32 %v2113, %v2305
        %v2411 = vadd.f32 %v2115, %v2307
        %v2412 = vadd.f32 %v2117, %v2309
        %v2413 = vadd.f32 %v2119, %v2311
        %v2414 = vadd.f32 %v2121, %v2313
        %v2415 = vadd.f32 %v2123, %v2315
        %v2416 = vadd.f32 %v2125, %v2317
        %v2417 = vadd.f32 %v2127, %v2319
        %v2418 = vadd.f32 %v2129, %v2321
        %v2419 = vadd.f32 %v2131, %v2323
        %v2420 = vadd.f32 %v2133, %v2325
        %v2421 = vadd.f32 %v2135, %v2327
        %v2422 = vadd.f32 %v2137, %v2329
        %v2423 = vadd.f32 %v2139, %v2331
        %v2424 = vadd.f32 %v2141, %v2333
        %v2425 = vadd.f32 %v2143, %v2335
        %v2426 = vadd.f32 %v2145, %v2337
        %v2427 = vadd.f32 %v2147, %v2339
        %v2428 = vadd.f32 %v2149, %v2341
        %v2429 = vadd.f32 %v2151, %v2343
        %v2430 = vadd.f32 %v2153, %v2345
        %v2431 = vadd.f32 %v2155, %v2347
        %v2432 = vadd.f32 %v2157, %v2349
        %v2433 = vadd.f32 %v2159, %v2351
        %v2434 = vadd.f32 %v2161, %v2353
        %v2435 = vadd.f32 %v2163, %v2355
        %v2436 = vadd.f32 %v2165, %v2357
        %v2437 = vadd.f32 %v2167, %v2359
        %v2438 = vadd.f32 %v2169, %v2361
        %v2439 = vadd.f32 %v2171, %v2363
        %v2440 = vadd.f32 %v2173, %v2365
        %v2441 = vadd.f32 %v2175, %v2367
        %v2442 = vadd.f32 %v2177, %v2369
        %v2443 = vadd.f32 %v2179, %v2371
        %v2444 = vadd.f32 %v2181, %v2373
        %v2445 = vadd.f32 %v2183, %v2375
        %v2446 = vadd.f32 %v2185, %v2377
        %v2447 = vadd.f32 %v2187, %v2379
        %v2448 = vadd.f32 %v2189, %v2381
        %v2449 = vadd.f32 %v2191, %v2383
        %v2450 = vadd.f32 %v2193, %v2385
        %v2451 = vadd.f32 %v2195, %v2387
        %v2452 = vrcp.pop %v2388
        %v2453 = vmul.f32 %v2388, %v2452
        %v2454 = vsub.f32 1.0, %v2453
        %v2455 = vmul.f32 %v2452, %v2454
        %v2456 = vadd.f32 %v2452, %v2455
        %vm2457 = vweird.f32 %v2388
        %vm2458 = vweird.f32 %v2452
        %vm2459 = vmor %vm2457, %vm2458
        %v2460 = vsel %vm2459, %v2452, %v2456
        %v2461 = vand.u32 2147483647, %v2388
        %vm2462 = vcmp.eq.f32.partialorder %v2461, 8.507059e+37
        %v2463 = vand.u32 %v2388, 2147483648
        %v2464 = vor.u32 1.1754944e-38, %v2463
        %v2465 = vsel %vm2462, %v2464, %v2460
        %v2466 = vmul.f32 %v2069, %v2465
        %v2467 = vrcp.pop %v2389
        %v2468 = vmul.f32 %v2389, %v2467
        %v2469 = vsub.f32 1.0, %v2468
        %v2470 = vmul.f32 %v2467, %v2469
        %v2471 = vadd.f32 %v2467, %v2470
        %vm2472 = vweird.f32 %v2389
        %vm2473 = vweird.f32 %v2467
        %vm2474 = vmor %vm2472, %vm2473
        %v2475 = vsel %vm2474, %v2467, %v2471
        %v2476 = vand.u32 2147483647, %v2389
        %vm2477 = vcmp.eq.f32.partialorder %v2476, 8.507059e+37
        %v2478 = vand.u32 %v2389, 2147483648
        %v2479 = vor.u32 1.1754944e-38, %v2478
        %v2480 = vsel %vm2477, %v2479, %v2475
        %v2481 = vmul.f32 %v2071, %v2480
        %v2482 = vrcp.pop %v2390
        %v2483 = vmul.f32 %v2390, %v2482
        %v2484 = vsub.f32 1.0, %v2483
        %v2485 = vmul.f32 %v2482, %v2484
        %v2486 = vadd.f32 %v2482, %v2485
        %vm2487 = vweird.f32 %v2390
        %vm2488 = vweird.f32 %v2482
        %vm2489 = vmor %vm2487, %vm2488
        %v2490 = vsel %vm2489, %v2482, %v2486
        %v2491 = vand.u32 2147483647, %v2390
        %vm2492 = vcmp.eq.f32.partialorder %v2491, 8.507059e+37
        %v2493 = vand.u32 %v2390, 2147483648
        %v2494 = vor.u32 1.1754944e-38, %v2493
        %v2495 = vsel %vm2492, %v2494, %v2490
        %v2496 = vmul.f32 %v2073, %v2495
        %v2497 = vrcp.pop %v2391
        %v2498 = vmul.f32 %v2391, %v2497
        %v2499 = vsub.f32 1.0, %v2498
        %v2500 = vmul.f32 %v2497, %v2499
        %v2501 = vadd.f32 %v2497, %v2500
        %vm2502 = vweird.f32 %v2391
        %vm2503 = vweird.f32 %v2497
        %vm2504 = vmor %vm2502, %vm2503
        %v2505 = vsel %vm2504, %v2497, %v2501
        %v2506 = vand.u32 2147483647, %v2391
        %vm2507 = vcmp.eq.f32.partialorder %v2506, 8.507059e+37
        %v2508 = vand.u32 %v2391, 2147483648
        %v2509 = vor.u32 1.1754944e-38, %v2508
        %v2510 = vsel %vm2507, %v2509, %v2505
        %v2511 = vmul.f32 %v2075, %v2510
        %v2512 = vrcp.pop %v2392
        %v2513 = vmul.f32 %v2392, %v2512
        %v2514 = vsub.f32 1.0, %v2513
        %v2515 = vmul.f32 %v2512, %v2514
        %v2516 = vadd.f32 %v2512, %v2515
        %vm2517 = vweird.f32 %v2392
        %vm2518 = vweird.f32 %v2512
        %vm2519 = vmor %vm2517, %vm2518
        %v2520 = vsel %vm2519, %v2512, %v2516
        %v2521 = vand.u32 2147483647, %v2392
        %vm2522 = vcmp.eq.f32.partialorder %v2521, 8.507059e+37
        %v2523 = vand.u32 %v2392, 2147483648
        %v2524 = vor.u32 1.1754944e-38, %v2523
        %v2525 = vsel %vm2522, %v2524, %v2520
        %v2526 = vmul.f32 %v2077, %v2525
        %v2527 = vrcp.pop %v2393
        %v2528 = vmul.f32 %v2393, %v2527
        %v2529 = vsub.f32 1.0, %v2528
        %v2530 = vmul.f32 %v2527, %v2529
        %v2531 = vadd.f32 %v2527, %v2530
        %vm2532 = vweird.f32 %v2393
        %vm2533 = vweird.f32 %v2527
        %vm2534 = vmor %vm2532, %vm2533
        %v2535 = vsel %vm2534, %v2527, %v2531
        %v2536 = vand.u32 2147483647, %v2393
        %vm2537 = vcmp.eq.f32.partialorder %v2536, 8.507059e+37
        %v2538 = vand.u32 %v2393, 2147483648
        %v2539 = vor.u32 1.1754944e-38, %v2538
        %v2540 = vsel %vm2537, %v2539, %v2535
        %v2541 = vmul.f32 %v2079, %v2540
        %v2542 = vrcp.pop %v2394
        %v2543 = vmul.f32 %v2394, %v2542
        %v2544 = vsub.f32 1.0, %v2543
        %v2545 = vmul.f32 %v2542, %v2544
        %v2546 = vadd.f32 %v2542, %v2545
        %vm2547 = vweird.f32 %v2394
        %vm2548 = vweird.f32 %v2542
        %vm2549 = vmor %vm2547, %vm2548
        %v2550 = vsel %vm2549, %v2542, %v2546
        %v2551 = vand.u32 2147483647, %v2394
        %vm2552 = vcmp.eq.f32.partialorder %v2551, 8.507059e+37
        %v2553 = vand.u32 %v2394, 2147483648
        %v2554 = vor.u32 1.1754944e-38, %v2553
        %v2555 = vsel %vm2552, %v2554, %v2550
        %v2556 = vmul.f32 %v2081, %v2555
        %v2557 = vrcp.pop %v2395
        %v2558 = vmul.f32 %v2395, %v2557
        %v2559 = vsub.f32 1.0, %v2558
        %v2560 = vmul.f32 %v2557, %v2559
        %v2561 = vadd.f32 %v2557, %v2560
        %vm2562 = vweird.f32 %v2395
        %vm2563 = vweird.f32 %v2557
        %vm2564 = vmor %vm2562, %vm2563
        %v2565 = vsel %vm2564, %v2557, %v2561
        %v2566 = vand.u32 2147483647, %v2395
        %vm2567 = vcmp.eq.f32.partialorder %v2566, 8.507059e+37
        %v2568 = vand.u32 %v2395, 2147483648
        %v2569 = vor.u32 1.1754944e-38, %v2568
        %v2570 = vsel %vm2567, %v2569, %v2565
        %v2571 = vmul.f32 %v2083, %v2570
        %v2572 = vrcp.pop %v2396
        %v2573 = vmul.f32 %v2396, %v2572
        %v2574 = vsub.f32 1.0, %v2573
        %v2575 = vmul.f32 %v2572, %v2574
        %v2576 = vadd.f32 %v2572, %v2575
        %vm2577 = vweird.f32 %v2396
        %vm2578 = vweird.f32 %v2572
        %vm2579 = vmor %vm2577, %vm2578
        %v2580 = vsel %vm2579, %v2572, %v2576
        %v2581 = vand.u32 2147483647, %v2396
        %vm2582 = vcmp.eq.f32.partialorder %v2581, 8.507059e+37
        %v2583 = vand.u32 %v2396, 2147483648
        %v2584 = vor.u32 1.1754944e-38, %v2583
        %v2585 = vsel %vm2582, %v2584, %v2580
        %v2586 = vmul.f32 %v2085, %v2585
        %v2587 = vrcp.pop %v2397
        %v2588 = vmul.f32 %v2397, %v2587
        %v2589 = vsub.f32 1.0, %v2588
        %v2590 = vmul.f32 %v2587, %v2589
        %v2591 = vadd.f32 %v2587, %v2590
        %vm2592 = vweird.f32 %v2397
        %vm2593 = vweird.f32 %v2587
        %vm2594 = vmor %vm2592, %vm2593
        %v2595 = vsel %vm2594, %v2587, %v2591
        %v2596 = vand.u32 2147483647, %v2397
        %vm2597 = vcmp.eq.f32.partialorder %v2596, 8.507059e+37
        %v2598 = vand.u32 %v2397, 2147483648
        %v2599 = vor.u32 1.1754944e-38, %v2598
        %v2600 = vsel %vm2597, %v2599, %v2595
        %v2601 = vmul.f32 %v2087, %v2600
        %v2602 = vrcp.pop %v2398
        %v2603 = vmul.f32 %v2398, %v2602
        %v2604 = vsub.f32 1.0, %v2603
        %v2605 = vmul.f32 %v2602, %v2604
        %v2606 = vadd.f32 %v2602, %v2605
        %vm2607 = vweird.f32 %v2398
        %vm2608 = vweird.f32 %v2602
        %vm2609 = vmor %vm2607, %vm2608
        %v2610 = vsel %vm2609, %v2602, %v2606
        %v2611 = vand.u32 2147483647, %v2398
        %vm2612 = vcmp.eq.f32.partialorder %v2611, 8.507059e+37
        %v2613 = vand.u32 %v2398, 2147483648
        %v2614 = vor.u32 1.1754944e-38, %v2613
        %v2615 = vsel %vm2612, %v2614, %v2610
        %v2616 = vmul.f32 %v2089, %v2615
        %v2617 = vrcp.pop %v2399
        %v2618 = vmul.f32 %v2399, %v2617
        %v2619 = vsub.f32 1.0, %v2618
        %v2620 = vmul.f32 %v2617, %v2619
        %v2621 = vadd.f32 %v2617, %v2620
        %vm2622 = vweird.f32 %v2399
        %vm2623 = vweird.f32 %v2617
        %vm2624 = vmor %vm2622, %vm2623
        %v2625 = vsel %vm2624, %v2617, %v2621
        %v2626 = vand.u32 2147483647, %v2399
        %vm2627 = vcmp.eq.f32.partialorder %v2626, 8.507059e+37
        %v2628 = vand.u32 %v2399, 2147483648
        %v2629 = vor.u32 1.1754944e-38, %v2628
        %v2630 = vsel %vm2627, %v2629, %v2625
        %v2631 = vmul.f32 %v2091, %v2630
        %v2632 = vrcp.pop %v2400
        %v2633 = vmul.f32 %v2400, %v2632
        %v2634 = vsub.f32 1.0, %v2633
        %v2635 = vmul.f32 %v2632, %v2634
        %v2636 = vadd.f32 %v2632, %v2635
        %vm2637 = vweird.f32 %v2400
        %vm2638 = vweird.f32 %v2632
        %vm2639 = vmor %vm2637, %vm2638
        %v2640 = vsel %vm2639, %v2632, %v2636
        %v2641 = vand.u32 2147483647, %v2400
        %vm2642 = vcmp.eq.f32.partialorder %v2641, 8.507059e+37
        %v2643 = vand.u32 %v2400, 2147483648
        %v2644 = vor.u32 1.1754944e-38, %v2643
        %v2645 = vsel %vm2642, %v2644, %v2640
        %v2646 = vmul.f32 %v2093, %v2645
        %v2647 = vrcp.pop %v2401
        %v2648 = vmul.f32 %v2401, %v2647
        %v2649 = vsub.f32 1.0, %v2648
        %v2650 = vmul.f32 %v2647, %v2649
        %v2651 = vadd.f32 %v2647, %v2650
        %vm2652 = vweird.f32 %v2401
        %vm2653 = vweird.f32 %v2647
        %vm2654 = vmor %vm2652, %vm2653
        %v2655 = vsel %vm2654, %v2647, %v2651
        %v2656 = vand.u32 2147483647, %v2401
        %vm2657 = vcmp.eq.f32.partialorder %v2656, 8.507059e+37
        %v2658 = vand.u32 %v2401, 2147483648
        %v2659 = vor.u32 1.1754944e-38, %v2658
        %v2660 = vsel %vm2657, %v2659, %v2655
        %v2661 = vmul.f32 %v2095, %v2660
        %v2662 = vrcp.pop %v2402
        %v2663 = vmul.f32 %v2402, %v2662
        %v2664 = vsub.f32 1.0, %v2663
        %v2665 = vmul.f32 %v2662, %v2664
        %v2666 = vadd.f32 %v2662, %v2665
        %vm2667 = vweird.f32 %v2402
        %vm2668 = vweird.f32 %v2662
        %vm2669 = vmor %vm2667, %vm2668
        %v2670 = vsel %vm2669, %v2662, %v2666
        %v2671 = vand.u32 2147483647, %v2402
        %vm2672 = vcmp.eq.f32.partialorder %v2671, 8.507059e+37
        %v2673 = vand.u32 %v2402, 2147483648
        %v2674 = vor.u32 1.1754944e-38, %v2673
        %v2675 = vsel %vm2672, %v2674, %v2670
        %v2676 = vmul.f32 %v2097, %v2675
        %v2677 = vrcp.pop %v2403
        %v2678 = vmul.f32 %v2403, %v2677
        %v2679 = vsub.f32 1.0, %v2678
        %v2680 = vmul.f32 %v2677, %v2679
        %v2681 = vadd.f32 %v2677, %v2680
        %vm2682 = vweird.f32 %v2403
        %vm2683 = vweird.f32 %v2677
        %vm2684 = vmor %vm2682, %vm2683
        %v2685 = vsel %vm2684, %v2677, %v2681
        %v2686 = vand.u32 2147483647, %v2403
        %vm2687 = vcmp.eq.f32.partialorder %v2686, 8.507059e+37
        %v2688 = vand.u32 %v2403, 2147483648
        %v2689 = vor.u32 1.1754944e-38, %v2688
        %v2690 = vsel %vm2687, %v2689, %v2685
        %v2691 = vmul.f32 %v2099, %v2690
        %v2692 = vrcp.pop %v2404
        %v2693 = vmul.f32 %v2404, %v2692
        %v2694 = vsub.f32 1.0, %v2693
        %v2695 = vmul.f32 %v2692, %v2694
        %v2696 = vadd.f32 %v2692, %v2695
        %vm2697 = vweird.f32 %v2404
        %vm2698 = vweird.f32 %v2692
        %vm2699 = vmor %vm2697, %vm2698
        %v2700 = vsel %vm2699, %v2692, %v2696
        %v2701 = vand.u32 2147483647, %v2404
        %vm2702 = vcmp.eq.f32.partialorder %v2701, 8.507059e+37
        %v2703 = vand.u32 %v2404, 2147483648
        %v2704 = vor.u32 1.1754944e-38, %v2703
        %v2705 = vsel %vm2702, %v2704, %v2700
        %v2706 = vmul.f32 %v2101, %v2705
        %v2707 = vrcp.pop %v2405
        %v2708 = vmul.f32 %v2405, %v2707
        %v2709 = vsub.f32 1.0, %v2708
        %v2710 = vmul.f32 %v2707, %v2709
        %v2711 = vadd.f32 %v2707, %v2710
        %vm2712 = vweird.f32 %v2405
        %vm2713 = vweird.f32 %v2707
        %vm2714 = vmor %vm2712, %vm2713
        %v2715 = vsel %vm2714, %v2707, %v2711
        %v2716 = vand.u32 2147483647, %v2405
        %vm2717 = vcmp.eq.f32.partialorder %v2716, 8.507059e+37
        %v2718 = vand.u32 %v2405, 2147483648
        %v2719 = vor.u32 1.1754944e-38, %v2718
        %v2720 = vsel %vm2717, %v2719, %v2715
        %v2721 = vmul.f32 %v2103, %v2720
        %v2722 = vrcp.pop %v2406
        %v2723 = vmul.f32 %v2406, %v2722
        %v2724 = vsub.f32 1.0, %v2723
        %v2725 = vmul.f32 %v2722, %v2724
        %v2726 = vadd.f32 %v2722, %v2725
        %vm2727 = vweird.f32 %v2406
        %vm2728 = vweird.f32 %v2722
        %vm2729 = vmor %vm2727, %vm2728
        %v2730 = vsel %vm2729, %v2722, %v2726
        %v2731 = vand.u32 2147483647, %v2406
        %vm2732 = vcmp.eq.f32.partialorder %v2731, 8.507059e+37
        %v2733 = vand.u32 %v2406, 2147483648
        %v2734 = vor.u32 1.1754944e-38, %v2733
        %v2735 = vsel %vm2732, %v2734, %v2730
        %v2736 = vmul.f32 %v2105, %v2735
        %v2737 = vrcp.pop %v2407
        %v2738 = vmul.f32 %v2407, %v2737
        %v2739 = vsub.f32 1.0, %v2738
        %v2740 = vmul.f32 %v2737, %v2739
        %v2741 = vadd.f32 %v2737, %v2740
        %vm2742 = vweird.f32 %v2407
        %vm2743 = vweird.f32 %v2737
        %vm2744 = vmor %vm2742, %vm2743
        %v2745 = vsel %vm2744, %v2737, %v2741
        %v2746 = vand.u32 2147483647, %v2407
        %vm2747 = vcmp.eq.f32.partialorder %v2746, 8.507059e+37
        %v2748 = vand.u32 %v2407, 2147483648
        %v2749 = vor.u32 1.1754944e-38, %v2748
        %v2750 = vsel %vm2747, %v2749, %v2745
        %v2751 = vmul.f32 %v2107, %v2750
        %v2752 = vrcp.pop %v2408
        %v2753 = vmul.f32 %v2408, %v2752
        %v2754 = vsub.f32 1.0, %v2753
        %v2755 = vmul.f32 %v2752, %v2754
        %v2756 = vadd.f32 %v2752, %v2755
        %vm2757 = vweird.f32 %v2408
        %vm2758 = vweird.f32 %v2752
        %vm2759 = vmor %vm2757, %vm2758
        %v2760 = vsel %vm2759, %v2752, %v2756
        %v2761 = vand.u32 2147483647, %v2408
        %vm2762 = vcmp.eq.f32.partialorder %v2761, 8.507059e+37
        %v2763 = vand.u32 %v2408, 2147483648
        %v2764 = vor.u32 1.1754944e-38, %v2763
        %v2765 = vsel %vm2762, %v2764, %v2760
        %v2766 = vmul.f32 %v2109, %v2765
        %v2767 = vrcp.pop %v2409
        %v2768 = vmul.f32 %v2409, %v2767
        %v2769 = vsub.f32 1.0, %v2768
        %v2770 = vmul.f32 %v2767, %v2769
        %v2771 = vadd.f32 %v2767, %v2770
        %vm2772 = vweird.f32 %v2409
        %vm2773 = vweird.f32 %v2767
        %vm2774 = vmor %vm2772, %vm2773
        %v2775 = vsel %vm2774, %v2767, %v2771
        %v2776 = vand.u32 2147483647, %v2409
        %vm2777 = vcmp.eq.f32.partialorder %v2776, 8.507059e+37
        %v2778 = vand.u32 %v2409, 2147483648
        %v2779 = vor.u32 1.1754944e-38, %v2778
        %v2780 = vsel %vm2777, %v2779, %v2775
        %v2781 = vmul.f32 %v2111, %v2780
        %v2782 = vrcp.pop %v2410
        %v2783 = vmul.f32 %v2410, %v2782
        %v2784 = vsub.f32 1.0, %v2783
        %v2785 = vmul.f32 %v2782, %v2784
        %v2786 = vadd.f32 %v2782, %v2785
        %vm2787 = vweird.f32 %v2410
        %vm2788 = vweird.f32 %v2782
        %vm2789 = vmor %vm2787, %vm2788
        %v2790 = vsel %vm2789, %v2782, %v2786
        %v2791 = vand.u32 2147483647, %v2410
        %vm2792 = vcmp.eq.f32.partialorder %v2791, 8.507059e+37
        %v2793 = vand.u32 %v2410, 2147483648
        %v2794 = vor.u32 1.1754944e-38, %v2793
        %v2795 = vsel %vm2792, %v2794, %v2790
        %v2796 = vmul.f32 %v2113, %v2795
        %v2797 = vrcp.pop %v2411
        %v2798 = vmul.f32 %v2411, %v2797
        %v2799 = vsub.f32 1.0, %v2798
        %v2800 = vmul.f32 %v2797, %v2799
        %v2801 = vadd.f32 %v2797, %v2800
        %vm2802 = vweird.f32 %v2411
        %vm2803 = vweird.f32 %v2797
        %vm2804 = vmor %vm2802, %vm2803
        %v2805 = vsel %vm2804, %v2797, %v2801
        %v2806 = vand.u32 2147483647, %v2411
        %vm2807 = vcmp.eq.f32.partialorder %v2806, 8.507059e+37
        %v2808 = vand.u32 %v2411, 2147483648
        %v2809 = vor.u32 1.1754944e-38, %v2808
        %v2810 = vsel %vm2807, %v2809, %v2805
        %v2811 = vmul.f32 %v2115, %v2810
        %v2812 = vrcp.pop %v2412
        %v2813 = vmul.f32 %v2412, %v2812
        %v2814 = vsub.f32 1.0, %v2813
        %v2815 = vmul.f32 %v2812, %v2814
        %v2816 = vadd.f32 %v2812, %v2815
        %vm2817 = vweird.f32 %v2412
        %vm2818 = vweird.f32 %v2812
        %vm2819 = vmor %vm2817, %vm2818
        %v2820 = vsel %vm2819, %v2812, %v2816
        %v2821 = vand.u32 2147483647, %v2412
        %vm2822 = vcmp.eq.f32.partialorder %v2821, 8.507059e+37
        %v2823 = vand.u32 %v2412, 2147483648
        %v2824 = vor.u32 1.1754944e-38, %v2823
        %v2825 = vsel %vm2822, %v2824, %v2820
        %v2826 = vmul.f32 %v2117, %v2825
        %v2827 = vrcp.pop %v2413
        %v2828 = vmul.f32 %v2413, %v2827
        %v2829 = vsub.f32 1.0, %v2828
        %v2830 = vmul.f32 %v2827, %v2829
        %v2831 = vadd.f32 %v2827, %v2830
        %vm2832 = vweird.f32 %v2413
        %vm2833 = vweird.f32 %v2827
        %vm2834 = vmor %vm2832, %vm2833
        %v2835 = vsel %vm2834, %v2827, %v2831
        %v2836 = vand.u32 2147483647, %v2413
        %vm2837 = vcmp.eq.f32.partialorder %v2836, 8.507059e+37
        %v2838 = vand.u32 %v2413, 2147483648
        %v2839 = vor.u32 1.1754944e-38, %v2838
        %v2840 = vsel %vm2837, %v2839, %v2835
        %v2841 = vmul.f32 %v2119, %v2840
        %v2842 = vrcp.pop %v2414
        %v2843 = vmul.f32 %v2414, %v2842
        %v2844 = vsub.f32 1.0, %v2843
        %v2845 = vmul.f32 %v2842, %v2844
        %v2846 = vadd.f32 %v2842, %v2845
        %vm2847 = vweird.f32 %v2414
        %vm2848 = vweird.f32 %v2842
        %vm2849 = vmor %vm2847, %vm2848
        %v2850 = vsel %vm2849, %v2842, %v2846
        %v2851 = vand.u32 2147483647, %v2414
        %vm2852 = vcmp.eq.f32.partialorder %v2851, 8.507059e+37
        %v2853 = vand.u32 %v2414, 2147483648
        %v2854 = vor.u32 1.1754944e-38, %v2853
        %v2855 = vsel %vm2852, %v2854, %v2850
        %v2856 = vmul.f32 %v2121, %v2855
        %v2857 = vrcp.pop %v2415
        %v2858 = vmul.f32 %v2415, %v2857
        %v2859 = vsub.f32 1.0, %v2858
        %v2860 = vmul.f32 %v2857, %v2859
        %v2861 = vadd.f32 %v2857, %v2860
        %vm2862 = vweird.f32 %v2415
        %vm2863 = vweird.f32 %v2857
        %vm2864 = vmor %vm2862, %vm2863
        %v2865 = vsel %vm2864, %v2857, %v2861
        %v2866 = vand.u32 2147483647, %v2415
        %vm2867 = vcmp.eq.f32.partialorder %v2866, 8.507059e+37
        %v2868 = vand.u32 %v2415, 2147483648
        %v2869 = vor.u32 1.1754944e-38, %v2868
        %v2870 = vsel %vm2867, %v2869, %v2865
        %v2871 = vmul.f32 %v2123, %v2870
        %v2872 = vrcp.pop %v2416
        %v2873 = vmul.f32 %v2416, %v2872
        %v2874 = vsub.f32 1.0, %v2873
        %v2875 = vmul.f32 %v2872, %v2874
        %v2876 = vadd.f32 %v2872, %v2875
        %vm2877 = vweird.f32 %v2416
        %vm2878 = vweird.f32 %v2872
        %vm2879 = vmor %vm2877, %vm2878
        %v2880 = vsel %vm2879, %v2872, %v2876
        %v2881 = vand.u32 2147483647, %v2416
        %vm2882 = vcmp.eq.f32.partialorder %v2881, 8.507059e+37
        %v2883 = vand.u32 %v2416, 2147483648
        %v2884 = vor.u32 1.1754944e-38, %v2883
        %v2885 = vsel %vm2882, %v2884, %v2880
        %v2886 = vmul.f32 %v2125, %v2885
        %v2887 = vrcp.pop %v2417
        %v2888 = vmul.f32 %v2417, %v2887
        %v2889 = vsub.f32 1.0, %v2888
        %v2890 = vmul.f32 %v2887, %v2889
        %v2891 = vadd.f32 %v2887, %v2890
        %vm2892 = vweird.f32 %v2417
        %vm2893 = vweird.f32 %v2887
        %vm2894 = vmor %vm2892, %vm2893
        %v2895 = vsel %vm2894, %v2887, %v2891
        %v2896 = vand.u32 2147483647, %v2417
        %vm2897 = vcmp.eq.f32.partialorder %v2896, 8.507059e+37
        %v2898 = vand.u32 %v2417, 2147483648
        %v2899 = vor.u32 1.1754944e-38, %v2898
        %v2900 = vsel %vm2897, %v2899, %v2895
        %v2901 = vmul.f32 %v2127, %v2900
        %v2902 = vrcp.pop %v2418
        %v2903 = vmul.f32 %v2418, %v2902
        %v2904 = vsub.f32 1.0, %v2903
        %v2905 = vmul.f32 %v2902, %v2904
        %v2906 = vadd.f32 %v2902, %v2905
        %vm2907 = vweird.f32 %v2418
        %vm2908 = vweird.f32 %v2902
        %vm2909 = vmor %vm2907, %vm2908
        %v2910 = vsel %vm2909, %v2902, %v2906
        %v2911 = vand.u32 2147483647, %v2418
        %vm2912 = vcmp.eq.f32.partialorder %v2911, 8.507059e+37
        %v2913 = vand.u32 %v2418, 2147483648
        %v2914 = vor.u32 1.1754944e-38, %v2913
        %v2915 = vsel %vm2912, %v2914, %v2910
        %v2916 = vmul.f32 %v2129, %v2915
        %v2917 = vrcp.pop %v2419
        %v2918 = vmul.f32 %v2419, %v2917
        %v2919 = vsub.f32 1.0, %v2918
        %v2920 = vmul.f32 %v2917, %v2919
        %v2921 = vadd.f32 %v2917, %v2920
        %vm2922 = vweird.f32 %v2419
        %vm2923 = vweird.f32 %v2917
        %vm2924 = vmor %vm2922, %vm2923
        %v2925 = vsel %vm2924, %v2917, %v2921
        %v2926 = vand.u32 2147483647, %v2419
        %vm2927 = vcmp.eq.f32.partialorder %v2926, 8.507059e+37
        %v2928 = vand.u32 %v2419, 2147483648
        %v2929 = vor.u32 1.1754944e-38, %v2928
        %v2930 = vsel %vm2927, %v2929, %v2925
        %v2931 = vmul.f32 %v2131, %v2930
        %v2932 = vrcp.pop %v2420
        %v2933 = vmul.f32 %v2420, %v2932
        %v2934 = vsub.f32 1.0, %v2933
        %v2935 = vmul.f32 %v2932, %v2934
        %v2936 = vadd.f32 %v2932, %v2935
        %vm2937 = vweird.f32 %v2420
        %vm2938 = vweird.f32 %v2932
        %vm2939 = vmor %vm2937, %vm2938
        %v2940 = vsel %vm2939, %v2932, %v2936
        %v2941 = vand.u32 2147483647, %v2420
        %vm2942 = vcmp.eq.f32.partialorder %v2941, 8.507059e+37
        %v2943 = vand.u32 %v2420, 2147483648
        %v2944 = vor.u32 1.1754944e-38, %v2943
        %v2945 = vsel %vm2942, %v2944, %v2940
        %v2946 = vmul.f32 %v2133, %v2945
        %v2947 = vrcp.pop %v2421
        %v2948 = vmul.f32 %v2421, %v2947
        %v2949 = vsub.f32 1.0, %v2948
        %v2950 = vmul.f32 %v2947, %v2949
        %v2951 = vadd.f32 %v2947, %v2950
        %vm2952 = vweird.f32 %v2421
        %vm2953 = vweird.f32 %v2947
        %vm2954 = vmor %vm2952, %vm2953
        %v2955 = vsel %vm2954, %v2947, %v2951
        %v2956 = vand.u32 2147483647, %v2421
        %vm2957 = vcmp.eq.f32.partialorder %v2956, 8.507059e+37
        %v2958 = vand.u32 %v2421, 2147483648
        %v2959 = vor.u32 1.1754944e-38, %v2958
        %v2960 = vsel %vm2957, %v2959, %v2955
        %v2961 = vmul.f32 %v2135, %v2960
        %v2962 = vrcp.pop %v2422
        %v2963 = vmul.f32 %v2422, %v2962
        %v2964 = vsub.f32 1.0, %v2963
        %v2965 = vmul.f32 %v2962, %v2964
        %v2966 = vadd.f32 %v2962, %v2965
        %vm2967 = vweird.f32 %v2422
        %vm2968 = vweird.f32 %v2962
        %vm2969 = vmor %vm2967, %vm2968
        %v2970 = vsel %vm2969, %v2962, %v2966
        %v2971 = vand.u32 2147483647, %v2422
        %vm2972 = vcmp.eq.f32.partialorder %v2971, 8.507059e+37
        %v2973 = vand.u32 %v2422, 2147483648
        %v2974 = vor.u32 1.1754944e-38, %v2973
        %v2975 = vsel %vm2972, %v2974, %v2970
        %v2976 = vmul.f32 %v2137, %v2975
        %v2977 = vrcp.pop %v2423
        %v2978 = vmul.f32 %v2423, %v2977
        %v2979 = vsub.f32 1.0, %v2978
        %v2980 = vmul.f32 %v2977, %v2979
        %v2981 = vadd.f32 %v2977, %v2980
        %vm2982 = vweird.f32 %v2423
        %vm2983 = vweird.f32 %v2977
        %vm2984 = vmor %vm2982, %vm2983
        %v2985 = vsel %vm2984, %v2977, %v2981
        %v2986 = vand.u32 2147483647, %v2423
        %vm2987 = vcmp.eq.f32.partialorder %v2986, 8.507059e+37
        %v2988 = vand.u32 %v2423, 2147483648
        %v2989 = vor.u32 1.1754944e-38, %v2988
        %v2990 = vsel %vm2987, %v2989, %v2985
        %v2991 = vmul.f32 %v2139, %v2990
        %v2992 = vrcp.pop %v2424
        %v2993 = vmul.f32 %v2424, %v2992
        %v2994 = vsub.f32 1.0, %v2993
        %v2995 = vmul.f32 %v2992, %v2994
        %v2996 = vadd.f32 %v2992, %v2995
        %vm2997 = vweird.f32 %v2424
        %vm2998 = vweird.f32 %v2992
        %vm2999 = vmor %vm2997, %vm2998
        %v3000 = vsel %vm2999, %v2992, %v2996
        %v3001 = vand.u32 2147483647, %v2424
        %vm3002 = vcmp.eq.f32.partialorder %v3001, 8.507059e+37
        %v3003 = vand.u32 %v2424, 2147483648
        %v3004 = vor.u32 1.1754944e-38, %v3003
        %v3005 = vsel %vm3002, %v3004, %v3000
        %v3006 = vmul.f32 %v2141, %v3005
        %v3007 = vrcp.pop %v2425
        %v3008 = vmul.f32 %v2425, %v3007
        %v3009 = vsub.f32 1.0, %v3008
        %v3010 = vmul.f32 %v3007, %v3009
        %v3011 = vadd.f32 %v3007, %v3010
        %vm3012 = vweird.f32 %v2425
        %vm3013 = vweird.f32 %v3007
        %vm3014 = vmor %vm3012, %vm3013
        %v3015 = vsel %vm3014, %v3007, %v3011
        %v3016 = vand.u32 2147483647, %v2425
        %vm3017 = vcmp.eq.f32.partialorder %v3016, 8.507059e+37
        %v3018 = vand.u32 %v2425, 2147483648
        %v3019 = vor.u32 1.1754944e-38, %v3018
        %v3020 = vsel %vm3017, %v3019, %v3015
        %v3021 = vmul.f32 %v2143, %v3020
        %v3022 = vrcp.pop %v2426
        %v3023 = vmul.f32 %v2426, %v3022
        %v3024 = vsub.f32 1.0, %v3023
        %v3025 = vmul.f32 %v3022, %v3024
        %v3026 = vadd.f32 %v3022, %v3025
        %vm3027 = vweird.f32 %v2426
        %vm3028 = vweird.f32 %v3022
        %vm3029 = vmor %vm3027, %vm3028
        %v3030 = vsel %vm3029, %v3022, %v3026
        %v3031 = vand.u32 2147483647, %v2426
        %vm3032 = vcmp.eq.f32.partialorder %v3031, 8.507059e+37
        %v3033 = vand.u32 %v2426, 2147483648
        %v3034 = vor.u32 1.1754944e-38, %v3033
        %v3035 = vsel %vm3032, %v3034, %v3030
        %v3036 = vmul.f32 %v2145, %v3035
        %v3037 = vrcp.pop %v2427
        %v3038 = vmul.f32 %v2427, %v3037
        %v3039 = vsub.f32 1.0, %v3038
        %v3040 = vmul.f32 %v3037, %v3039
        %v3041 = vadd.f32 %v3037, %v3040
        %vm3042 = vweird.f32 %v2427
        %vm3043 = vweird.f32 %v3037
        %vm3044 = vmor %vm3042, %vm3043
        %v3045 = vsel %vm3044, %v3037, %v3041
        %v3046 = vand.u32 2147483647, %v2427
        %vm3047 = vcmp.eq.f32.partialorder %v3046, 8.507059e+37
        %v3048 = vand.u32 %v2427, 2147483648
        %v3049 = vor.u32 1.1754944e-38, %v3048
        %v3050 = vsel %vm3047, %v3049, %v3045
        %v3051 = vmul.f32 %v2147, %v3050
        %v3052 = vrcp.pop %v2428
        %v3053 = vmul.f32 %v2428, %v3052
        %v3054 = vsub.f32 1.0, %v3053
        %v3055 = vmul.f32 %v3052, %v3054
        %v3056 = vadd.f32 %v3052, %v3055
        %vm3057 = vweird.f32 %v2428
        %vm3058 = vweird.f32 %v3052
        %vm3059 = vmor %vm3057, %vm3058
        %v3060 = vsel %vm3059, %v3052, %v3056
        %v3061 = vand.u32 2147483647, %v2428
        %vm3062 = vcmp.eq.f32.partialorder %v3061, 8.507059e+37
        %v3063 = vand.u32 %v2428, 2147483648
        %v3064 = vor.u32 1.1754944e-38, %v3063
        %v3065 = vsel %vm3062, %v3064, %v3060
        %v3066 = vmul.f32 %v2149, %v3065
        %v3067 = vrcp.pop %v2429
        %v3068 = vmul.f32 %v2429, %v3067
        %v3069 = vsub.f32 1.0, %v3068
        %v3070 = vmul.f32 %v3067, %v3069
        %v3071 = vadd.f32 %v3067, %v3070
        %vm3072 = vweird.f32 %v2429
        %vm3073 = vweird.f32 %v3067
        %vm3074 = vmor %vm3072, %vm3073
        %v3075 = vsel %vm3074, %v3067, %v3071
        %v3076 = vand.u32 2147483647, %v2429
        %vm3077 = vcmp.eq.f32.partialorder %v3076, 8.507059e+37
        %v3078 = vand.u32 %v2429, 2147483648
        %v3079 = vor.u32 1.1754944e-38, %v3078
        %v3080 = vsel %vm3077, %v3079, %v3075
        %v3081 = vmul.f32 %v2151, %v3080
        %v3082 = vrcp.pop %v2430
        %v3083 = vmul.f32 %v2430, %v3082
        %v3084 = vsub.f32 1.0, %v3083
        %v3085 = vmul.f32 %v3082, %v3084
        %v3086 = vadd.f32 %v3082, %v3085
        %vm3087 = vweird.f32 %v2430
        %vm3088 = vweird.f32 %v3082
        %vm3089 = vmor %vm3087, %vm3088
        %v3090 = vsel %vm3089, %v3082, %v3086
        %v3091 = vand.u32 2147483647, %v2430
        %vm3092 = vcmp.eq.f32.partialorder %v3091, 8.507059e+37
        %v3093 = vand.u32 %v2430, 2147483648
        %v3094 = vor.u32 1.1754944e-38, %v3093
        %v3095 = vsel %vm3092, %v3094, %v3090
        %v3096 = vmul.f32 %v2153, %v3095
        %v3097 = vrcp.pop %v2431
        %v3098 = vmul.f32 %v2431, %v3097
        %v3099 = vsub.f32 1.0, %v3098
        %v3100 = vmul.f32 %v3097, %v3099
        %v3101 = vadd.f32 %v3097, %v3100
        %vm3102 = vweird.f32 %v2431
        %vm3103 = vweird.f32 %v3097
        %vm3104 = vmor %vm3102, %vm3103
        %v3105 = vsel %vm3104, %v3097, %v3101
        %v3106 = vand.u32 2147483647, %v2431
        %vm3107 = vcmp.eq.f32.partialorder %v3106, 8.507059e+37
        %v3108 = vand.u32 %v2431, 2147483648
        %v3109 = vor.u32 1.1754944e-38, %v3108
        %v3110 = vsel %vm3107, %v3109, %v3105
        %v3111 = vmul.f32 %v2155, %v3110
        %v3112 = vrcp.pop %v2432
        %v3113 = vmul.f32 %v2432, %v3112
        %v3114 = vsub.f32 1.0, %v3113
        %v3115 = vmul.f32 %v3112, %v3114
        %v3116 = vadd.f32 %v3112, %v3115
        %vm3117 = vweird.f32 %v2432
        %vm3118 = vweird.f32 %v3112
        %vm3119 = vmor %vm3117, %vm3118
        %v3120 = vsel %vm3119, %v3112, %v3116
        %v3121 = vand.u32 2147483647, %v2432
        %vm3122 = vcmp.eq.f32.partialorder %v3121, 8.507059e+37
        %v3123 = vand.u32 %v2432, 2147483648
        %v3124 = vor.u32 1.1754944e-38, %v3123
        %v3125 = vsel %vm3122, %v3124, %v3120
        %v3126 = vmul.f32 %v2157, %v3125
        %v3127 = vrcp.pop %v2433
        %v3128 = vmul.f32 %v2433, %v3127
        %v3129 = vsub.f32 1.0, %v3128
        %v3130 = vmul.f32 %v3127, %v3129
        %v3131 = vadd.f32 %v3127, %v3130
        %vm3132 = vweird.f32 %v2433
        %vm3133 = vweird.f32 %v3127
        %vm3134 = vmor %vm3132, %vm3133
        %v3135 = vsel %vm3134, %v3127, %v3131
        %v3136 = vand.u32 2147483647, %v2433
        %vm3137 = vcmp.eq.f32.partialorder %v3136, 8.507059e+37
        %v3138 = vand.u32 %v2433, 2147483648
        %v3139 = vor.u32 1.1754944e-38, %v3138
        %v3140 = vsel %vm3137, %v3139, %v3135
        %v3141 = vmul.f32 %v2159, %v3140
        %v3142 = vrcp.pop %v2434
        %v3143 = vmul.f32 %v2434, %v3142
        %v3144 = vsub.f32 1.0, %v3143
        %v3145 = vmul.f32 %v3142, %v3144
        %v3146 = vadd.f32 %v3142, %v3145
        %vm3147 = vweird.f32 %v2434
        %vm3148 = vweird.f32 %v3142
        %vm3149 = vmor %vm3147, %vm3148
        %v3150 = vsel %vm3149, %v3142, %v3146
        %v3151 = vand.u32 2147483647, %v2434
        %vm3152 = vcmp.eq.f32.partialorder %v3151, 8.507059e+37
        %v3153 = vand.u32 %v2434, 2147483648
        %v3154 = vor.u32 1.1754944e-38, %v3153
        %v3155 = vsel %vm3152, %v3154, %v3150
        %v3156 = vmul.f32 %v2161, %v3155
        %v3157 = vrcp.pop %v2435
        %v3158 = vmul.f32 %v2435, %v3157
        %v3159 = vsub.f32 1.0, %v3158
        %v3160 = vmul.f32 %v3157, %v3159
        %v3161 = vadd.f32 %v3157, %v3160
        %vm3162 = vweird.f32 %v2435
        %vm3163 = vweird.f32 %v3157
        %vm3164 = vmor %vm3162, %vm3163
        %v3165 = vsel %vm3164, %v3157, %v3161
        %v3166 = vand.u32 2147483647, %v2435
        %vm3167 = vcmp.eq.f32.partialorder %v3166, 8.507059e+37
        %v3168 = vand.u32 %v2435, 2147483648
        %v3169 = vor.u32 1.1754944e-38, %v3168
        %v3170 = vsel %vm3167, %v3169, %v3165
        %v3171 = vmul.f32 %v2163, %v3170
        %v3172 = vrcp.pop %v2436
        %v3173 = vmul.f32 %v2436, %v3172
        %v3174 = vsub.f32 1.0, %v3173
        %v3175 = vmul.f32 %v3172, %v3174
        %v3176 = vadd.f32 %v3172, %v3175
        %vm3177 = vweird.f32 %v2436
        %vm3178 = vweird.f32 %v3172
        %vm3179 = vmor %vm3177, %vm3178
        %v3180 = vsel %vm3179, %v3172, %v3176
        %v3181 = vand.u32 2147483647, %v2436
        %vm3182 = vcmp.eq.f32.partialorder %v3181, 8.507059e+37
        %v3183 = vand.u32 %v2436, 2147483648
        %v3184 = vor.u32 1.1754944e-38, %v3183
        %v3185 = vsel %vm3182, %v3184, %v3180
        %v3186 = vmul.f32 %v2165, %v3185
        %v3187 = vrcp.pop %v2437
        %v3188 = vmul.f32 %v2437, %v3187
        %v3189 = vsub.f32 1.0, %v3188
        %v3190 = vmul.f32 %v3187, %v3189
        %v3191 = vadd.f32 %v3187, %v3190
        %vm3192 = vweird.f32 %v2437
        %vm3193 = vweird.f32 %v3187
        %vm3194 = vmor %vm3192, %vm3193
        %v3195 = vsel %vm3194, %v3187, %v3191
        %v3196 = vand.u32 2147483647, %v2437
        %vm3197 = vcmp.eq.f32.partialorder %v3196, 8.507059e+37
        %v3198 = vand.u32 %v2437, 2147483648
        %v3199 = vor.u32 1.1754944e-38, %v3198
        %v3200 = vsel %vm3197, %v3199, %v3195
        %v3201 = vmul.f32 %v2167, %v3200
        %v3202 = vrcp.pop %v2438
        %v3203 = vmul.f32 %v2438, %v3202
        %v3204 = vsub.f32 1.0, %v3203
        %v3205 = vmul.f32 %v3202, %v3204
        %v3206 = vadd.f32 %v3202, %v3205
        %vm3207 = vweird.f32 %v2438
        %vm3208 = vweird.f32 %v3202
        %vm3209 = vmor %vm3207, %vm3208
        %v3210 = vsel %vm3209, %v3202, %v3206
        %v3211 = vand.u32 2147483647, %v2438
        %vm3212 = vcmp.eq.f32.partialorder %v3211, 8.507059e+37
        %v3213 = vand.u32 %v2438, 2147483648
        %v3214 = vor.u32 1.1754944e-38, %v3213
        %v3215 = vsel %vm3212, %v3214, %v3210
        %v3216 = vmul.f32 %v2169, %v3215
        %v3217 = vrcp.pop %v2439
        %v3218 = vmul.f32 %v2439, %v3217
        %v3219 = vsub.f32 1.0, %v3218
        %v3220 = vmul.f32 %v3217, %v3219
        %v3221 = vadd.f32 %v3217, %v3220
        %vm3222 = vweird.f32 %v2439
        %vm3223 = vweird.f32 %v3217
        %vm3224 = vmor %vm3222, %vm3223
        %v3225 = vsel %vm3224, %v3217, %v3221
        %v3226 = vand.u32 2147483647, %v2439
        %vm3227 = vcmp.eq.f32.partialorder %v3226, 8.507059e+37
        %v3228 = vand.u32 %v2439, 2147483648
        %v3229 = vor.u32 1.1754944e-38, %v3228
        %v3230 = vsel %vm3227, %v3229, %v3225
        %v3231 = vmul.f32 %v2171, %v3230
        %v3232 = vrcp.pop %v2440
        %v3233 = vmul.f32 %v2440, %v3232
        %v3234 = vsub.f32 1.0, %v3233
        %v3235 = vmul.f32 %v3232, %v3234
        %v3236 = vadd.f32 %v3232, %v3235
        %vm3237 = vweird.f32 %v2440
        %vm3238 = vweird.f32 %v3232
        %vm3239 = vmor %vm3237, %vm3238
        %v3240 = vsel %vm3239, %v3232, %v3236
        %v3241 = vand.u32 2147483647, %v2440
        %vm3242 = vcmp.eq.f32.partialorder %v3241, 8.507059e+37
        %v3243 = vand.u32 %v2440, 2147483648
        %v3244 = vor.u32 1.1754944e-38, %v3243
        %v3245 = vsel %vm3242, %v3244, %v3240
        %v3246 = vmul.f32 %v2173, %v3245
        %v3247 = vrcp.pop %v2441
        %v3248 = vmul.f32 %v2441, %v3247
        %v3249 = vsub.f32 1.0, %v3248
        %v3250 = vmul.f32 %v3247, %v3249
        %v3251 = vadd.f32 %v3247, %v3250
        %vm3252 = vweird.f32 %v2441
        %vm3253 = vweird.f32 %v3247
        %vm3254 = vmor %vm3252, %vm3253
        %v3255 = vsel %vm3254, %v3247, %v3251
        %v3256 = vand.u32 2147483647, %v2441
        %vm3257 = vcmp.eq.f32.partialorder %v3256, 8.507059e+37
        %v3258 = vand.u32 %v2441, 2147483648
        %v3259 = vor.u32 1.1754944e-38, %v3258
        %v3260 = vsel %vm3257, %v3259, %v3255
        %v3261 = vmul.f32 %v2175, %v3260
        %v3262 = vrcp.pop %v2442
        %v3263 = vmul.f32 %v2442, %v3262
        %v3264 = vsub.f32 1.0, %v3263
        %v3265 = vmul.f32 %v3262, %v3264
        %v3266 = vadd.f32 %v3262, %v3265
        %vm3267 = vweird.f32 %v2442
        %vm3268 = vweird.f32 %v3262
        %vm3269 = vmor %vm3267, %vm3268
        %v3270 = vsel %vm3269, %v3262, %v3266
        %v3271 = vand.u32 2147483647, %v2442
        %vm3272 = vcmp.eq.f32.partialorder %v3271, 8.507059e+37
        %v3273 = vand.u32 %v2442, 2147483648
        %v3274 = vor.u32 1.1754944e-38, %v3273
        %v3275 = vsel %vm3272, %v3274, %v3270
        %v3276 = vmul.f32 %v2177, %v3275
        %v3277 = vrcp.pop %v2443
        %v3278 = vmul.f32 %v2443, %v3277
        %v3279 = vsub.f32 1.0, %v3278
        %v3280 = vmul.f32 %v3277, %v3279
        %v3281 = vadd.f32 %v3277, %v3280
        %vm3282 = vweird.f32 %v2443
        %vm3283 = vweird.f32 %v3277
        %vm3284 = vmor %vm3282, %vm3283
        %v3285 = vsel %vm3284, %v3277, %v3281
        %v3286 = vand.u32 2147483647, %v2443
        %vm3287 = vcmp.eq.f32.partialorder %v3286, 8.507059e+37
        %v3288 = vand.u32 %v2443, 2147483648
        %v3289 = vor.u32 1.1754944e-38, %v3288
        %v3290 = vsel %vm3287, %v3289, %v3285
        %v3291 = vmul.f32 %v2179, %v3290
        %v3292 = vrcp.pop %v2444
        %v3293 = vmul.f32 %v2444, %v3292
        %v3294 = vsub.f32 1.0, %v3293
        %v3295 = vmul.f32 %v3292, %v3294
        %v3296 = vadd.f32 %v3292, %v3295
        %vm3297 = vweird.f32 %v2444
        %vm3298 = vweird.f32 %v3292
        %vm3299 = vmor %vm3297, %vm3298
        %v3300 = vsel %vm3299, %v3292, %v3296
        %v3301 = vand.u32 2147483647, %v2444
        %vm3302 = vcmp.eq.f32.partialorder %v3301, 8.507059e+37
        %v3303 = vand.u32 %v2444, 2147483648
        %v3304 = vor.u32 1.1754944e-38, %v3303
        %v3305 = vsel %vm3302, %v3304, %v3300
        %v3306 = vmul.f32 %v2181, %v3305
        %v3307 = vrcp.pop %v2445
        %v3308 = vmul.f32 %v2445, %v3307
        %v3309 = vsub.f32 1.0, %v3308
        %v3310 = vmul.f32 %v3307, %v3309
        %v3311 = vadd.f32 %v3307, %v3310
        %vm3312 = vweird.f32 %v2445
        %vm3313 = vweird.f32 %v3307
        %vm3314 = vmor %vm3312, %vm3313
        %v3315 = vsel %vm3314, %v3307, %v3311
        %v3316 = vand.u32 2147483647, %v2445
        %vm3317 = vcmp.eq.f32.partialorder %v3316, 8.507059e+37
        %v3318 = vand.u32 %v2445, 2147483648
        %v3319 = vor.u32 1.1754944e-38, %v3318
        %v3320 = vsel %vm3317, %v3319, %v3315
        %v3321 = vmul.f32 %v2183, %v3320
        %v3322 = vrcp.pop %v2446
        %v3323 = vmul.f32 %v2446, %v3322
        %v3324 = vsub.f32 1.0, %v3323
        %v3325 = vmul.f32 %v3322, %v3324
        %v3326 = vadd.f32 %v3322, %v3325
        %vm3327 = vweird.f32 %v2446
        %vm3328 = vweird.f32 %v3322
        %vm3329 = vmor %vm3327, %vm3328
        %v3330 = vsel %vm3329, %v3322, %v3326
        %v3331 = vand.u32 2147483647, %v2446
        %vm3332 = vcmp.eq.f32.partialorder %v3331, 8.507059e+37
        %v3333 = vand.u32 %v2446, 2147483648
        %v3334 = vor.u32 1.1754944e-38, %v3333
        %v3335 = vsel %vm3332, %v3334, %v3330
        %v3336 = vmul.f32 %v2185, %v3335
        %v3337 = vrcp.pop %v2447
        %v3338 = vmul.f32 %v2447, %v3337
        %v3339 = vsub.f32 1.0, %v3338
        %v3340 = vmul.f32 %v3337, %v3339
        %v3341 = vadd.f32 %v3337, %v3340
        %vm3342 = vweird.f32 %v2447
        %vm3343 = vweird.f32 %v3337
        %vm3344 = vmor %vm3342, %vm3343
        %v3345 = vsel %vm3344, %v3337, %v3341
        %v3346 = vand.u32 2147483647, %v2447
        %vm3347 = vcmp.eq.f32.partialorder %v3346, 8.507059e+37
        %v3348 = vand.u32 %v2447, 2147483648
        %v3349 = vor.u32 1.1754944e-38, %v3348
        %v3350 = vsel %vm3347, %v3349, %v3345
        %v3351 = vmul.f32 %v2187, %v3350
        %v3352 = vrcp.pop %v2448
        %v3353 = vmul.f32 %v2448, %v3352
        %v3354 = vsub.f32 1.0, %v3353
        %v3355 = vmul.f32 %v3352, %v3354
        %v3356 = vadd.f32 %v3352, %v3355
        %vm3357 = vweird.f32 %v2448
        %vm3358 = vweird.f32 %v3352
        %vm3359 = vmor %vm3357, %vm3358
        %v3360 = vsel %vm3359, %v3352, %v3356
        %v3361 = vand.u32 2147483647, %v2448
        %vm3362 = vcmp.eq.f32.partialorder %v3361, 8.507059e+37
        %v3363 = vand.u32 %v2448, 2147483648
        %v3364 = vor.u32 1.1754944e-38, %v3363
        %v3365 = vsel %vm3362, %v3364, %v3360
        %v3366 = vmul.f32 %v2189, %v3365
        %v3367 = vrcp.pop %v2449
        %v3368 = vmul.f32 %v2449, %v3367
        %v3369 = vsub.f32 1.0, %v3368
        %v3370 = vmul.f32 %v3367, %v3369
        %v3371 = vadd.f32 %v3367, %v3370
        %vm3372 = vweird.f32 %v2449
        %vm3373 = vweird.f32 %v3367
        %vm3374 = vmor %vm3372, %vm3373
        %v3375 = vsel %vm3374, %v3367, %v3371
        %v3376 = vand.u32 2147483647, %v2449
        %vm3377 = vcmp.eq.f32.partialorder %v3376, 8.507059e+37
        %v3378 = vand.u32 %v2449, 2147483648
        %v3379 = vor.u32 1.1754944e-38, %v3378
        %v3380 = vsel %vm3377, %v3379, %v3375
        %v3381 = vmul.f32 %v2191, %v3380
        %v3382 = vrcp.pop %v2450
        %v3383 = vmul.f32 %v2450, %v3382
        %v3384 = vsub.f32 1.0, %v3383
        %v3385 = vmul.f32 %v3382, %v3384
        %v3386 = vadd.f32 %v3382, %v3385
        %vm3387 = vweird.f32 %v2450
        %vm3388 = vweird.f32 %v3382
        %vm3389 = vmor %vm3387, %vm3388
        %v3390 = vsel %vm3389, %v3382, %v3386
        %v3391 = vand.u32 2147483647, %v2450
        %vm3392 = vcmp.eq.f32.partialorder %v3391, 8.507059e+37
        %v3393 = vand.u32 %v2450, 2147483648
        %v3394 = vor.u32 1.1754944e-38, %v3393
        %v3395 = vsel %vm3392, %v3394, %v3390
        %v3396 = vmul.f32 %v2193, %v3395
        %v3397 = vrcp.pop %v2451
        %v3398 = vmul.f32 %v2451, %v3397
        %v3399 = vsub.f32 1.0, %v3398
        %v3400 = vmul.f32 %v3397, %v3399
        %v3401 = vadd.f32 %v3397, %v3400
        %vm3402 = vweird.f32 %v2451
        %vm3403 = vweird.f32 %v3397
        %vm3404 = vmor %vm3402, %vm3403
        %v3405 = vsel %vm3404, %v3397, %v3401
        %v3406 = vand.u32 2147483647, %v2451
        %vm3407 = vcmp.eq.f32.partialorder %v3406, 8.507059e+37
        %v3408 = vand.u32 %v2451, 2147483648
        %v3409 = vor.u32 1.1754944e-38, %v3408
        %v3410 = vsel %vm3407, %v3409, %v3405
        %v3411 = vmul.f32 %v2195, %v3410
        %v3412 = vmul.f32 %v2466, %v366
        %v3413 = vmul.f32 %v2481, %v368
        %v3414 = vmul.f32 %v2496, %v370
        %v3415 = vmul.f32 %v2511, %v372
        %v3416 = vmul.f32 %v2526, %v374
        %v3417 = vmul.f32 %v2541, %v376
        %v3418 = vmul.f32 %v2556, %v378
        %v3419 = vmul.f32 %v2571, %v380
        %v3420 = vmul.f32 %v2586, %v382
        %v3421 = vmul.f32 %v2601, %v384
        %v3422 = vmul.f32 %v2616, %v386
        %v3423 = vmul.f32 %v2631, %v388
        %v3424 = vmul.f32 %v2646, %v390
        %v3425 = vmul.f32 %v2661, %v392
        %v3426 = vmul.f32 %v2676, %v394
        %v3427 = vmul.f32 %v2691, %v396
        %v3428 = vmul.f32 %v2706, %v398
        %v3429 = vmul.f32 %v2721, %v400
        %v3430 = vmul.f32 %v2736, %v402
        %v3431 = vmul.f32 %v2751, %v404
        %v3432 = vmul.f32 %v2766, %v406
        %v3433 = vmul.f32 %v2781, %v408
        %v3434 = vmul.f32 %v2796, %v410
        %v3435 = vmul.f32 %v2811, %v412
        %v3436 = vmul.f32 %v2826, %v414
        %v3437 = vmul.f32 %v2841, %v416
        %v3438 = vmul.f32 %v2856, %v418
        %v3439 = vmul.f32 %v2871, %v420
        %v3440 = vmul.f32 %v2886, %v422
        %v3441 = vmul.f32 %v2901, %v424
        %v3442 = vmul.f32 %v2916, %v426
        %v3443 = vmul.f32 %v2931, %v428
        %v3444 = vmul.f32 %v2946, %v430
        %v3445 = vmul.f32 %v2961, %v432
        %v3446 = vmul.f32 %v2976, %v434
        %v3447 = vmul.f32 %v2991, %v436
        %v3448 = vmul.f32 %v3006, %v438
        %v3449 = vmul.f32 %v3021, %v440
        %v3450 = vmul.f32 %v3036, %v442
        %v3451 = vmul.f32 %v3051, %v444
        %v3452 = vmul.f32 %v3066, %v446
        %v3453 = vmul.f32 %v3081, %v448
        %v3454 = vmul.f32 %v3096, %v450
        %v3455 = vmul.f32 %v3111, %v452
        %v3456 = vmul.f32 %v3126, %v454
        %v3457 = vmul.f32 %v3141, %v456
        %v3458 = vmul.f32 %v3156, %v458
        %v3459 = vmul.f32 %v3171, %v460
        %v3460 = vmul.f32 %v3186, %v462
        %v3461 = vmul.f32 %v3201, %v464
        %v3462 = vmul.f32 %v3216, %v466
        %v3463 = vmul.f32 %v3231, %v468
        %v3464 = vmul.f32 %v3246, %v470
        %v3465 = vmul.f32 %v3261, %v472
        %v3466 = vmul.f32 %v3276, %v474
        %v3467 = vmul.f32 %v3291, %v476
        %v3468 = vmul.f32 %v3306, %v478
        %v3469 = vmul.f32 %v3321, %v480
        %v3470 = vmul.f32 %v3336, %v482
        %v3471 = vmul.f32 %v3351, %v484
        %v3472 = vmul.f32 %v3366, %v486
        %v3473 = vmul.f32 %v3381, %v488
        %v3474 = vmul.f32 %v3396, %v490
        %v3475 = vmul.f32 %v3411, %v492
        %v3476 = vld [vmem:[%s6] sm:$0xff]
        %v3477 = vld [vmem:[%s6 + $0x8] sm:$0xff]
        %v3478 = vld [vmem:[%s6 + $0x10] sm:$0xff]
        %v3479 = vld [vmem:[%s6 + $0x18] sm:$0xff]
        %v3480 = vld [vmem:[%s6 + $0x20] sm:$0xff]
        %v3481 = vld [vmem:[%s6 + $0x28] sm:$0xff]
        %v3482 = vld [vmem:[%s6 + $0x30] sm:$0xff]
        %v3483 = vld [vmem:[%s6 + $0x38] sm:$0xff]
        %v3484 = vld [vmem:[%s6 + $0x40] sm:$0xff]
        %v3485 = vld [vmem:[%s6 + $0x48] sm:$0xff]
        %v3486 = vld [vmem:[%s6 + $0x50] sm:$0xff]
        %v3487 = vld [vmem:[%s6 + $0x58] sm:$0xff]
        %v3488 = vld [vmem:[%s6 + $0x60] sm:$0xff]
        %v3489 = vld [vmem:[%s6 + $0x68] sm:$0xff]
        %v3490 = vld [vmem:[%s6 + $0x70] sm:$0xff]
        %v3491 = vld [vmem:[%s6 + $0x78] sm:$0xff]
        %v3492 = vld [vmem:[%s7] sm:$0x1]
        %v3494 = vperm.slane %v3492, 0
        %3496 = vmatpush.msra.mxu0 %v3491
        %3497 = vmatpush.msra.mxu0 %v3490
        %3498 = vmatpush.msra.mxu0 %v3489
        %3499 = vmatpush.msra.mxu0 %v3488
        %3500 = vmatpush.msra.mxu0 %v3487
        %3501 = vmatpush.msra.mxu0 %v3486
        %3502 = vmatpush.msra.mxu0 %v3485
        %3503 = vmatpush.msra.mxu0 %v3484
        %3504 = vmatpush.msra.mxu0 %v3483
        %3505 = vmatpush.msra.mxu0 %v3482
        %3506 = vmatpush.msra.mxu0 %v3481
        %3507 = vmatpush.msra.mxu0 %v3480
        %3508 = vmatpush.msra.mxu0 %v3479
        %3509 = vmatpush.msra.mxu0 %v3478
        %3510 = vmatpush.msra.mxu0 %v3477
        %3511 = vmatpush.msra.mxu0 %v3476
        %3512 = vmatmul.f32.gmra.mxu0 %v3412
        %v3513 = vpop.f32.mrf.mxu0
        %v3514 = vadd.f32 %v3494, %v3513
        %3515 = vmatmul.f32.gmra.mxu0 %v3413
        %v3516 = vpop.f32.mrf.mxu0
        %v3517 = vadd.f32 %v3494, %v3516
        %3518 = vmatmul.f32.gmra.mxu0 %v3414
        %v3519 = vpop.f32.mrf.mxu0
        %v3520 = vadd.f32 %v3494, %v3519
        %3521 = vmatmul.f32.gmra.mxu0 %v3415
        %v3522 = vpop.f32.mrf.mxu0
        %v3523 = vadd.f32 %v3494, %v3522
        %3524 = vmatmul.f32.gmra.mxu0 %v3416
        %v3525 = vpop.f32.mrf.mxu0
        %v3526 = vadd.f32 %v3494, %v3525
        %3527 = vmatmul.f32.gmra.mxu0 %v3417
        %v3528 = vpop.f32.mrf.mxu0
        %v3529 = vadd.f32 %v3494, %v3528
        %3530 = vmatmul.f32.gmra.mxu0 %v3418
        %v3531 = vpop.f32.mrf.mxu0
        %v3532 = vadd.f32 %v3494, %v3531
        %3533 = vmatmul.f32.gmra.mxu0 %v3419
        %v3534 = vpop.f32.mrf.mxu0
        %v3535 = vadd.f32 %v3494, %v3534
        %3536 = vmatmul.f32.gmra.mxu0 %v3420
        %v3537 = vpop.f32.mrf.mxu0
        %v3538 = vadd.f32 %v3494, %v3537
        %3539 = vmatmul.f32.gmra.mxu0 %v3421
        %v3540 = vpop.f32.mrf.mxu0
        %v3541 = vadd.f32 %v3494, %v3540
        %3542 = vmatmul.f32.gmra.mxu0 %v3422
        %v3543 = vpop.f32.mrf.mxu0
        %v3544 = vadd.f32 %v3494, %v3543
        %3545 = vmatmul.f32.gmra.mxu0 %v3423
        %v3546 = vpop.f32.mrf.mxu0
        %v3547 = vadd.f32 %v3494, %v3546
        %3548 = vmatmul.f32.gmra.mxu0 %v3424
        %v3549 = vpop.f32.mrf.mxu0
        %v3550 = vadd.f32 %v3494, %v3549
        %3551 = vmatmul.f32.gmra.mxu0 %v3425
        %v3552 = vpop.f32.mrf.mxu0
        %v3553 = vadd.f32 %v3494, %v3552
        %3554 = vmatmul.f32.gmra.mxu0 %v3426
        %v3555 = vpop.f32.mrf.mxu0
        %v3556 = vadd.f32 %v3494, %v3555
        %3557 = vmatmul.f32.gmra.mxu0 %v3427
        %v3558 = vpop.f32.mrf.mxu0
        %v3559 = vadd.f32 %v3494, %v3558
        %3560 = vmatmul.f32.gmra.mxu0 %v3428
        %v3561 = vpop.f32.mrf.mxu0
        %v3562 = vadd.f32 %v3494, %v3561
        %3563 = vmatmul.f32.gmra.mxu0 %v3429
        %v3564 = vpop.f32.mrf.mxu0
        %v3565 = vadd.f32 %v3494, %v3564
        %3566 = vmatmul.f32.gmra.mxu0 %v3430
        %v3567 = vpop.f32.mrf.mxu0
        %v3568 = vadd.f32 %v3494, %v3567
        %3569 = vmatmul.f32.gmra.mxu0 %v3431
        %v3570 = vpop.f32.mrf.mxu0
        %v3571 = vadd.f32 %v3494, %v3570
        %3572 = vmatmul.f32.gmra.mxu0 %v3432
        %v3573 = vpop.f32.mrf.mxu0
        %v3574 = vadd.f32 %v3494, %v3573
        %3575 = vmatmul.f32.gmra.mxu0 %v3433
        %v3576 = vpop.f32.mrf.mxu0
        %v3577 = vadd.f32 %v3494, %v3576
        %3578 = vmatmul.f32.gmra.mxu0 %v3434
        %v3579 = vpop.f32.mrf.mxu0
        %v3580 = vadd.f32 %v3494, %v3579
        %3581 = vmatmul.f32.gmra.mxu0 %v3435
        %v3582 = vpop.f32.mrf.mxu0
        %v3583 = vadd.f32 %v3494, %v3582
        %3584 = vmatmul.f32.gmra.mxu0 %v3436
        %v3585 = vpop.f32.mrf.mxu0
        %v3586 = vadd.f32 %v3494, %v3585
        %3587 = vmatmul.f32.gmra.mxu0 %v3437
        %v3588 = vpop.f32.mrf.mxu0
        %v3589 = vadd.f32 %v3494, %v3588
        %3590 = vmatmul.f32.gmra.mxu0 %v3438
        %v3591 = vpop.f32.mrf.mxu0
        %v3592 = vadd.f32 %v3494, %v3591
        %3593 = vmatmul.f32.gmra.mxu0 %v3439
        %v3594 = vpop.f32.mrf.mxu0
        %v3595 = vadd.f32 %v3494, %v3594
        %3596 = vmatmul.f32.gmra.mxu0 %v3440
        %v3597 = vpop.f32.mrf.mxu0
        %v3598 = vadd.f32 %v3494, %v3597
        %3599 = vmatmul.f32.gmra.mxu0 %v3441
        %v3600 = vpop.f32.mrf.mxu0
        %v3601 = vadd.f32 %v3494, %v3600
        %3602 = vmatmul.f32.gmra.mxu0 %v3442
        %v3603 = vpop.f32.mrf.mxu0
        %v3604 = vadd.f32 %v3494, %v3603
        %3605 = vmatmul.f32.gmra.mxu0 %v3443
        %v3606 = vpop.f32.mrf.mxu0
        %v3607 = vadd.f32 %v3494, %v3606
        %3608 = vmatmul.f32.gmra.mxu0 %v3444
        %v3609 = vpop.f32.mrf.mxu0
        %v3610 = vadd.f32 %v3494, %v3609
        %3611 = vmatmul.f32.gmra.mxu0 %v3445
        %v3612 = vpop.f32.mrf.mxu0
        %v3613 = vadd.f32 %v3494, %v3612
        %3614 = vmatmul.f32.gmra.mxu0 %v3446
        %v3615 = vpop.f32.mrf.mxu0
        %v3616 = vadd.f32 %v3494, %v3615
        %3617 = vmatmul.f32.gmra.mxu0 %v3447
        %v3618 = vpop.f32.mrf.mxu0
        %v3619 = vadd.f32 %v3494, %v3618
        %3620 = vmatmul.f32.gmra.mxu0 %v3448
        %v3621 = vpop.f32.mrf.mxu0
        %v3622 = vadd.f32 %v3494, %v3621
        %3623 = vmatmul.f32.gmra.mxu0 %v3449
        %v3624 = vpop.f32.mrf.mxu0
        %v3625 = vadd.f32 %v3494, %v3624
        %3626 = vmatmul.f32.gmra.mxu0 %v3450
        %v3627 = vpop.f32.mrf.mxu0
        %v3628 = vadd.f32 %v3494, %v3627
        %3629 = vmatmul.f32.gmra.mxu0 %v3451
        %v3630 = vpop.f32.mrf.mxu0
        %v3631 = vadd.f32 %v3494, %v3630
        %3632 = vmatmul.f32.gmra.mxu0 %v3452
        %v3633 = vpop.f32.mrf.mxu0
        %v3634 = vadd.f32 %v3494, %v3633
        %3635 = vmatmul.f32.gmra.mxu0 %v3453
        %v3636 = vpop.f32.mrf.mxu0
        %v3637 = vadd.f32 %v3494, %v3636
        %3638 = vmatmul.f32.gmra.mxu0 %v3454
        %v3639 = vpop.f32.mrf.mxu0
        %v3640 = vadd.f32 %v3494, %v3639
        %3641 = vmatmul.f32.gmra.mxu0 %v3455
        %v3642 = vpop.f32.mrf.mxu0
        %v3643 = vadd.f32 %v3494, %v3642
        %3644 = vmatmul.f32.gmra.mxu0 %v3456
        %v3645 = vpop.f32.mrf.mxu0
        %v3646 = vadd.f32 %v3494, %v3645
        %3647 = vmatmul.f32.gmra.mxu0 %v3457
        %v3648 = vpop.f32.mrf.mxu0
        %v3649 = vadd.f32 %v3494, %v3648
        %3650 = vmatmul.f32.gmra.mxu0 %v3458
        %v3651 = vpop.f32.mrf.mxu0
        %v3652 = vadd.f32 %v3494, %v3651
        %3653 = vmatmul.f32.gmra.mxu0 %v3459
        %v3654 = vpop.f32.mrf.mxu0
        %v3655 = vadd.f32 %v3494, %v3654
        %3656 = vmatmul.f32.gmra.mxu0 %v3460
        %v3657 = vpop.f32.mrf.mxu0
        %v3658 = vadd.f32 %v3494, %v3657
        %3659 = vmatmul.f32.gmra.mxu0 %v3461
        %v3660 = vpop.f32.mrf.mxu0
        %v3661 = vadd.f32 %v3494, %v3660
        %3662 = vmatmul.f32.gmra.mxu0 %v3462
        %v3663 = vpop.f32.mrf.mxu0
        %v3664 = vadd.f32 %v3494, %v3663
        %3665 = vmatmul.f32.gmra.mxu0 %v3463
        %v3666 = vpop.f32.mrf.mxu0
        %v3667 = vadd.f32 %v3494, %v3666
        %3668 = vmatmul.f32.gmra.mxu0 %v3464
        %v3669 = vpop.f32.mrf.mxu0
        %v3670 = vadd.f32 %v3494, %v3669
        %3671 = vmatmul.f32.gmra.mxu0 %v3465
        %v3672 = vpop.f32.mrf.mxu0
        %v3673 = vadd.f32 %v3494, %v3672
        %3674 = vmatmul.f32.gmra.mxu0 %v3466
        %v3675 = vpop.f32.mrf.mxu0
        %v3676 = vadd.f32 %v3494, %v3675
        %3677 = vmatmul.f32.gmra.mxu0 %v3467
        %v3678 = vpop.f32.mrf.mxu0
        %v3679 = vadd.f32 %v3494, %v3678
        %3680 = vmatmul.f32.gmra.mxu0 %v3468
        %v3681 = vpop.f32.mrf.mxu0
        %v3682 = vadd.f32 %v3494, %v3681
        %3683 = vmatmul.f32.gmra.mxu0 %v3469
        %v3684 = vpop.f32.mrf.mxu0
        %v3685 = vadd.f32 %v3494, %v3684
        %3686 = vmatmul.f32.gmra.mxu0 %v3470
        %v3687 = vpop.f32.mrf.mxu0
        %v3688 = vadd.f32 %v3494, %v3687
        %3689 = vmatmul.f32.gmra.mxu0 %v3471
        %v3690 = vpop.f32.mrf.mxu0
        %v3691 = vadd.f32 %v3494, %v3690
        %3692 = vmatmul.f32.gmra.mxu0 %v3472
        %v3693 = vpop.f32.mrf.mxu0
        %v3694 = vadd.f32 %v3494, %v3693
        %3695 = vmatmul.f32.gmra.mxu0 %v3473
        %v3696 = vpop.f32.mrf.mxu0
        %v3697 = vadd.f32 %v3494, %v3696
        %3698 = vmatmul.f32.gmra.mxu0 %v3474
        %v3699 = vpop.f32.mrf.mxu0
        %v3700 = vadd.f32 %v3494, %v3699
        %3701 = vmatmul.f32.gmra.mxu0 %v3475
        %v3702 = vpop.f32.mrf.mxu0
        %v3703 = vadd.f32 %v3494, %v3702
        %3704 = vdwg.mxu0
        %v3705 = vmax.f32 %v3514, 0.0
        %v3706 = vmax.f32 %v3517, 0.0
        %v3707 = vmax.f32 %v3520, 0.0
        %v3708 = vmax.f32 %v3523, 0.0
        %v3709 = vmax.f32 %v3526, 0.0
        %v3710 = vmax.f32 %v3529, 0.0
        %v3711 = vmax.f32 %v3532, 0.0
        %v3712 = vmax.f32 %v3535, 0.0
        %v3713 = vmax.f32 %v3538, 0.0
        %v3714 = vmax.f32 %v3541, 0.0
        %v3715 = vmax.f32 %v3544, 0.0
        %v3716 = vmax.f32 %v3547, 0.0
        %v3717 = vmax.f32 %v3550, 0.0
        %v3718 = vmax.f32 %v3553, 0.0
        %v3719 = vmax.f32 %v3556, 0.0
        %v3720 = vmax.f32 %v3559, 0.0
        %v3721 = vmax.f32 %v3562, 0.0
        %v3722 = vmax.f32 %v3565, 0.0
        %v3723 = vmax.f32 %v3568, 0.0
        %v3724 = vmax.f32 %v3571, 0.0
        %v3725 = vmax.f32 %v3574, 0.0
        %v3726 = vmax.f32 %v3577, 0.0
        %v3727 = vmax.f32 %v3580, 0.0
        %v3728 = vmax.f32 %v3583, 0.0
        %v3729 = vmax.f32 %v3586, 0.0
        %v3730 = vmax.f32 %v3589, 0.0
        %v3731 = vmax.f32 %v3592, 0.0
        %v3732 = vmax.f32 %v3595, 0.0
        %v3733 = vmax.f32 %v3598, 0.0
        %v3734 = vmax.f32 %v3601, 0.0
        %v3735 = vmax.f32 %v3604, 0.0
        %v3736 = vmax.f32 %v3607, 0.0
        %v3737 = vmax.f32 %v3610, 0.0
        %v3738 = vmax.f32 %v3613, 0.0
        %v3739 = vmax.f32 %v3616, 0.0
        %v3740 = vmax.f32 %v3619, 0.0
        %v3741 = vmax.f32 %v3622, 0.0
        %v3742 = vmax.f32 %v3625, 0.0
        %v3743 = vmax.f32 %v3628, 0.0
        %v3744 = vmax.f32 %v3631, 0.0
        %v3745 = vmax.f32 %v3634, 0.0
        %v3746 = vmax.f32 %v3637, 0.0
        %v3747 = vmax.f32 %v3640, 0.0
        %v3748 = vmax.f32 %v3643, 0.0
        %v3749 = vmax.f32 %v3646, 0.0
        %v3750 = vmax.f32 %v3649, 0.0
        %v3751 = vmax.f32 %v3652, 0.0
        %v3752 = vmax.f32 %v3655, 0.0
        %v3753 = vmax.f32 %v3658, 0.0
        %v3754 = vmax.f32 %v3661, 0.0
        %v3755 = vmax.f32 %v3664, 0.0
        %v3756 = vmax.f32 %v3667, 0.0
        %v3757 = vmax.f32 %v3670, 0.0
        %v3758 = vmax.f32 %v3673, 0.0
        %v3759 = vmax.f32 %v3676, 0.0
        %v3760 = vmax.f32 %v3679, 0.0
        %v3761 = vmax.f32 %v3682, 0.0
        %v3762 = vmax.f32 %v3685, 0.0
        %v3763 = vmax.f32 %v3688, 0.0
        %v3764 = vmax.f32 %v3691, 0.0
        %v3765 = vmax.f32 %v3694, 0.0
        %v3766 = vmax.f32 %v3697, 0.0
        %v3767 = vmax.f32 %v3700, 0.0
        %v3768 = vmax.f32 %v3703, 0.0
        %v3769 = vld [vmem:[%s8] sm:$0x1]
        %v3771 = vperm.slane %v3769, 0
        %v3773 = vmul.f32 %v3705, %v3771
        %v3774 = vmul.f32 %v3706, %v3771
        %v3775 = vmul.f32 %v3707, %v3771
        %v3776 = vmul.f32 %v3708, %v3771
        %v3777 = vmul.f32 %v3709, %v3771
        %v3778 = vmul.f32 %v3710, %v3771
        %v3779 = vmul.f32 %v3711, %v3771
        %v3780 = vmul.f32 %v3712, %v3771
        %v3781 = vmul.f32 %v3713, %v3771
        %v3782 = vmul.f32 %v3714, %v3771
        %v3783 = vmul.f32 %v3715, %v3771
        %v3784 = vmul.f32 %v3716, %v3771
        %v3785 = vmul.f32 %v3717, %v3771
        %v3786 = vmul.f32 %v3718, %v3771
        %v3787 = vmul.f32 %v3719, %v3771
        %v3788 = vmul.f32 %v3720, %v3771
        %v3789 = vmul.f32 %v3721, %v3771
        %v3790 = vmul.f32 %v3722, %v3771
        %v3791 = vmul.f32 %v3723, %v3771
        %v3792 = vmul.f32 %v3724, %v3771
        %v3793 = vmul.f32 %v3725, %v3771
        %v3794 = vmul.f32 %v3726, %v3771
        %v3795 = vmul.f32 %v3727, %v3771
        %v3796 = vmul.f32 %v3728, %v3771
        %v3797 = vmul.f32 %v3729, %v3771
        %v3798 = vmul.f32 %v3730, %v3771
        %v3799 = vmul.f32 %v3731, %v3771
        %v3800 = vmul.f32 %v3732, %v3771
        %v3801 = vmul.f32 %v3733, %v3771
        %v3802 = vmul.f32 %v3734, %v3771
        %v3803 = vmul.f32 %v3735, %v3771
        %v3804 = vmul.f32 %v3736, %v3771
        %v3805 = vmul.f32 %v3737, %v3771
        %v3806 = vmul.f32 %v3738, %v3771
        %v3807 = vmul.f32 %v3739, %v3771
        %v3808 = vmul.f32 %v3740, %v3771
        %v3809 = vmul.f32 %v3741, %v3771
        %v3810 = vmul.f32 %v3742, %v3771
        %v3811 = vmul.f32 %v3743, %v3771
        %v3812 = vmul.f32 %v3744, %v3771
        %v3813 = vmul.f32 %v3745, %v3771
        %v3814 = vmul.f32 %v3746, %v3771
        %v3815 = vmul.f32 %v3747, %v3771
        %v3816 = vmul.f32 %v3748, %v3771
        %v3817 = vmul.f32 %v3749, %v3771
        %v3818 = vmul.f32 %v3750, %v3771
        %v3819 = vmul.f32 %v3751, %v3771
        %v3820 = vmul.f32 %v3752, %v3771
        %v3821 = vmul.f32 %v3753, %v3771
        %v3822 = vmul.f32 %v3754, %v3771
        %v3823 = vmul.f32 %v3755, %v3771
        %v3824 = vmul.f32 %v3756, %v3771
        %v3825 = vmul.f32 %v3757, %v3771
        %v3826 = vmul.f32 %v3758, %v3771
        %v3827 = vmul.f32 %v3759, %v3771
        %v3828 = vmul.f32 %v3760, %v3771
        %v3829 = vmul.f32 %v3761, %v3771
        %v3830 = vmul.f32 %v3762, %v3771
        %v3831 = vmul.f32 %v3763, %v3771
        %v3832 = vmul.f32 %v3764, %v3771
        %v3833 = vmul.f32 %v3765, %v3771
        %v3834 = vmul.f32 %v3766, %v3771
        %v3835 = vmul.f32 %v3767, %v3771
        %v3836 = vmul.f32 %v3768, %v3771
        %vm3837 = vcmask 261120
        %v3838 = vsel %vm3837, %v3773, 0.0
        %3839 = vadd.xlane.f32.xlu0 %v3838
        %v3840 = vpop.xlane.xlu0 %3839
        %v3841 = vsel %vm3837, %v3774, 0.0
        %3842 = vadd.xlane.f32.xlu0 %v3841
        %v3843 = vpop.xlane.xlu0 %3842
        %v3844 = vsel %vm3837, %v3775, 0.0
        %3845 = vadd.xlane.f32.xlu0 %v3844
        %v3846 = vpop.xlane.xlu0 %3845
        %v3847 = vsel %vm3837, %v3776, 0.0
        %3848 = vadd.xlane.f32.xlu0 %v3847
        %v3849 = vpop.xlane.xlu0 %3848
        %v3850 = vsel %vm3837, %v3777, 0.0
        %3851 = vadd.xlane.f32.xlu0 %v3850
        %v3852 = vpop.xlane.xlu0 %3851
        %v3853 = vsel %vm3837, %v3778, 0.0
        %3854 = vadd.xlane.f32.xlu0 %v3853
        %v3855 = vpop.xlane.xlu0 %3854
        %v3856 = vsel %vm3837, %v3779, 0.0
        %3857 = vadd.xlane.f32.xlu0 %v3856
        %v3858 = vpop.xlane.xlu0 %3857
        %v3859 = vsel %vm3837, %v3780, 0.0
        %3860 = vadd.xlane.f32.xlu0 %v3859
        %v3861 = vpop.xlane.xlu0 %3860
        %v3862 = vsel %vm3837, %v3781, 0.0
        %3863 = vadd.xlane.f32.xlu0 %v3862
        %v3864 = vpop.xlane.xlu0 %3863
        %v3865 = vsel %vm3837, %v3782, 0.0
        %3866 = vadd.xlane.f32.xlu0 %v3865
        %v3867 = vpop.xlane.xlu0 %3866
        %v3868 = vsel %vm3837, %v3783, 0.0
        %3869 = vadd.xlane.f32.xlu0 %v3868
        %v3870 = vpop.xlane.xlu0 %3869
        %v3871 = vsel %vm3837, %v3784, 0.0
        %3872 = vadd.xlane.f32.xlu0 %v3871
        %v3873 = vpop.xlane.xlu0 %3872
        %v3874 = vsel %vm3837, %v3785, 0.0
        %3875 = vadd.xlane.f32.xlu0 %v3874
        %v3876 = vpop.xlane.xlu0 %3875
        %v3877 = vsel %vm3837, %v3786, 0.0
        %3878 = vadd.xlane.f32.xlu0 %v3877
        %v3879 = vpop.xlane.xlu0 %3878
        %v3880 = vsel %vm3837, %v3787, 0.0
        %3881 = vadd.xlane.f32.xlu0 %v3880
        %v3882 = vpop.xlane.xlu0 %3881
        %v3883 = vsel %vm3837, %v3788, 0.0
        %3884 = vadd.xlane.f32.xlu0 %v3883
        %v3885 = vpop.xlane.xlu0 %3884
        %v3886 = vsel %vm3837, %v3789, 0.0
        %3887 = vadd.xlane.f32.xlu0 %v3886
        %v3888 = vpop.xlane.xlu0 %3887
        %v3889 = vsel %vm3837, %v3790, 0.0
        %3890 = vadd.xlane.f32.xlu0 %v3889
        %v3891 = vpop.xlane.xlu0 %3890
        %v3892 = vsel %vm3837, %v3791, 0.0
        %3893 = vadd.xlane.f32.xlu0 %v3892
        %v3894 = vpop.xlane.xlu0 %3893
        %v3895 = vsel %vm3837, %v3792, 0.0
        %3896 = vadd.xlane.f32.xlu0 %v3895
        %v3897 = vpop.xlane.xlu0 %3896
        %v3898 = vsel %vm3837, %v3793, 0.0
        %3899 = vadd.xlane.f32.xlu0 %v3898
        %v3900 = vpop.xlane.xlu0 %3899
        %v3901 = vsel %vm3837, %v3794, 0.0
        %3902 = vadd.xlane.f32.xlu0 %v3901
        %v3903 = vpop.xlane.xlu0 %3902
        %v3904 = vsel %vm3837, %v3795, 0.0
        %3905 = vadd.xlane.f32.xlu0 %v3904
        %v3906 = vpop.xlane.xlu0 %3905
        %v3907 = vsel %vm3837, %v3796, 0.0
        %3908 = vadd.xlane.f32.xlu0 %v3907
        %v3909 = vpop.xlane.xlu0 %3908
        %v3910 = vsel %vm3837, %v3797, 0.0
        %3911 = vadd.xlane.f32.xlu0 %v3910
        %v3912 = vpop.xlane.xlu0 %3911
        %v3913 = vsel %vm3837, %v3798, 0.0
        %3914 = vadd.xlane.f32.xlu0 %v3913
        %v3915 = vpop.xlane.xlu0 %3914
        %v3916 = vsel %vm3837, %v3799, 0.0
        %3917 = vadd.xlane.f32.xlu0 %v3916
        %v3918 = vpop.xlane.xlu0 %3917
        %v3919 = vsel %vm3837, %v3800, 0.0
        %3920 = vadd.xlane.f32.xlu0 %v3919
        %v3921 = vpop.xlane.xlu0 %3920
        %v3922 = vsel %vm3837, %v3801, 0.0
        %3923 = vadd.xlane.f32.xlu0 %v3922
        %v3924 = vpop.xlane.xlu0 %3923
        %v3925 = vsel %vm3837, %v3802, 0.0
        %3926 = vadd.xlane.f32.xlu0 %v3925
        %v3927 = vpop.xlane.xlu0 %3926
        %v3928 = vsel %vm3837, %v3803, 0.0
        %3929 = vadd.xlane.f32.xlu0 %v3928
        %v3930 = vpop.xlane.xlu0 %3929
        %v3931 = vsel %vm3837, %v3804, 0.0
        %3932 = vadd.xlane.f32.xlu0 %v3931
        %v3933 = vpop.xlane.xlu0 %3932
        %v3934 = vsel %vm3837, %v3805, 0.0
        %3935 = vadd.xlane.f32.xlu0 %v3934
        %v3936 = vpop.xlane.xlu0 %3935
        %v3937 = vsel %vm3837, %v3806, 0.0
        %3938 = vadd.xlane.f32.xlu0 %v3937
        %v3939 = vpop.xlane.xlu0 %3938
        %v3940 = vsel %vm3837, %v3807, 0.0
        %3941 = vadd.xlane.f32.xlu0 %v3940
        %v3942 = vpop.xlane.xlu0 %3941
        %v3943 = vsel %vm3837, %v3808, 0.0
        %3944 = vadd.xlane.f32.xlu0 %v3943
        %v3945 = vpop.xlane.xlu0 %3944
        %v3946 = vsel %vm3837, %v3809, 0.0
        %3947 = vadd.xlane.f32.xlu0 %v3946
        %v3948 = vpop.xlane.xlu0 %3947
        %v3949 = vsel %vm3837, %v3810, 0.0
        %3950 = vadd.xlane.f32.xlu0 %v3949
        %v3951 = vpop.xlane.xlu0 %3950
        %v3952 = vsel %vm3837, %v3811, 0.0
        %3953 = vadd.xlane.f32.xlu0 %v3952
        %v3954 = vpop.xlane.xlu0 %3953
        %v3955 = vsel %vm3837, %v3812, 0.0
        %3956 = vadd.xlane.f32.xlu0 %v3955
        %v3957 = vpop.xlane.xlu0 %3956
        %v3958 = vsel %vm3837, %v3813, 0.0
        %3959 = vadd.xlane.f32.xlu0 %v3958
        %v3960 = vpop.xlane.xlu0 %3959
        %v3961 = vsel %vm3837, %v3814, 0.0
        %3962 = vadd.xlane.f32.xlu0 %v3961
        %v3963 = vpop.xlane.xlu0 %3962
        %v3964 = vsel %vm3837, %v3815, 0.0
        %3965 = vadd.xlane.f32.xlu0 %v3964
        %v3966 = vpop.xlane.xlu0 %3965
        %v3967 = vsel %vm3837, %v3816, 0.0
        %3968 = vadd.xlane.f32.xlu0 %v3967
        %v3969 = vpop.xlane.xlu0 %3968
        %v3970 = vsel %vm3837, %v3817, 0.0
        %3971 = vadd.xlane.f32.xlu0 %v3970
        %v3972 = vpop.xlane.xlu0 %3971
        %v3973 = vsel %vm3837, %v3818, 0.0
        %3974 = vadd.xlane.f32.xlu0 %v3973
        %v3975 = vpop.xlane.xlu0 %3974
        %v3976 = vsel %vm3837, %v3819, 0.0
        %3977 = vadd.xlane.f32.xlu0 %v3976
        %v3978 = vpop.xlane.xlu0 %3977
        %v3979 = vsel %vm3837, %v3820, 0.0
        %3980 = vadd.xlane.f32.xlu0 %v3979
        %v3981 = vpop.xlane.xlu0 %3980
        %v3982 = vsel %vm3837, %v3821, 0.0
        %3983 = vadd.xlane.f32.xlu0 %v3982
        %v3984 = vpop.xlane.xlu0 %3983
        %v3985 = vsel %vm3837, %v3822, 0.0
        %3986 = vadd.xlane.f32.xlu0 %v3985
        %v3987 = vpop.xlane.xlu0 %3986
        %v3988 = vsel %vm3837, %v3823, 0.0
        %3989 = vadd.xlane.f32.xlu0 %v3988
        %v3990 = vpop.xlane.xlu0 %3989
        %v3991 = vsel %vm3837, %v3824, 0.0
        %3992 = vadd.xlane.f32.xlu0 %v3991
        %v3993 = vpop.xlane.xlu0 %3992
        %v3994 = vsel %vm3837, %v3825, 0.0
        %3995 = vadd.xlane.f32.xlu0 %v3994
        %v3996 = vpop.xlane.xlu0 %3995
        %v3997 = vsel %vm3837, %v3826, 0.0
        %3998 = vadd.xlane.f32.xlu0 %v3997
        %v3999 = vpop.xlane.xlu0 %3998
        %v4000 = vsel %vm3837, %v3827, 0.0
        %4001 = vadd.xlane.f32.xlu0 %v4000
        %v4002 = vpop.xlane.xlu0 %4001
        %v4003 = vsel %vm3837, %v3828, 0.0
        %4004 = vadd.xlane.f32.xlu0 %v4003
        %v4005 = vpop.xlane.xlu0 %4004
        %v4006 = vsel %vm3837, %v3829, 0.0
        %4007 = vadd.xlane.f32.xlu0 %v4006
        %v4008 = vpop.xlane.xlu0 %4007
        %v4009 = vsel %vm3837, %v3830, 0.0
        %4010 = vadd.xlane.f32.xlu0 %v4009
        %v4011 = vpop.xlane.xlu0 %4010
        %v4012 = vsel %vm3837, %v3831, 0.0
        %4013 = vadd.xlane.f32.xlu0 %v4012
        %v4014 = vpop.xlane.xlu0 %4013
        %v4015 = vsel %vm3837, %v3832, 0.0
        %4016 = vadd.xlane.f32.xlu0 %v4015
        %v4017 = vpop.xlane.xlu0 %4016
        %v4018 = vsel %vm3837, %v3833, 0.0
        %4019 = vadd.xlane.f32.xlu0 %v4018
        %v4020 = vpop.xlane.xlu0 %4019
        %v4021 = vsel %vm3837, %v3834, 0.0
        %4022 = vadd.xlane.f32.xlu0 %v4021
        %v4023 = vpop.xlane.xlu0 %4022
        %v4024 = vsel %vm3837, %v3835, 0.0
        %4025 = vadd.xlane.f32.xlu0 %v4024
        %v4026 = vpop.xlane.xlu0 %4025
        %v4027 = vsel %vm3837, %v3836, 0.0
        %4028 = vadd.xlane.f32.xlu0 %v4027
        %v4029 = vpop.xlane.xlu0 %4028
        %v4030 = vld [vmem:[#allocation2] sm:$0x1]
        %4032 = vset.pattern.permute.xlu0 0
        %4033 = vperm.xlu0 %4032, %v4030
        %v4034 = vpop.permute.xlu0 %4033
        %v4036 = vperm.slane %v4034, 0
        %v4037 = vadd.f32 %v3840, %v4036
        %v4038 = vadd.f32 %v3843, %v4036
        %v4039 = vadd.f32 %v3846, %v4036
        %v4040 = vadd.f32 %v3849, %v4036
        %v4041 = vadd.f32 %v3852, %v4036
        %v4042 = vadd.f32 %v3855, %v4036
        %v4043 = vadd.f32 %v3858, %v4036
        %v4044 = vadd.f32 %v3861, %v4036
        %v4045 = vadd.f32 %v3864, %v4036
        %v4046 = vadd.f32 %v3867, %v4036
        %v4047 = vadd.f32 %v3870, %v4036
        %v4048 = vadd.f32 %v3873, %v4036
        %v4049 = vadd.f32 %v3876, %v4036
        %v4050 = vadd.f32 %v3879, %v4036
        %v4051 = vadd.f32 %v3882, %v4036
        %v4052 = vadd.f32 %v3885, %v4036
        %v4053 = vadd.f32 %v3888, %v4036
        %v4054 = vadd.f32 %v3891, %v4036
        %v4055 = vadd.f32 %v3894, %v4036
        %v4056 = vadd.f32 %v3897, %v4036
        %v4057 = vadd.f32 %v3900, %v4036
        %v4058 = vadd.f32 %v3903, %v4036
        %v4059 = vadd.f32 %v3906, %v4036
        %v4060 = vadd.f32 %v3909, %v4036
        %v4061 = vadd.f32 %v3912, %v4036
        %v4062 = vadd.f32 %v3915, %v4036
        %v4063 = vadd.f32 %v3918, %v4036
        %v4064 = vadd.f32 %v3921, %v4036
        %v4065 = vadd.f32 %v3924, %v4036
        %v4066 = vadd.f32 %v3927, %v4036
        %v4067 = vadd.f32 %v3930, %v4036
        %v4068 = vadd.f32 %v3933, %v4036
        %v4069 = vadd.f32 %v3936, %v4036
        %v4070 = vadd.f32 %v3939, %v4036
        %v4071 = vadd.f32 %v3942, %v4036
        %v4072 = vadd.f32 %v3945, %v4036
        %v4073 = vadd.f32 %v3948, %v4036
        %v4074 = vadd.f32 %v3951, %v4036
        %v4075 = vadd.f32 %v3954, %v4036
        %v4076 = vadd.f32 %v3957, %v4036
        %v4077 = vadd.f32 %v3960, %v4036
        %v4078 = vadd.f32 %v3963, %v4036
        %v4079 = vadd.f32 %v3966, %v4036
        %v4080 = vadd.f32 %v3969, %v4036
        %v4081 = vadd.f32 %v3972, %v4036
        %v4082 = vadd.f32 %v3975, %v4036
        %v4083 = vadd.f32 %v3978, %v4036
        %v4084 = vadd.f32 %v3981, %v4036
        %v4085 = vadd.f32 %v3984, %v4036
        %v4086 = vadd.f32 %v3987, %v4036
        %v4087 = vadd.f32 %v3990, %v4036
        %v4088 = vadd.f32 %v3993, %v4036
        %v4089 = vadd.f32 %v3996, %v4036
        %v4090 = vadd.f32 %v3999, %v4036
        %v4091 = vadd.f32 %v4002, %v4036
        %v4092 = vadd.f32 %v4005, %v4036
        %v4093 = vadd.f32 %v4008, %v4036
        %v4094 = vadd.f32 %v4011, %v4036
        %v4095 = vadd.f32 %v4014, %v4036
        %v4096 = vadd.f32 %v4017, %v4036
        %v4097 = vadd.f32 %v4020, %v4036
        %v4098 = vadd.f32 %v4023, %v4036
        %v4099 = vadd.f32 %v4026, %v4036
        %v4100 = vadd.f32 %v4029, %v4036
        %v4165 = vperm.slane %v4037, 0
        %v4166 = vperm.slane %v4037, 1
        %v4167 = vperm.slane %v4037, 2
        %v4168 = vperm.slane %v4037, 3
        %v4169 = vperm.slane %v4037, 4
        %v4170 = vperm.slane %v4037, 5
        %v4171 = vperm.slane %v4037, 6
        %v4172 = vperm.slane %v4037, 7
        %v4173 = vperm.slane %v4038, 0
        %v4174 = vperm.slane %v4038, 1
        %v4175 = vperm.slane %v4038, 2
        %v4176 = vperm.slane %v4038, 3
        %v4177 = vperm.slane %v4038, 4
        %v4178 = vperm.slane %v4038, 5
        %v4179 = vperm.slane %v4038, 6
        %v4180 = vperm.slane %v4038, 7
        %v4181 = vperm.slane %v4039, 0
        %v4182 = vperm.slane %v4039, 1
        %v4183 = vperm.slane %v4039, 2
        %v4184 = vperm.slane %v4039, 3
        %v4185 = vperm.slane %v4039, 4
        %v4186 = vperm.slane %v4039, 5
        %v4187 = vperm.slane %v4039, 6
        %v4188 = vperm.slane %v4039, 7
        %v4189 = vperm.slane %v4040, 0
        %v4190 = vperm.slane %v4040, 1
        %v4191 = vperm.slane %v4040, 2
        %v4192 = vperm.slane %v4040, 3
        %v4193 = vperm.slane %v4040, 4
        %v4194 = vperm.slane %v4040, 5
        %v4195 = vperm.slane %v4040, 6
        %v4196 = vperm.slane %v4040, 7
        %v4197 = vperm.slane %v4041, 0
        %v4198 = vperm.slane %v4041, 1
        %v4199 = vperm.slane %v4041, 2
        %v4200 = vperm.slane %v4041, 3
        %v4201 = vperm.slane %v4041, 4
        %v4202 = vperm.slane %v4041, 5
        %v4203 = vperm.slane %v4041, 6
        %v4204 = vperm.slane %v4041, 7
        %v4205 = vperm.slane %v4042, 0
        %v4206 = vperm.slane %v4042, 1
        %v4207 = vperm.slane %v4042, 2
        %v4208 = vperm.slane %v4042, 3
        %v4209 = vperm.slane %v4042, 4
        %v4210 = vperm.slane %v4042, 5
        %v4211 = vperm.slane %v4042, 6
        %v4212 = vperm.slane %v4042, 7
        %v4213 = vperm.slane %v4043, 0
        %v4214 = vperm.slane %v4043, 1
        %v4215 = vperm.slane %v4043, 2
        %v4216 = vperm.slane %v4043, 3
        %v4217 = vperm.slane %v4043, 4
        %v4218 = vperm.slane %v4043, 5
        %v4219 = vperm.slane %v4043, 6
        %v4220 = vperm.slane %v4043, 7
        %v4221 = vperm.slane %v4044, 0
        %v4222 = vperm.slane %v4044, 1
        %v4223 = vperm.slane %v4044, 2
        %v4224 = vperm.slane %v4044, 3
        %v4225 = vperm.slane %v4044, 4
        %v4226 = vperm.slane %v4044, 5
        %v4227 = vperm.slane %v4044, 6
        %v4228 = vperm.slane %v4044, 7
        %v4229 = vperm.slane %v4045, 0
        %v4230 = vperm.slane %v4045, 1
        %v4231 = vperm.slane %v4045, 2
        %v4232 = vperm.slane %v4045, 3
        %v4233 = vperm.slane %v4045, 4
        %v4234 = vperm.slane %v4045, 5
        %v4235 = vperm.slane %v4045, 6
        %v4236 = vperm.slane %v4045, 7
        %v4237 = vperm.slane %v4046, 0
        %v4238 = vperm.slane %v4046, 1
        %v4239 = vperm.slane %v4046, 2
        %v4240 = vperm.slane %v4046, 3
        %v4241 = vperm.slane %v4046, 4
        %v4242 = vperm.slane %v4046, 5
        %v4243 = vperm.slane %v4046, 6
        %v4244 = vperm.slane %v4046, 7
        %v4245 = vperm.slane %v4047, 0
        %v4246 = vperm.slane %v4047, 1
        %v4247 = vperm.slane %v4047, 2
        %v4248 = vperm.slane %v4047, 3
        %v4249 = vperm.slane %v4047, 4
        %v4250 = vperm.slane %v4047, 5
        %v4251 = vperm.slane %v4047, 6
        %v4252 = vperm.slane %v4047, 7
        %v4253 = vperm.slane %v4048, 0
        %v4254 = vperm.slane %v4048, 1
        %v4255 = vperm.slane %v4048, 2
        %v4256 = vperm.slane %v4048, 3
        %v4257 = vperm.slane %v4048, 4
        %v4258 = vperm.slane %v4048, 5
        %v4259 = vperm.slane %v4048, 6
        %v4260 = vperm.slane %v4048, 7
        %v4261 = vperm.slane %v4049, 0
        %v4262 = vperm.slane %v4049, 1
        %v4263 = vperm.slane %v4049, 2
        %v4264 = vperm.slane %v4049, 3
        %v4265 = vperm.slane %v4049, 4
        %v4266 = vperm.slane %v4049, 5
        %v4267 = vperm.slane %v4049, 6
        %v4268 = vperm.slane %v4049, 7
        %v4269 = vperm.slane %v4050, 0
        %v4270 = vperm.slane %v4050, 1
        %v4271 = vperm.slane %v4050, 2
        %v4272 = vperm.slane %v4050, 3
        %v4273 = vperm.slane %v4050, 4
        %v4274 = vperm.slane %v4050, 5
        %v4275 = vperm.slane %v4050, 6
        %v4276 = vperm.slane %v4050, 7
        %v4277 = vperm.slane %v4051, 0
        %v4278 = vperm.slane %v4051, 1
        %v4279 = vperm.slane %v4051, 2
        %v4280 = vperm.slane %v4051, 3
        %v4281 = vperm.slane %v4051, 4
        %v4282 = vperm.slane %v4051, 5
        %v4283 = vperm.slane %v4051, 6
        %v4284 = vperm.slane %v4051, 7
        %v4285 = vperm.slane %v4052, 0
        %v4286 = vperm.slane %v4052, 1
        %v4287 = vperm.slane %v4052, 2
        %v4288 = vperm.slane %v4052, 3
        %v4289 = vperm.slane %v4052, 4
        %v4290 = vperm.slane %v4052, 5
        %v4291 = vperm.slane %v4052, 6
        %v4292 = vperm.slane %v4052, 7
        %v4293 = vperm.slane %v4053, 0
        %v4294 = vperm.slane %v4053, 1
        %v4295 = vperm.slane %v4053, 2
        %v4296 = vperm.slane %v4053, 3
        %v4297 = vperm.slane %v4053, 4
        %v4298 = vperm.slane %v4053, 5
        %v4299 = vperm.slane %v4053, 6
        %v4300 = vperm.slane %v4053, 7
        %v4301 = vperm.slane %v4054, 0
        %v4302 = vperm.slane %v4054, 1
        %v4303 = vperm.slane %v4054, 2
        %v4304 = vperm.slane %v4054, 3
        %v4305 = vperm.slane %v4054, 4
        %v4306 = vperm.slane %v4054, 5
        %v4307 = vperm.slane %v4054, 6
        %v4308 = vperm.slane %v4054, 7
        %v4309 = vperm.slane %v4055, 0
        %v4310 = vperm.slane %v4055, 1
        %v4311 = vperm.slane %v4055, 2
        %v4312 = vperm.slane %v4055, 3
        %v4313 = vperm.slane %v4055, 4
        %v4314 = vperm.slane %v4055, 5
        %v4315 = vperm.slane %v4055, 6
        %v4316 = vperm.slane %v4055, 7
        %v4317 = vperm.slane %v4056, 0
        %v4318 = vperm.slane %v4056, 1
        %v4319 = vperm.slane %v4056, 2
        %v4320 = vperm.slane %v4056, 3
        %v4321 = vperm.slane %v4056, 4
        %v4322 = vperm.slane %v4056, 5
        %v4323 = vperm.slane %v4056, 6
        %v4324 = vperm.slane %v4056, 7
        %v4325 = vperm.slane %v4057, 0
        %v4326 = vperm.slane %v4057, 1
        %v4327 = vperm.slane %v4057, 2
        %v4328 = vperm.slane %v4057, 3
        %v4329 = vperm.slane %v4057, 4
        %v4330 = vperm.slane %v4057, 5
        %v4331 = vperm.slane %v4057, 6
        %v4332 = vperm.slane %v4057, 7
        %v4333 = vperm.slane %v4058, 0
        %v4334 = vperm.slane %v4058, 1
        %v4335 = vperm.slane %v4058, 2
        %v4336 = vperm.slane %v4058, 3
        %v4337 = vperm.slane %v4058, 4
        %v4338 = vperm.slane %v4058, 5
        %v4339 = vperm.slane %v4058, 6
        %v4340 = vperm.slane %v4058, 7
        %v4341 = vperm.slane %v4059, 0
        %v4342 = vperm.slane %v4059, 1
        %v4343 = vperm.slane %v4059, 2
        %v4344 = vperm.slane %v4059, 3
        %v4345 = vperm.slane %v4059, 4
        %v4346 = vperm.slane %v4059, 5
        %v4347 = vperm.slane %v4059, 6
        %v4348 = vperm.slane %v4059, 7
        %v4349 = vperm.slane %v4060, 0
        %v4350 = vperm.slane %v4060, 1
        %v4351 = vperm.slane %v4060, 2
        %v4352 = vperm.slane %v4060, 3
        %v4353 = vperm.slane %v4060, 4
        %v4354 = vperm.slane %v4060, 5
        %v4355 = vperm.slane %v4060, 6
        %v4356 = vperm.slane %v4060, 7
        %v4357 = vperm.slane %v4061, 0
        %v4358 = vperm.slane %v4061, 1
        %v4359 = vperm.slane %v4061, 2
        %v4360 = vperm.slane %v4061, 3
        %v4361 = vperm.slane %v4061, 4
        %v4362 = vperm.slane %v4061, 5
        %v4363 = vperm.slane %v4061, 6
        %v4364 = vperm.slane %v4061, 7
        %v4365 = vperm.slane %v4062, 0
        %v4366 = vperm.slane %v4062, 1
        %v4367 = vperm.slane %v4062, 2
        %v4368 = vperm.slane %v4062, 3
        %v4369 = vperm.slane %v4062, 4
        %v4370 = vperm.slane %v4062, 5
        %v4371 = vperm.slane %v4062, 6
        %v4372 = vperm.slane %v4062, 7
        %v4373 = vperm.slane %v4063, 0
        %v4374 = vperm.slane %v4063, 1
        %v4375 = vperm.slane %v4063, 2
        %v4376 = vperm.slane %v4063, 3
        %v4377 = vperm.slane %v4063, 4
        %v4378 = vperm.slane %v4063, 5
        %v4379 = vperm.slane %v4063, 6
        %v4380 = vperm.slane %v4063, 7
        %v4381 = vperm.slane %v4064, 0
        %v4382 = vperm.slane %v4064, 1
        %v4383 = vperm.slane %v4064, 2
        %v4384 = vperm.slane %v4064, 3
        %v4385 = vperm.slane %v4064, 4
        %v4386 = vperm.slane %v4064, 5
        %v4387 = vperm.slane %v4064, 6
        %v4388 = vperm.slane %v4064, 7
        %v4389 = vperm.slane %v4065, 0
        %v4390 = vperm.slane %v4065, 1
        %v4391 = vperm.slane %v4065, 2
        %v4392 = vperm.slane %v4065, 3
        %v4393 = vperm.slane %v4065, 4
        %v4394 = vperm.slane %v4065, 5
        %v4395 = vperm.slane %v4065, 6
        %v4396 = vperm.slane %v4065, 7
        %v4397 = vperm.slane %v4066, 0
        %v4398 = vperm.slane %v4066, 1
        %v4399 = vperm.slane %v4066, 2
        %v4400 = vperm.slane %v4066, 3
        %v4401 = vperm.slane %v4066, 4
        %v4402 = vperm.slane %v4066, 5
        %v4403 = vperm.slane %v4066, 6
        %v4404 = vperm.slane %v4066, 7
        %v4405 = vperm.slane %v4067, 0
        %v4406 = vperm.slane %v4067, 1
        %v4407 = vperm.slane %v4067, 2
        %v4408 = vperm.slane %v4067, 3
        %v4409 = vperm.slane %v4067, 4
        %v4410 = vperm.slane %v4067, 5
        %v4411 = vperm.slane %v4067, 6
        %v4412 = vperm.slane %v4067, 7
        %v4413 = vperm.slane %v4068, 0
        %v4414 = vperm.slane %v4068, 1
        %v4415 = vperm.slane %v4068, 2
        %v4416 = vperm.slane %v4068, 3
        %v4417 = vperm.slane %v4068, 4
        %v4418 = vperm.slane %v4068, 5
        %v4419 = vperm.slane %v4068, 6
        %v4420 = vperm.slane %v4068, 7
        %v4421 = vperm.slane %v4069, 0
        %v4422 = vperm.slane %v4069, 1
        %v4423 = vperm.slane %v4069, 2
        %v4424 = vperm.slane %v4069, 3
        %v4425 = vperm.slane %v4069, 4
        %v4426 = vperm.slane %v4069, 5
        %v4427 = vperm.slane %v4069, 6
        %v4428 = vperm.slane %v4069, 7
        %v4429 = vperm.slane %v4070, 0
        %v4430 = vperm.slane %v4070, 1
        %v4431 = vperm.slane %v4070, 2
        %v4432 = vperm.slane %v4070, 3
        %v4433 = vperm.slane %v4070, 4
        %v4434 = vperm.slane %v4070, 5
        %v4435 = vperm.slane %v4070, 6
        %v4436 = vperm.slane %v4070, 7
        %v4437 = vperm.slane %v4071, 0
        %v4438 = vperm.slane %v4071, 1
        %v4439 = vperm.slane %v4071, 2
        %v4440 = vperm.slane %v4071, 3
        %v4441 = vperm.slane %v4071, 4
        %v4442 = vperm.slane %v4071, 5
        %v4443 = vperm.slane %v4071, 6
        %v4444 = vperm.slane %v4071, 7
        %v4445 = vperm.slane %v4072, 0
        %v4446 = vperm.slane %v4072, 1
        %v4447 = vperm.slane %v4072, 2
        %v4448 = vperm.slane %v4072, 3
        %v4449 = vperm.slane %v4072, 4
        %v4450 = vperm.slane %v4072, 5
        %v4451 = vperm.slane %v4072, 6
        %v4452 = vperm.slane %v4072, 7
        %v4453 = vperm.slane %v4073, 0
        %v4454 = vperm.slane %v4073, 1
        %v4455 = vperm.slane %v4073, 2
        %v4456 = vperm.slane %v4073, 3
        %v4457 = vperm.slane %v4073, 4
        %v4458 = vperm.slane %v4073, 5
        %v4459 = vperm.slane %v4073, 6
        %v4460 = vperm.slane %v4073, 7
        %v4461 = vperm.slane %v4074, 0
        %v4462 = vperm.slane %v4074, 1
        %v4463 = vperm.slane %v4074, 2
        %v4464 = vperm.slane %v4074, 3
        %v4465 = vperm.slane %v4074, 4
        %v4466 = vperm.slane %v4074, 5
        %v4467 = vperm.slane %v4074, 6
        %v4468 = vperm.slane %v4074, 7
        %v4469 = vperm.slane %v4075, 0
        %v4470 = vperm.slane %v4075, 1
        %v4471 = vperm.slane %v4075, 2
        %v4472 = vperm.slane %v4075, 3
        %v4473 = vperm.slane %v4075, 4
        %v4474 = vperm.slane %v4075, 5
        %v4475 = vperm.slane %v4075, 6
        %v4476 = vperm.slane %v4075, 7
        %v4477 = vperm.slane %v4076, 0
        %v4478 = vperm.slane %v4076, 1
        %v4479 = vperm.slane %v4076, 2
        %v4480 = vperm.slane %v4076, 3
        %v4481 = vperm.slane %v4076, 4
        %v4482 = vperm.slane %v4076, 5
        %v4483 = vperm.slane %v4076, 6
        %v4484 = vperm.slane %v4076, 7
        %v4485 = vperm.slane %v4077, 0
        %v4486 = vperm.slane %v4077, 1
        %v4487 = vperm.slane %v4077, 2
        %v4488 = vperm.slane %v4077, 3
        %v4489 = vperm.slane %v4077, 4
        %v4490 = vperm.slane %v4077, 5
        %v4491 = vperm.slane %v4077, 6
        %v4492 = vperm.slane %v4077, 7
        %v4493 = vperm.slane %v4078, 0
        %v4494 = vperm.slane %v4078, 1
        %v4495 = vperm.slane %v4078, 2
        %v4496 = vperm.slane %v4078, 3
        %v4497 = vperm.slane %v4078, 4
        %v4498 = vperm.slane %v4078, 5
        %v4499 = vperm.slane %v4078, 6
        %v4500 = vperm.slane %v4078, 7
        %v4501 = vperm.slane %v4079, 0
        %v4502 = vperm.slane %v4079, 1
        %v4503 = vperm.slane %v4079, 2
        %v4504 = vperm.slane %v4079, 3
        %v4505 = vperm.slane %v4079, 4
        %v4506 = vperm.slane %v4079, 5
        %v4507 = vperm.slane %v4079, 6
        %v4508 = vperm.slane %v4079, 7
        %v4509 = vperm.slane %v4080, 0
        %v4510 = vperm.slane %v4080, 1
        %v4511 = vperm.slane %v4080, 2
        %v4512 = vperm.slane %v4080, 3
        %v4513 = vperm.slane %v4080, 4
        %v4514 = vperm.slane %v4080, 5
        %v4515 = vperm.slane %v4080, 6
        %v4516 = vperm.slane %v4080, 7
        %v4517 = vperm.slane %v4081, 0
        %v4518 = vperm.slane %v4081, 1
        %v4519 = vperm.slane %v4081, 2
        %v4520 = vperm.slane %v4081, 3
        %v4521 = vperm.slane %v4081, 4
        %v4522 = vperm.slane %v4081, 5
        %v4523 = vperm.slane %v4081, 6
        %v4524 = vperm.slane %v4081, 7
        %v4525 = vperm.slane %v4082, 0
        %v4526 = vperm.slane %v4082, 1
        %v4527 = vperm.slane %v4082, 2
        %v4528 = vperm.slane %v4082, 3
        %v4529 = vperm.slane %v4082, 4
        %v4530 = vperm.slane %v4082, 5
        %v4531 = vperm.slane %v4082, 6
        %v4532 = vperm.slane %v4082, 7
        %v4533 = vperm.slane %v4083, 0
        %v4534 = vperm.slane %v4083, 1
        %v4535 = vperm.slane %v4083, 2
        %v4536 = vperm.slane %v4083, 3
        %v4537 = vperm.slane %v4083, 4
        %v4538 = vperm.slane %v4083, 5
        %v4539 = vperm.slane %v4083, 6
        %v4540 = vperm.slane %v4083, 7
        %v4541 = vperm.slane %v4084, 0
        %v4542 = vperm.slane %v4084, 1
        %v4543 = vperm.slane %v4084, 2
        %v4544 = vperm.slane %v4084, 3
        %v4545 = vperm.slane %v4084, 4
        %v4546 = vperm.slane %v4084, 5
        %v4547 = vperm.slane %v4084, 6
        %v4548 = vperm.slane %v4084, 7
        %v4549 = vperm.slane %v4085, 0
        %v4550 = vperm.slane %v4085, 1
        %v4551 = vperm.slane %v4085, 2
        %v4552 = vperm.slane %v4085, 3
        %v4553 = vperm.slane %v4085, 4
        %v4554 = vperm.slane %v4085, 5
        %v4555 = vperm.slane %v4085, 6
        %v4556 = vperm.slane %v4085, 7
        %v4557 = vperm.slane %v4086, 0
        %v4558 = vperm.slane %v4086, 1
        %v4559 = vperm.slane %v4086, 2
        %v4560 = vperm.slane %v4086, 3
        %v4561 = vperm.slane %v4086, 4
        %v4562 = vperm.slane %v4086, 5
        %v4563 = vperm.slane %v4086, 6
        %v4564 = vperm.slane %v4086, 7
        %v4565 = vperm.slane %v4087, 0
        %v4566 = vperm.slane %v4087, 1
        %v4567 = vperm.slane %v4087, 2
        %v4568 = vperm.slane %v4087, 3
        %v4569 = vperm.slane %v4087, 4
        %v4570 = vperm.slane %v4087, 5
        %v4571 = vperm.slane %v4087, 6
        %v4572 = vperm.slane %v4087, 7
        %v4573 = vperm.slane %v4088, 0
        %v4574 = vperm.slane %v4088, 1
        %v4575 = vperm.slane %v4088, 2
        %v4576 = vperm.slane %v4088, 3
        %v4577 = vperm.slane %v4088, 4
        %v4578 = vperm.slane %v4088, 5
        %v4579 = vperm.slane %v4088, 6
        %v4580 = vperm.slane %v4088, 7
        %v4581 = vperm.slane %v4089, 0
        %v4582 = vperm.slane %v4089, 1
        %v4583 = vperm.slane %v4089, 2
        %v4584 = vperm.slane %v4089, 3
        %v4585 = vperm.slane %v4089, 4
        %v4586 = vperm.slane %v4089, 5
        %v4587 = vperm.slane %v4089, 6
        %v4588 = vperm.slane %v4089, 7
        %v4589 = vperm.slane %v4090, 0
        %v4590 = vperm.slane %v4090, 1
        %v4591 = vperm.slane %v4090, 2
        %v4592 = vperm.slane %v4090, 3
        %v4593 = vperm.slane %v4090, 4
        %v4594 = vperm.slane %v4090, 5
        %v4595 = vperm.slane %v4090, 6
        %v4596 = vperm.slane %v4090, 7
        %v4597 = vperm.slane %v4091, 0
        %v4598 = vperm.slane %v4091, 1
        %v4599 = vperm.slane %v4091, 2
        %v4600 = vperm.slane %v4091, 3
        %v4601 = vperm.slane %v4091, 4
        %v4602 = vperm.slane %v4091, 5
        %v4603 = vperm.slane %v4091, 6
        %v4604 = vperm.slane %v4091, 7
        %v4605 = vperm.slane %v4092, 0
        %v4606 = vperm.slane %v4092, 1
        %v4607 = vperm.slane %v4092, 2
        %v4608 = vperm.slane %v4092, 3
        %v4609 = vperm.slane %v4092, 4
        %v4610 = vperm.slane %v4092, 5
        %v4611 = vperm.slane %v4092, 6
        %v4612 = vperm.slane %v4092, 7
        %v4613 = vperm.slane %v4093, 0
        %v4614 = vperm.slane %v4093, 1
        %v4615 = vperm.slane %v4093, 2
        %v4616 = vperm.slane %v4093, 3
        %v4617 = vperm.slane %v4093, 4
        %v4618 = vperm.slane %v4093, 5
        %v4619 = vperm.slane %v4093, 6
        %v4620 = vperm.slane %v4093, 7
        %v4621 = vperm.slane %v4094, 0
        %v4622 = vperm.slane %v4094, 1
        %v4623 = vperm.slane %v4094, 2
        %v4624 = vperm.slane %v4094, 3
        %v4625 = vperm.slane %v4094, 4
        %v4626 = vperm.slane %v4094, 5
        %v4627 = vperm.slane %v4094, 6
        %v4628 = vperm.slane %v4094, 7
        %v4629 = vperm.slane %v4095, 0
        %v4630 = vperm.slane %v4095, 1
        %v4631 = vperm.slane %v4095, 2
        %v4632 = vperm.slane %v4095, 3
        %v4633 = vperm.slane %v4095, 4
        %v4634 = vperm.slane %v4095, 5
        %v4635 = vperm.slane %v4095, 6
        %v4636 = vperm.slane %v4095, 7
        %v4637 = vperm.slane %v4096, 0
        %v4638 = vperm.slane %v4096, 1
        %v4639 = vperm.slane %v4096, 2
        %v4640 = vperm.slane %v4096, 3
        %v4641 = vperm.slane %v4096, 4
        %v4642 = vperm.slane %v4096, 5
        %v4643 = vperm.slane %v4096, 6
        %v4644 = vperm.slane %v4096, 7
        %v4645 = vperm.slane %v4097, 0
        %v4646 = vperm.slane %v4097, 1
        %v4647 = vperm.slane %v4097, 2
        %v4648 = vperm.slane %v4097, 3
        %v4649 = vperm.slane %v4097, 4
        %v4650 = vperm.slane %v4097, 5
        %v4651 = vperm.slane %v4097, 6
        %v4652 = vperm.slane %v4097, 7
        %v4653 = vperm.slane %v4098, 0
        %v4654 = vperm.slane %v4098, 1
        %v4655 = vperm.slane %v4098, 2
        %v4656 = vperm.slane %v4098, 3
        %v4657 = vperm.slane %v4098, 4
        %v4658 = vperm.slane %v4098, 5
        %v4659 = vperm.slane %v4098, 6
        %v4660 = vperm.slane %v4098, 7
        %v4661 = vperm.slane %v4099, 0
        %v4662 = vperm.slane %v4099, 1
        %v4663 = vperm.slane %v4099, 2
        %v4664 = vperm.slane %v4099, 3
        %v4665 = vperm.slane %v4099, 4
        %v4666 = vperm.slane %v4099, 5
        %v4667 = vperm.slane %v4099, 6
        %v4668 = vperm.slane %v4099, 7
        %v4669 = vperm.slane %v4100, 0
        %v4670 = vperm.slane %v4100, 1
        %v4671 = vperm.slane %v4100, 2
        %v4672 = vperm.slane %v4100, 3
        %v4673 = vperm.slane %v4100, 4
        %v4674 = vperm.slane %v4100, 5
        %v4675 = vperm.slane %v4100, 6
        %v4676 = vperm.slane %v4100, 7
        %4677 = vst [vmem:[#allocation1] ss:$9 sm:$0xff] %v4165
        %s4678 = scalar_lea.vmem [#allocation1], 1
        %4679 = vst [vmem:[%s4678] ss:$9 sm:$0xff] %v4166
        %s4680 = scalar_lea.vmem [#allocation1], 2
        %4681 = vst [vmem:[%s4680] ss:$9 sm:$0xff] %v4167
        %s4682 = scalar_lea.vmem [#allocation1], 3
        %4683 = vst [vmem:[%s4682] ss:$9 sm:$0xff] %v4168
        %s4684 = scalar_lea.vmem [#allocation1], 4
        %4685 = vst [vmem:[%s4684] ss:$9 sm:$0xff] %v4169
        %s4686 = scalar_lea.vmem [#allocation1], 5
        %4687 = vst [vmem:[%s4686] ss:$9 sm:$0xff] %v4170
        %s4688 = scalar_lea.vmem [#allocation1], 6
        %4689 = vst [vmem:[%s4688] ss:$9 sm:$0xff] %v4171
        %s4690 = scalar_lea.vmem [#allocation1], 7
        %4691 = vst [vmem:[%s4690] ss:$9 sm:$0xff] %v4172
        %v4692 = vld [vmem:[#allocation1] sm:$0xff]
        %4693 = vst [vmem:[#allocation1] ss:$9 sm:$0xff] %v4173
        %4694 = vst [vmem:[%s4678] ss:$9 sm:$0xff] %v4174
        %4695 = vst [vmem:[%s4680] ss:$9 sm:$0xff] %v4175
        %4696 = vst [vmem:[%s4682] ss:$9 sm:$0xff] %v4176
        %4697 = vst [vmem:[%s4684] ss:$9 sm:$0xff] %v4177
        %4698 = vst [vmem:[%s4686] ss:$9 sm:$0xff] %v4178
        %4699 = vst [vmem:[%s4688] ss:$9 sm:$0xff] %v4179
        %4700 = vst [vmem:[%s4690] ss:$9 sm:$0xff] %v4180
        %v4701 = vld [vmem:[#allocation1] sm:$0xff]
        %4702 = vst [vmem:[#allocation1] ss:$9 sm:$0xff] %v4181
        %4703 = vst [vmem:[%s4678] ss:$9 sm:$0xff] %v4182
        %4704 = vst [vmem:[%s4680] ss:$9 sm:$0xff] %v4183
        %4705 = vst [vmem:[%s4682] ss:$9 sm:$0xff] %v4184
        %4706 = vst [vmem:[%s4684] ss:$9 sm:$0xff] %v4185
        %4707 = vst [vmem:[%s4686] ss:$9 sm:$0xff] %v4186
        %4708 = vst [vmem:[%s4688] ss:$9 sm:$0xff] %v4187
        %4709 = vst [vmem:[%s4690] ss:$9 sm:$0xff] %v4188
        %v4710 = vld [vmem:[#allocation1] sm:$0xff]
        %4711 = vst [vmem:[#allocation1] ss:$9 sm:$0xff] %v4189
        %4712 = vst [vmem:[%s4678] ss:$9 sm:$0xff] %v4190
        %4713 = vst [vmem:[%s4680] ss:$9 sm:$0xff] %v4191
        %4714 = vst [vmem:[%s4682] ss:$9 sm:$0xff] %v4192
        %4715 = vst [vmem:[%s4684] ss:$9 sm:$0xff] %v4193
        %4716 = vst [vmem:[%s4686] ss:$9 sm:$0xff] %v4194
        %4717 = vst [vmem:[%s4688] ss:$9 sm:$0xff] %v4195
        %4718 = vst [vmem:[%s4690] ss:$9 sm:$0xff] %v4196
        %v4719 = vld [vmem:[#allocation1] sm:$0xff]
        %4720 = vst [vmem:[#allocation1] ss:$9 sm:$0xff] %v4197
        %4721 = vst [vmem:[%s4678] ss:$9 sm:$0xff] %v4198
        %4722 = vst [vmem:[%s4680] ss:$9 sm:$0xff] %v4199
        %4723 = vst [vmem:[%s4682] ss:$9 sm:$0xff] %v4200
        %4724 = vst [vmem:[%s4684] ss:$9 sm:$0xff] %v4201
        %4725 = vst [vmem:[%s4686] ss:$9 sm:$0xff] %v4202
        %4726 = vst [vmem:[%s4688] ss:$9 sm:$0xff] %v4203
        %4727 = vst [vmem:[%s4690] ss:$9 sm:$0xff] %v4204
        %v4728 = vld [vmem:[#allocation1] sm:$0xff]
        %4729 = vst [vmem:[#allocation1] ss:$9 sm:$0xff] %v4205
        %4730 = vst [vmem:[%s4678] ss:$9 sm:$0xff] %v4206
        %4731 = vst [vmem:[%s4680] ss:$9 sm:$0xff] %v4207
        %4732 = vst [vmem:[%s4682] ss:$9 sm:$0xff] %v4208
        %4733 = vst [vmem:[%s4684] ss:$9 sm:$0xff] %v4209
        %4734 = vst [vmem:[%s4686] ss:$9 sm:$0xff] %v4210
        %4735 = vst [vmem:[%s4688] ss:$9 sm:$0xff] %v4211
        %4736 = vst [vmem:[%s4690] ss:$9 sm:$0xff] %v4212
        %v4737 = vld [vmem:[#allocation1] sm:$0xff]
        %4738 = vst [vmem:[#allocation1] ss:$9 sm:$0xff] %v4213
        %4739 = vst [vmem:[%s4678] ss:$9 sm:$0xff] %v4214
        %4740 = vst [vmem:[%s4680] ss:$9 sm:$0xff] %v4215
        %4741 = vst [vmem:[%s4682] ss:$9 sm:$0xff] %v4216
        %4742 = vst [vmem:[%s4684] ss:$9 sm:$0xff] %v4217
        %4743 = vst [vmem:[%s4686] ss:$9 sm:$0xff] %v4218
        %4744 = vst [vmem:[%s4688] ss:$9 sm:$0xff] %v4219
        %4745 = vst [vmem:[%s4690] ss:$9 sm:$0xff] %v4220
        %v4746 = vld [vmem:[#allocation1] sm:$0xff]
        %4747 = vst [vmem:[#allocation1] ss:$9 sm:$0xff] %v4221
        %4748 = vst [vmem:[%s4678] ss:$9 sm:$0xff] %v4222
        %4749 = vst [vmem:[%s4680] ss:$9 sm:$0xff] %v4223
        %4750 = vst [vmem:[%s4682] ss:$9 sm:$0xff] %v4224
        %4751 = vst [vmem:[%s4684] ss:$9 sm:$0xff] %v4225
        %4752 = vst [vmem:[%s4686] ss:$9 sm:$0xff] %v4226
        %4753 = vst [vmem:[%s4688] ss:$9 sm:$0xff] %v4227
        %4754 = vst [vmem:[%s4690] ss:$9 sm:$0xff] %v4228
        %v4755 = vld [vmem:[#allocation1] sm:$0xff]
        %4756 = vst [vmem:[#allocation1] ss:$9 sm:$0xff] %v4229
        %4757 = vst [vmem:[%s4678] ss:$9 sm:$0xff] %v4230
        %4758 = vst [vmem:[%s4680] ss:$9 sm:$0xff] %v4231
        %4759 = vst [vmem:[%s4682] ss:$9 sm:$0xff] %v4232
        %4760 = vst [vmem:[%s4684] ss:$9 sm:$0xff] %v4233
        %4761 = vst [vmem:[%s4686] ss:$9 sm:$0xff] %v4234
        %4762 = vst [vmem:[%s4688] ss:$9 sm:$0xff] %v4235
        %4763 = vst [vmem:[%s4690] ss:$9 sm:$0xff] %v4236
        %v4764 = vld [vmem:[#allocation1] sm:$0xff]
        %4765 = vst [vmem:[#allocation1] ss:$9 sm:$0xff] %v4237
        %4766 = vst [vmem:[%s4678] ss:$9 sm:$0xff] %v4238
        %4767 = vst [vmem:[%s4680] ss:$9 sm:$0xff] %v4239
        %4768 = vst [vmem:[%s4682] ss:$9 sm:$0xff] %v4240
        %4769 = vst [vmem:[%s4684] ss:$9 sm:$0xff] %v4241
        %4770 = vst [vmem:[%s4686] ss:$9 sm:$0xff] %v4242
        %4771 = vst [vmem:[%s4688] ss:$9 sm:$0xff] %v4243
        %4772 = vst [vmem:[%s4690] ss:$9 sm:$0xff] %v4244
        %v4773 = vld [vmem:[#allocation1] sm:$0xff]
        %4774 = vst [vmem:[#allocation1] ss:$9 sm:$0xff] %v4245
        %4775 = vst [vmem:[%s4678] ss:$9 sm:$0xff] %v4246
        %4776 = vst [vmem:[%s4680] ss:$9 sm:$0xff] %v4247
        %4777 = vst [vmem:[%s4682] ss:$9 sm:$0xff] %v4248
        %4778 = vst [vmem:[%s4684] ss:$9 sm:$0xff] %v4249
        %4779 = vst [vmem:[%s4686] ss:$9 sm:$0xff] %v4250
        %4780 = vst [vmem:[%s4688] ss:$9 sm:$0xff] %v4251
        %4781 = vst [vmem:[%s4690] ss:$9 sm:$0xff] %v4252
        %v4782 = vld [vmem:[#allocation1] sm:$0xff]
        %4783 = vst [vmem:[#allocation1] ss:$9 sm:$0xff] %v4253
        %4784 = vst [vmem:[%s4678] ss:$9 sm:$0xff] %v4254
        %4785 = vst [vmem:[%s4680] ss:$9 sm:$0xff] %v4255
        %4786 = vst [vmem:[%s4682] ss:$9 sm:$0xff] %v4256
        %4787 = vst [vmem:[%s4684] ss:$9 sm:$0xff] %v4257
        %4788 = vst [vmem:[%s4686] ss:$9 sm:$0xff] %v4258
        %4789 = vst [vmem:[%s4688] ss:$9 sm:$0xff] %v4259
        %4790 = vst [vmem:[%s4690] ss:$9 sm:$0xff] %v4260
        %v4791 = vld [vmem:[#allocation1] sm:$0xff]
        %4792 = vst [vmem:[#allocation1] ss:$9 sm:$0xff] %v4261
        %4793 = vst [vmem:[%s4678] ss:$9 sm:$0xff] %v4262
        %4794 = vst [vmem:[%s4680] ss:$9 sm:$0xff] %v4263
        %4795 = vst [vmem:[%s4682] ss:$9 sm:$0xff] %v4264
        %4796 = vst [vmem:[%s4684] ss:$9 sm:$0xff] %v4265
        %4797 = vst [vmem:[%s4686] ss:$9 sm:$0xff] %v4266
        %4798 = vst [vmem:[%s4688] ss:$9 sm:$0xff] %v4267
        %4799 = vst [vmem:[%s4690] ss:$9 sm:$0xff] %v4268
        %v4800 = vld [vmem:[#allocation1] sm:$0xff]
        %4801 = vst [vmem:[#allocation1] ss:$9 sm:$0xff] %v4269
        %4802 = vst [vmem:[%s4678] ss:$9 sm:$0xff] %v4270
        %4803 = vst [vmem:[%s4680] ss:$9 sm:$0xff] %v4271
        %4804 = vst [vmem:[%s4682] ss:$9 sm:$0xff] %v4272
        %4805 = vst [vmem:[%s4684] ss:$9 sm:$0xff] %v4273
        %4806 = vst [vmem:[%s4686] ss:$9 sm:$0xff] %v4274
        %4807 = vst [vmem:[%s4688] ss:$9 sm:$0xff] %v4275
        %4808 = vst [vmem:[%s4690] ss:$9 sm:$0xff] %v4276
        %v4809 = vld [vmem:[#allocation1] sm:$0xff]
        %4810 = vst [vmem:[#allocation1] ss:$9 sm:$0xff] %v4277
        %4811 = vst [vmem:[%s4678] ss:$9 sm:$0xff] %v4278
        %4812 = vst [vmem:[%s4680] ss:$9 sm:$0xff] %v4279
        %4813 = vst [vmem:[%s4682] ss:$9 sm:$0xff] %v4280
        %4814 = vst [vmem:[%s4684] ss:$9 sm:$0xff] %v4281
        %4815 = vst [vmem:[%s4686] ss:$9 sm:$0xff] %v4282
        %4816 = vst [vmem:[%s4688] ss:$9 sm:$0xff] %v4283
        %4817 = vst [vmem:[%s4690] ss:$9 sm:$0xff] %v4284
        %v4818 = vld [vmem:[#allocation1] sm:$0xff]
        %4819 = vst [vmem:[#allocation1] ss:$9 sm:$0xff] %v4285
        %4820 = vst [vmem:[%s4678] ss:$9 sm:$0xff] %v4286
        %4821 = vst [vmem:[%s4680] ss:$9 sm:$0xff] %v4287
        %4822 = vst [vmem:[%s4682] ss:$9 sm:$0xff] %v4288
        %4823 = vst [vmem:[%s4684] ss:$9 sm:$0xff] %v4289
        %4824 = vst [vmem:[%s4686] ss:$9 sm:$0xff] %v4290
        %4825 = vst [vmem:[%s4688] ss:$9 sm:$0xff] %v4291
        %4826 = vst [vmem:[%s4690] ss:$9 sm:$0xff] %v4292
        %v4827 = vld [vmem:[#allocation1] sm:$0xff]
        %4828 = vst [vmem:[#allocation1] ss:$9 sm:$0xff] %v4293
        %4829 = vst [vmem:[%s4678] ss:$9 sm:$0xff] %v4294
        %4830 = vst [vmem:[%s4680] ss:$9 sm:$0xff] %v4295
        %4831 = vst [vmem:[%s4682] ss:$9 sm:$0xff] %v4296
        %4832 = vst [vmem:[%s4684] ss:$9 sm:$0xff] %v4297
        %4833 = vst [vmem:[%s4686] ss:$9 sm:$0xff] %v4298
        %4834 = vst [vmem:[%s4688] ss:$9 sm:$0xff] %v4299
        %4835 = vst [vmem:[%s4690] ss:$9 sm:$0xff] %v4300
        %v4836 = vld [vmem:[#allocation1] sm:$0xff]
        %4837 = vst [vmem:[#allocation1] ss:$9 sm:$0xff] %v4301
        %4838 = vst [vmem:[%s4678] ss:$9 sm:$0xff] %v4302
        %4839 = vst [vmem:[%s4680] ss:$9 sm:$0xff] %v4303
        %4840 = vst [vmem:[%s4682] ss:$9 sm:$0xff] %v4304
        %4841 = vst [vmem:[%s4684] ss:$9 sm:$0xff] %v4305
        %4842 = vst [vmem:[%s4686] ss:$9 sm:$0xff] %v4306
        %4843 = vst [vmem:[%s4688] ss:$9 sm:$0xff] %v4307
        %4844 = vst [vmem:[%s4690] ss:$9 sm:$0xff] %v4308
        %v4845 = vld [vmem:[#allocation1] sm:$0xff]
        %4846 = vst [vmem:[#allocation1] ss:$9 sm:$0xff] %v4309
        %4847 = vst [vmem:[%s4678] ss:$9 sm:$0xff] %v4310
        %4848 = vst [vmem:[%s4680] ss:$9 sm:$0xff] %v4311
        %4849 = vst [vmem:[%s4682] ss:$9 sm:$0xff] %v4312
        %4850 = vst [vmem:[%s4684] ss:$9 sm:$0xff] %v4313
        %4851 = vst [vmem:[%s4686] ss:$9 sm:$0xff] %v4314
        %4852 = vst [vmem:[%s4688] ss:$9 sm:$0xff] %v4315
        %4853 = vst [vmem:[%s4690] ss:$9 sm:$0xff] %v4316
        %v4854 = vld [vmem:[#allocation1] sm:$0xff]
        %4855 = vst [vmem:[#allocation1] ss:$9 sm:$0xff] %v4317
        %4856 = vst [vmem:[%s4678] ss:$9 sm:$0xff] %v4318
        %4857 = vst [vmem:[%s4680] ss:$9 sm:$0xff] %v4319
        %4858 = vst [vmem:[%s4682] ss:$9 sm:$0xff] %v4320
        %4859 = vst [vmem:[%s4684] ss:$9 sm:$0xff] %v4321
        %4860 = vst [vmem:[%s4686] ss:$9 sm:$0xff] %v4322
        %4861 = vst [vmem:[%s4688] ss:$9 sm:$0xff] %v4323
        %4862 = vst [vmem:[%s4690] ss:$9 sm:$0xff] %v4324
        %v4863 = vld [vmem:[#allocation1] sm:$0xff]
        %4864 = vst [vmem:[#allocation1] ss:$9 sm:$0xff] %v4325
        %4865 = vst [vmem:[%s4678] ss:$9 sm:$0xff] %v4326
        %4866 = vst [vmem:[%s4680] ss:$9 sm:$0xff] %v4327
        %4867 = vst [vmem:[%s4682] ss:$9 sm:$0xff] %v4328
        %4868 = vst [vmem:[%s4684] ss:$9 sm:$0xff] %v4329
        %4869 = vst [vmem:[%s4686] ss:$9 sm:$0xff] %v4330
        %4870 = vst [vmem:[%s4688] ss:$9 sm:$0xff] %v4331
        %4871 = vst [vmem:[%s4690] ss:$9 sm:$0xff] %v4332
        %v4872 = vld [vmem:[#allocation1] sm:$0xff]
        %4873 = vst [vmem:[#allocation1] ss:$9 sm:$0xff] %v4333
        %4874 = vst [vmem:[%s4678] ss:$9 sm:$0xff] %v4334
        %4875 = vst [vmem:[%s4680] ss:$9 sm:$0xff] %v4335
        %4876 = vst [vmem:[%s4682] ss:$9 sm:$0xff] %v4336
        %4877 = vst [vmem:[%s4684] ss:$9 sm:$0xff] %v4337
        %4878 = vst [vmem:[%s4686] ss:$9 sm:$0xff] %v4338
        %4879 = vst [vmem:[%s4688] ss:$9 sm:$0xff] %v4339
        %4880 = vst [vmem:[%s4690] ss:$9 sm:$0xff] %v4340
        %v4881 = vld [vmem:[#allocation1] sm:$0xff]
        %4882 = vst [vmem:[#allocation1] ss:$9 sm:$0xff] %v4341
        %4883 = vst [vmem:[%s4678] ss:$9 sm:$0xff] %v4342
        %4884 = vst [vmem:[%s4680] ss:$9 sm:$0xff] %v4343
        %4885 = vst [vmem:[%s4682] ss:$9 sm:$0xff] %v4344
        %4886 = vst [vmem:[%s4684] ss:$9 sm:$0xff] %v4345
        %4887 = vst [vmem:[%s4686] ss:$9 sm:$0xff] %v4346
        %4888 = vst [vmem:[%s4688] ss:$9 sm:$0xff] %v4347
        %4889 = vst [vmem:[%s4690] ss:$9 sm:$0xff] %v4348
        %v4890 = vld [vmem:[#allocation1] sm:$0xff]
        %4891 = vst [vmem:[#allocation1] ss:$9 sm:$0xff] %v4349
        %4892 = vst [vmem:[%s4678] ss:$9 sm:$0xff] %v4350
        %4893 = vst [vmem:[%s4680] ss:$9 sm:$0xff] %v4351
        %4894 = vst [vmem:[%s4682] ss:$9 sm:$0xff] %v4352
        %4895 = vst [vmem:[%s4684] ss:$9 sm:$0xff] %v4353
        %4896 = vst [vmem:[%s4686] ss:$9 sm:$0xff] %v4354
        %4897 = vst [vmem:[%s4688] ss:$9 sm:$0xff] %v4355
        %4898 = vst [vmem:[%s4690] ss:$9 sm:$0xff] %v4356
        %v4899 = vld [vmem:[#allocation1] sm:$0xff]
        %4900 = vst [vmem:[#allocation1] ss:$9 sm:$0xff] %v4357
        %4901 = vst [vmem:[%s4678] ss:$9 sm:$0xff] %v4358
        %4902 = vst [vmem:[%s4680] ss:$9 sm:$0xff] %v4359
        %4903 = vst [vmem:[%s4682] ss:$9 sm:$0xff] %v4360
        %4904 = vst [vmem:[%s4684] ss:$9 sm:$0xff] %v4361
        %4905 = vst [vmem:[%s4686] ss:$9 sm:$0xff] %v4362
        %4906 = vst [vmem:[%s4688] ss:$9 sm:$0xff] %v4363
        %4907 = vst [vmem:[%s4690] ss:$9 sm:$0xff] %v4364
        %v4908 = vld [vmem:[#allocation1] sm:$0xff]
        %4909 = vst [vmem:[#allocation1] ss:$9 sm:$0xff] %v4365
        %4910 = vst [vmem:[%s4678] ss:$9 sm:$0xff] %v4366
        %4911 = vst [vmem:[%s4680] ss:$9 sm:$0xff] %v4367
        %4912 = vst [vmem:[%s4682] ss:$9 sm:$0xff] %v4368
        %4913 = vst [vmem:[%s4684] ss:$9 sm:$0xff] %v4369
        %4914 = vst [vmem:[%s4686] ss:$9 sm:$0xff] %v4370
        %4915 = vst [vmem:[%s4688] ss:$9 sm:$0xff] %v4371
        %4916 = vst [vmem:[%s4690] ss:$9 sm:$0xff] %v4372
        %v4917 = vld [vmem:[#allocation1] sm:$0xff]
        %4918 = vst [vmem:[#allocation1] ss:$9 sm:$0xff] %v4373
        %4919 = vst [vmem:[%s4678] ss:$9 sm:$0xff] %v4374
        %4920 = vst [vmem:[%s4680] ss:$9 sm:$0xff] %v4375
        %4921 = vst [vmem:[%s4682] ss:$9 sm:$0xff] %v4376
        %4922 = vst [vmem:[%s4684] ss:$9 sm:$0xff] %v4377
        %4923 = vst [vmem:[%s4686] ss:$9 sm:$0xff] %v4378
        %4924 = vst [vmem:[%s4688] ss:$9 sm:$0xff] %v4379
        %4925 = vst [vmem:[%s4690] ss:$9 sm:$0xff] %v4380
        %v4926 = vld [vmem:[#allocation1] sm:$0xff]
        %4927 = vst [vmem:[#allocation1] ss:$9 sm:$0xff] %v4381
        %4928 = vst [vmem:[%s4678] ss:$9 sm:$0xff] %v4382
        %4929 = vst [vmem:[%s4680] ss:$9 sm:$0xff] %v4383
        %4930 = vst [vmem:[%s4682] ss:$9 sm:$0xff] %v4384
        %4931 = vst [vmem:[%s4684] ss:$9 sm:$0xff] %v4385
        %4932 = vst [vmem:[%s4686] ss:$9 sm:$0xff] %v4386
        %4933 = vst [vmem:[%s4688] ss:$9 sm:$0xff] %v4387
        %4934 = vst [vmem:[%s4690] ss:$9 sm:$0xff] %v4388
        %v4935 = vld [vmem:[#allocation1] sm:$0xff]
        %4936 = vst [vmem:[#allocation1] ss:$9 sm:$0xff] %v4389
        %4937 = vst [vmem:[%s4678] ss:$9 sm:$0xff] %v4390
        %4938 = vst [vmem:[%s4680] ss:$9 sm:$0xff] %v4391
        %4939 = vst [vmem:[%s4682] ss:$9 sm:$0xff] %v4392
        %4940 = vst [vmem:[%s4684] ss:$9 sm:$0xff] %v4393
        %4941 = vst [vmem:[%s4686] ss:$9 sm:$0xff] %v4394
        %4942 = vst [vmem:[%s4688] ss:$9 sm:$0xff] %v4395
        %4943 = vst [vmem:[%s4690] ss:$9 sm:$0xff] %v4396
        %v4944 = vld [vmem:[#allocation1] sm:$0xff]
        %4945 = vst [vmem:[#allocation1] ss:$9 sm:$0xff] %v4397
        %4946 = vst [vmem:[%s4678] ss:$9 sm:$0xff] %v4398
        %4947 = vst [vmem:[%s4680] ss:$9 sm:$0xff] %v4399
        %4948 = vst [vmem:[%s4682] ss:$9 sm:$0xff] %v4400
        %4949 = vst [vmem:[%s4684] ss:$9 sm:$0xff] %v4401
        %4950 = vst [vmem:[%s4686] ss:$9 sm:$0xff] %v4402
        %4951 = vst [vmem:[%s4688] ss:$9 sm:$0xff] %v4403
        %4952 = vst [vmem:[%s4690] ss:$9 sm:$0xff] %v4404
        %v4953 = vld [vmem:[#allocation1] sm:$0xff]
        %4954 = vst [vmem:[#allocation1] ss:$9 sm:$0xff] %v4405
        %4955 = vst [vmem:[%s4678] ss:$9 sm:$0xff] %v4406
        %4956 = vst [vmem:[%s4680] ss:$9 sm:$0xff] %v4407
        %4957 = vst [vmem:[%s4682] ss:$9 sm:$0xff] %v4408
        %4958 = vst [vmem:[%s4684] ss:$9 sm:$0xff] %v4409
        %4959 = vst [vmem:[%s4686] ss:$9 sm:$0xff] %v4410
        %4960 = vst [vmem:[%s4688] ss:$9 sm:$0xff] %v4411
        %4961 = vst [vmem:[%s4690] ss:$9 sm:$0xff] %v4412
        %v4962 = vld [vmem:[#allocation1] sm:$0xff]
        %4963 = vst [vmem:[#allocation1] ss:$9 sm:$0xff] %v4413
        %4964 = vst [vmem:[%s4678] ss:$9 sm:$0xff] %v4414
        %4965 = vst [vmem:[%s4680] ss:$9 sm:$0xff] %v4415
        %4966 = vst [vmem:[%s4682] ss:$9 sm:$0xff] %v4416
        %4967 = vst [vmem:[%s4684] ss:$9 sm:$0xff] %v4417
        %4968 = vst [vmem:[%s4686] ss:$9 sm:$0xff] %v4418
        %4969 = vst [vmem:[%s4688] ss:$9 sm:$0xff] %v4419
        %4970 = vst [vmem:[%s4690] ss:$9 sm:$0xff] %v4420
        %v4971 = vld [vmem:[#allocation1] sm:$0xff]
        %4972 = vst [vmem:[#allocation1] ss:$9 sm:$0xff] %v4421
        %4973 = vst [vmem:[%s4678] ss:$9 sm:$0xff] %v4422
        %4974 = vst [vmem:[%s4680] ss:$9 sm:$0xff] %v4423
        %4975 = vst [vmem:[%s4682] ss:$9 sm:$0xff] %v4424
        %4976 = vst [vmem:[%s4684] ss:$9 sm:$0xff] %v4425
        %4977 = vst [vmem:[%s4686] ss:$9 sm:$0xff] %v4426
        %4978 = vst [vmem:[%s4688] ss:$9 sm:$0xff] %v4427
        %4979 = vst [vmem:[%s4690] ss:$9 sm:$0xff] %v4428
        %v4980 = vld [vmem:[#allocation1] sm:$0xff]
        %4981 = vst [vmem:[#allocation1] ss:$9 sm:$0xff] %v4429
        %4982 = vst [vmem:[%s4678] ss:$9 sm:$0xff] %v4430
        %4983 = vst [vmem:[%s4680] ss:$9 sm:$0xff] %v4431
        %4984 = vst [vmem:[%s4682] ss:$9 sm:$0xff] %v4432
        %4985 = vst [vmem:[%s4684] ss:$9 sm:$0xff] %v4433
        %4986 = vst [vmem:[%s4686] ss:$9 sm:$0xff] %v4434
        %4987 = vst [vmem:[%s4688] ss:$9 sm:$0xff] %v4435
        %4988 = vst [vmem:[%s4690] ss:$9 sm:$0xff] %v4436
        %v4989 = vld [vmem:[#allocation1] sm:$0xff]
        %4990 = vst [vmem:[#allocation1] ss:$9 sm:$0xff] %v4437
        %4991 = vst [vmem:[%s4678] ss:$9 sm:$0xff] %v4438
        %4992 = vst [vmem:[%s4680] ss:$9 sm:$0xff] %v4439
        %4993 = vst [vmem:[%s4682] ss:$9 sm:$0xff] %v4440
        %4994 = vst [vmem:[%s4684] ss:$9 sm:$0xff] %v4441
        %4995 = vst [vmem:[%s4686] ss:$9 sm:$0xff] %v4442
        %4996 = vst [vmem:[%s4688] ss:$9 sm:$0xff] %v4443
        %4997 = vst [vmem:[%s4690] ss:$9 sm:$0xff] %v4444
        %v4998 = vld [vmem:[#allocation1] sm:$0xff]
        %4999 = vst [vmem:[#allocation1] ss:$9 sm:$0xff] %v4445
        %5000 = vst [vmem:[%s4678] ss:$9 sm:$0xff] %v4446
        %5001 = vst [vmem:[%s4680] ss:$9 sm:$0xff] %v4447
        %5002 = vst [vmem:[%s4682] ss:$9 sm:$0xff] %v4448
        %5003 = vst [vmem:[%s4684] ss:$9 sm:$0xff] %v4449
        %5004 = vst [vmem:[%s4686] ss:$9 sm:$0xff] %v4450
        %5005 = vst [vmem:[%s4688] ss:$9 sm:$0xff] %v4451
        %5006 = vst [vmem:[%s4690] ss:$9 sm:$0xff] %v4452
        %v5007 = vld [vmem:[#allocation1] sm:$0xff]
        %5008 = vst [vmem:[#allocation1] ss:$9 sm:$0xff] %v4453
        %5009 = vst [vmem:[%s4678] ss:$9 sm:$0xff] %v4454
        %5010 = vst [vmem:[%s4680] ss:$9 sm:$0xff] %v4455
        %5011 = vst [vmem:[%s4682] ss:$9 sm:$0xff] %v4456
        %5012 = vst [vmem:[%s4684] ss:$9 sm:$0xff] %v4457
        %5013 = vst [vmem:[%s4686] ss:$9 sm:$0xff] %v4458
        %5014 = vst [vmem:[%s4688] ss:$9 sm:$0xff] %v4459
        %5015 = vst [vmem:[%s4690] ss:$9 sm:$0xff] %v4460
        %v5016 = vld [vmem:[#allocation1] sm:$0xff]
        %5017 = vst [vmem:[#allocation1] ss:$9 sm:$0xff] %v4461
        %5018 = vst [vmem:[%s4678] ss:$9 sm:$0xff] %v4462
        %5019 = vst [vmem:[%s4680] ss:$9 sm:$0xff] %v4463
        %5020 = vst [vmem:[%s4682] ss:$9 sm:$0xff] %v4464
        %5021 = vst [vmem:[%s4684] ss:$9 sm:$0xff] %v4465
        %5022 = vst [vmem:[%s4686] ss:$9 sm:$0xff] %v4466
        %5023 = vst [vmem:[%s4688] ss:$9 sm:$0xff] %v4467
        %5024 = vst [vmem:[%s4690] ss:$9 sm:$0xff] %v4468
        %v5025 = vld [vmem:[#allocation1] sm:$0xff]
        %5026 = vst [vmem:[#allocation1] ss:$9 sm:$0xff] %v4469
        %5027 = vst [vmem:[%s4678] ss:$9 sm:$0xff] %v4470
        %5028 = vst [vmem:[%s4680] ss:$9 sm:$0xff] %v4471
        %5029 = vst [vmem:[%s4682] ss:$9 sm:$0xff] %v4472
        %5030 = vst [vmem:[%s4684] ss:$9 sm:$0xff] %v4473
        %5031 = vst [vmem:[%s4686] ss:$9 sm:$0xff] %v4474
        %5032 = vst [vmem:[%s4688] ss:$9 sm:$0xff] %v4475
        %5033 = vst [vmem:[%s4690] ss:$9 sm:$0xff] %v4476
        %v5034 = vld [vmem:[#allocation1] sm:$0xff]
        %5035 = vst [vmem:[#allocation1] ss:$9 sm:$0xff] %v4477
        %5036 = vst [vmem:[%s4678] ss:$9 sm:$0xff] %v4478
        %5037 = vst [vmem:[%s4680] ss:$9 sm:$0xff] %v4479
        %5038 = vst [vmem:[%s4682] ss:$9 sm:$0xff] %v4480
        %5039 = vst [vmem:[%s4684] ss:$9 sm:$0xff] %v4481
        %5040 = vst [vmem:[%s4686] ss:$9 sm:$0xff] %v4482
        %5041 = vst [vmem:[%s4688] ss:$9 sm:$0xff] %v4483
        %5042 = vst [vmem:[%s4690] ss:$9 sm:$0xff] %v4484
        %v5043 = vld [vmem:[#allocation1] sm:$0xff]
        %5044 = vst [vmem:[#allocation1] ss:$9 sm:$0xff] %v4485
        %5045 = vst [vmem:[%s4678] ss:$9 sm:$0xff] %v4486
        %5046 = vst [vmem:[%s4680] ss:$9 sm:$0xff] %v4487
        %5047 = vst [vmem:[%s4682] ss:$9 sm:$0xff] %v4488
        %5048 = vst [vmem:[%s4684] ss:$9 sm:$0xff] %v4489
        %5049 = vst [vmem:[%s4686] ss:$9 sm:$0xff] %v4490
        %5050 = vst [vmem:[%s4688] ss:$9 sm:$0xff] %v4491
        %5051 = vst [vmem:[%s4690] ss:$9 sm:$0xff] %v4492
        %v5052 = vld [vmem:[#allocation1] sm:$0xff]
        %5053 = vst [vmem:[#allocation1] ss:$9 sm:$0xff] %v4493
        %5054 = vst [vmem:[%s4678] ss:$9 sm:$0xff] %v4494
        %5055 = vst [vmem:[%s4680] ss:$9 sm:$0xff] %v4495
        %5056 = vst [vmem:[%s4682] ss:$9 sm:$0xff] %v4496
        %5057 = vst [vmem:[%s4684] ss:$9 sm:$0xff] %v4497
        %5058 = vst [vmem:[%s4686] ss:$9 sm:$0xff] %v4498
        %5059 = vst [vmem:[%s4688] ss:$9 sm:$0xff] %v4499
        %5060 = vst [vmem:[%s4690] ss:$9 sm:$0xff] %v4500
        %v5061 = vld [vmem:[#allocation1] sm:$0xff]
        %5062 = vst [vmem:[#allocation1] ss:$9 sm:$0xff] %v4501
        %5063 = vst [vmem:[%s4678] ss:$9 sm:$0xff] %v4502
        %5064 = vst [vmem:[%s4680] ss:$9 sm:$0xff] %v4503
        %5065 = vst [vmem:[%s4682] ss:$9 sm:$0xff] %v4504
        %5066 = vst [vmem:[%s4684] ss:$9 sm:$0xff] %v4505
        %5067 = vst [vmem:[%s4686] ss:$9 sm:$0xff] %v4506
        %5068 = vst [vmem:[%s4688] ss:$9 sm:$0xff] %v4507
        %5069 = vst [vmem:[%s4690] ss:$9 sm:$0xff] %v4508
        %v5070 = vld [vmem:[#allocation1] sm:$0xff]
        %5071 = vst [vmem:[#allocation1] ss:$9 sm:$0xff] %v4509
        %5072 = vst [vmem:[%s4678] ss:$9 sm:$0xff] %v4510
        %5073 = vst [vmem:[%s4680] ss:$9 sm:$0xff] %v4511
        %5074 = vst [vmem:[%s4682] ss:$9 sm:$0xff] %v4512
        %5075 = vst [vmem:[%s4684] ss:$9 sm:$0xff] %v4513
        %5076 = vst [vmem:[%s4686] ss:$9 sm:$0xff] %v4514
        %5077 = vst [vmem:[%s4688] ss:$9 sm:$0xff] %v4515
        %5078 = vst [vmem:[%s4690] ss:$9 sm:$0xff] %v4516
        %v5079 = vld [vmem:[#allocation1] sm:$0xff]
        %5080 = vst [vmem:[#allocation1] ss:$9 sm:$0xff] %v4517
        %5081 = vst [vmem:[%s4678] ss:$9 sm:$0xff] %v4518
        %5082 = vst [vmem:[%s4680] ss:$9 sm:$0xff] %v4519
        %5083 = vst [vmem:[%s4682] ss:$9 sm:$0xff] %v4520
        %5084 = vst [vmem:[%s4684] ss:$9 sm:$0xff] %v4521
        %5085 = vst [vmem:[%s4686] ss:$9 sm:$0xff] %v4522
        %5086 = vst [vmem:[%s4688] ss:$9 sm:$0xff] %v4523
        %5087 = vst [vmem:[%s4690] ss:$9 sm:$0xff] %v4524
        %v5088 = vld [vmem:[#allocation1] sm:$0xff]
        %5089 = vst [vmem:[#allocation1] ss:$9 sm:$0xff] %v4525
        %5090 = vst [vmem:[%s4678] ss:$9 sm:$0xff] %v4526
        %5091 = vst [vmem:[%s4680] ss:$9 sm:$0xff] %v4527
        %5092 = vst [vmem:[%s4682] ss:$9 sm:$0xff] %v4528
        %5093 = vst [vmem:[%s4684] ss:$9 sm:$0xff] %v4529
        %5094 = vst [vmem:[%s4686] ss:$9 sm:$0xff] %v4530
        %5095 = vst [vmem:[%s4688] ss:$9 sm:$0xff] %v4531
        %5096 = vst [vmem:[%s4690] ss:$9 sm:$0xff] %v4532
        %v5097 = vld [vmem:[#allocation1] sm:$0xff]
        %5098 = vst [vmem:[#allocation1] ss:$9 sm:$0xff] %v4533
        %5099 = vst [vmem:[%s4678] ss:$9 sm:$0xff] %v4534
        %5100 = vst [vmem:[%s4680] ss:$9 sm:$0xff] %v4535
        %5101 = vst [vmem:[%s4682] ss:$9 sm:$0xff] %v4536
        %5102 = vst [vmem:[%s4684] ss:$9 sm:$0xff] %v4537
        %5103 = vst [vmem:[%s4686] ss:$9 sm:$0xff] %v4538
        %5104 = vst [vmem:[%s4688] ss:$9 sm:$0xff] %v4539
        %5105 = vst [vmem:[%s4690] ss:$9 sm:$0xff] %v4540
        %v5106 = vld [vmem:[#allocation1] sm:$0xff]
        %5107 = vst [vmem:[#allocation1] ss:$9 sm:$0xff] %v4541
        %5108 = vst [vmem:[%s4678] ss:$9 sm:$0xff] %v4542
        %5109 = vst [vmem:[%s4680] ss:$9 sm:$0xff] %v4543
        %5110 = vst [vmem:[%s4682] ss:$9 sm:$0xff] %v4544
        %5111 = vst [vmem:[%s4684] ss:$9 sm:$0xff] %v4545
        %5112 = vst [vmem:[%s4686] ss:$9 sm:$0xff] %v4546
        %5113 = vst [vmem:[%s4688] ss:$9 sm:$0xff] %v4547
        %5114 = vst [vmem:[%s4690] ss:$9 sm:$0xff] %v4548
        %v5115 = vld [vmem:[#allocation1] sm:$0xff]
        %5116 = vst [vmem:[#allocation1] ss:$9 sm:$0xff] %v4549
        %5117 = vst [vmem:[%s4678] ss:$9 sm:$0xff] %v4550
        %5118 = vst [vmem:[%s4680] ss:$9 sm:$0xff] %v4551
        %5119 = vst [vmem:[%s4682] ss:$9 sm:$0xff] %v4552
        %5120 = vst [vmem:[%s4684] ss:$9 sm:$0xff] %v4553
        %5121 = vst [vmem:[%s4686] ss:$9 sm:$0xff] %v4554
        %5122 = vst [vmem:[%s4688] ss:$9 sm:$0xff] %v4555
        %5123 = vst [vmem:[%s4690] ss:$9 sm:$0xff] %v4556
        %v5124 = vld [vmem:[#allocation1] sm:$0xff]
        %5125 = vst [vmem:[#allocation1] ss:$9 sm:$0xff] %v4557
        %5126 = vst [vmem:[%s4678] ss:$9 sm:$0xff] %v4558
        %5127 = vst [vmem:[%s4680] ss:$9 sm:$0xff] %v4559
        %5128 = vst [vmem:[%s4682] ss:$9 sm:$0xff] %v4560
        %5129 = vst [vmem:[%s4684] ss:$9 sm:$0xff] %v4561
        %5130 = vst [vmem:[%s4686] ss:$9 sm:$0xff] %v4562
        %5131 = vst [vmem:[%s4688] ss:$9 sm:$0xff] %v4563
        %5132 = vst [vmem:[%s4690] ss:$9 sm:$0xff] %v4564
        %v5133 = vld [vmem:[#allocation1] sm:$0xff]
        %5134 = vst [vmem:[#allocation1] ss:$9 sm:$0xff] %v4565
        %5135 = vst [vmem:[%s4678] ss:$9 sm:$0xff] %v4566
        %5136 = vst [vmem:[%s4680] ss:$9 sm:$0xff] %v4567
        %5137 = vst [vmem:[%s4682] ss:$9 sm:$0xff] %v4568
        %5138 = vst [vmem:[%s4684] ss:$9 sm:$0xff] %v4569
        %5139 = vst [vmem:[%s4686] ss:$9 sm:$0xff] %v4570
        %5140 = vst [vmem:[%s4688] ss:$9 sm:$0xff] %v4571
        %5141 = vst [vmem:[%s4690] ss:$9 sm:$0xff] %v4572
        %v5142 = vld [vmem:[#allocation1] sm:$0xff]
        %5143 = vst [vmem:[#allocation1] ss:$9 sm:$0xff] %v4573
        %5144 = vst [vmem:[%s4678] ss:$9 sm:$0xff] %v4574
        %5145 = vst [vmem:[%s4680] ss:$9 sm:$0xff] %v4575
        %5146 = vst [vmem:[%s4682] ss:$9 sm:$0xff] %v4576
        %5147 = vst [vmem:[%s4684] ss:$9 sm:$0xff] %v4577
        %5148 = vst [vmem:[%s4686] ss:$9 sm:$0xff] %v4578
        %5149 = vst [vmem:[%s4688] ss:$9 sm:$0xff] %v4579
        %5150 = vst [vmem:[%s4690] ss:$9 sm:$0xff] %v4580
        %v5151 = vld [vmem:[#allocation1] sm:$0xff]
        %5152 = vst [vmem:[#allocation1] ss:$9 sm:$0xff] %v4581
        %5153 = vst [vmem:[%s4678] ss:$9 sm:$0xff] %v4582
        %5154 = vst [vmem:[%s4680] ss:$9 sm:$0xff] %v4583
        %5155 = vst [vmem:[%s4682] ss:$9 sm:$0xff] %v4584
        %5156 = vst [vmem:[%s4684] ss:$9 sm:$0xff] %v4585
        %5157 = vst [vmem:[%s4686] ss:$9 sm:$0xff] %v4586
        %5158 = vst [vmem:[%s4688] ss:$9 sm:$0xff] %v4587
        %5159 = vst [vmem:[%s4690] ss:$9 sm:$0xff] %v4588
        %v5160 = vld [vmem:[#allocation1] sm:$0xff]
        %5161 = vst [vmem:[#allocation1] ss:$9 sm:$0xff] %v4589
        %5162 = vst [vmem:[%s4678] ss:$9 sm:$0xff] %v4590
        %5163 = vst [vmem:[%s4680] ss:$9 sm:$0xff] %v4591
        %5164 = vst [vmem:[%s4682] ss:$9 sm:$0xff] %v4592
        %5165 = vst [vmem:[%s4684] ss:$9 sm:$0xff] %v4593
        %5166 = vst [vmem:[%s4686] ss:$9 sm:$0xff] %v4594
        %5167 = vst [vmem:[%s4688] ss:$9 sm:$0xff] %v4595
        %5168 = vst [vmem:[%s4690] ss:$9 sm:$0xff] %v4596
        %v5169 = vld [vmem:[#allocation1] sm:$0xff]
        %5170 = vst [vmem:[#allocation1] ss:$9 sm:$0xff] %v4597
        %5171 = vst [vmem:[%s4678] ss:$9 sm:$0xff] %v4598
        %5172 = vst [vmem:[%s4680] ss:$9 sm:$0xff] %v4599
        %5173 = vst [vmem:[%s4682] ss:$9 sm:$0xff] %v4600
        %5174 = vst [vmem:[%s4684] ss:$9 sm:$0xff] %v4601
        %5175 = vst [vmem:[%s4686] ss:$9 sm:$0xff] %v4602
        %5176 = vst [vmem:[%s4688] ss:$9 sm:$0xff] %v4603
        %5177 = vst [vmem:[%s4690] ss:$9 sm:$0xff] %v4604
        %v5178 = vld [vmem:[#allocation1] sm:$0xff]
        %5179 = vst [vmem:[#allocation1] ss:$9 sm:$0xff] %v4605
        %5180 = vst [vmem:[%s4678] ss:$9 sm:$0xff] %v4606
        %5181 = vst [vmem:[%s4680] ss:$9 sm:$0xff] %v4607
        %5182 = vst [vmem:[%s4682] ss:$9 sm:$0xff] %v4608
        %5183 = vst [vmem:[%s4684] ss:$9 sm:$0xff] %v4609
        %5184 = vst [vmem:[%s4686] ss:$9 sm:$0xff] %v4610
        %5185 = vst [vmem:[%s4688] ss:$9 sm:$0xff] %v4611
        %5186 = vst [vmem:[%s4690] ss:$9 sm:$0xff] %v4612
        %v5187 = vld [vmem:[#allocation1] sm:$0xff]
        %5188 = vst [vmem:[#allocation1] ss:$9 sm:$0xff] %v4613
        %5189 = vst [vmem:[%s4678] ss:$9 sm:$0xff] %v4614
        %5190 = vst [vmem:[%s4680] ss:$9 sm:$0xff] %v4615
        %5191 = vst [vmem:[%s4682] ss:$9 sm:$0xff] %v4616
        %5192 = vst [vmem:[%s4684] ss:$9 sm:$0xff] %v4617
        %5193 = vst [vmem:[%s4686] ss:$9 sm:$0xff] %v4618
        %5194 = vst [vmem:[%s4688] ss:$9 sm:$0xff] %v4619
        %5195 = vst [vmem:[%s4690] ss:$9 sm:$0xff] %v4620
        %v5196 = vld [vmem:[#allocation1] sm:$0xff]
        %5197 = vst [vmem:[#allocation1] ss:$9 sm:$0xff] %v4621
        %5198 = vst [vmem:[%s4678] ss:$9 sm:$0xff] %v4622
        %5199 = vst [vmem:[%s4680] ss:$9 sm:$0xff] %v4623
        %5200 = vst [vmem:[%s4682] ss:$9 sm:$0xff] %v4624
        %5201 = vst [vmem:[%s4684] ss:$9 sm:$0xff] %v4625
        %5202 = vst [vmem:[%s4686] ss:$9 sm:$0xff] %v4626
        %5203 = vst [vmem:[%s4688] ss:$9 sm:$0xff] %v4627
        %5204 = vst [vmem:[%s4690] ss:$9 sm:$0xff] %v4628
        %v5205 = vld [vmem:[#allocation1] sm:$0xff]
        %5206 = vst [vmem:[#allocation1] ss:$9 sm:$0xff] %v4629
        %5207 = vst [vmem:[%s4678] ss:$9 sm:$0xff] %v4630
        %5208 = vst [vmem:[%s4680] ss:$9 sm:$0xff] %v4631
        %5209 = vst [vmem:[%s4682] ss:$9 sm:$0xff] %v4632
        %5210 = vst [vmem:[%s4684] ss:$9 sm:$0xff] %v4633
        %5211 = vst [vmem:[%s4686] ss:$9 sm:$0xff] %v4634
        %5212 = vst [vmem:[%s4688] ss:$9 sm:$0xff] %v4635
        %5213 = vst [vmem:[%s4690] ss:$9 sm:$0xff] %v4636
        %v5214 = vld [vmem:[#allocation1] sm:$0xff]
        %5215 = vst [vmem:[#allocation1] ss:$9 sm:$0xff] %v4637
        %5216 = vst [vmem:[%s4678] ss:$9 sm:$0xff] %v4638
        %5217 = vst [vmem:[%s4680] ss:$9 sm:$0xff] %v4639
        %5218 = vst [vmem:[%s4682] ss:$9 sm:$0xff] %v4640
        %5219 = vst [vmem:[%s4684] ss:$9 sm:$0xff] %v4641
        %5220 = vst [vmem:[%s4686] ss:$9 sm:$0xff] %v4642
        %5221 = vst [vmem:[%s4688] ss:$9 sm:$0xff] %v4643
        %5222 = vst [vmem:[%s4690] ss:$9 sm:$0xff] %v4644
        %v5223 = vld [vmem:[#allocation1] sm:$0xff]
        %5224 = vst [vmem:[#allocation1] ss:$9 sm:$0xff] %v4645
        %5225 = vst [vmem:[%s4678] ss:$9 sm:$0xff] %v4646
        %5226 = vst [vmem:[%s4680] ss:$9 sm:$0xff] %v4647
        %5227 = vst [vmem:[%s4682] ss:$9 sm:$0xff] %v4648
        %5228 = vst [vmem:[%s4684] ss:$9 sm:$0xff] %v4649
        %5229 = vst [vmem:[%s4686] ss:$9 sm:$0xff] %v4650
        %5230 = vst [vmem:[%s4688] ss:$9 sm:$0xff] %v4651
        %5231 = vst [vmem:[%s4690] ss:$9 sm:$0xff] %v4652
        %v5232 = vld [vmem:[#allocation1] sm:$0xff]
        %5233 = vst [vmem:[#allocation1] ss:$9 sm:$0xff] %v4653
        %5234 = vst [vmem:[%s4678] ss:$9 sm:$0xff] %v4654
        %5235 = vst [vmem:[%s4680] ss:$9 sm:$0xff] %v4655
        %5236 = vst [vmem:[%s4682] ss:$9 sm:$0xff] %v4656
        %5237 = vst [vmem:[%s4684] ss:$9 sm:$0xff] %v4657
        %5238 = vst [vmem:[%s4686] ss:$9 sm:$0xff] %v4658
        %5239 = vst [vmem:[%s4688] ss:$9 sm:$0xff] %v4659
        %5240 = vst [vmem:[%s4690] ss:$9 sm:$0xff] %v4660
        %v5241 = vld [vmem:[#allocation1] sm:$0xff]
        %5242 = vst [vmem:[#allocation1] ss:$9 sm:$0xff] %v4661
        %5243 = vst [vmem:[%s4678] ss:$9 sm:$0xff] %v4662
        %5244 = vst [vmem:[%s4680] ss:$9 sm:$0xff] %v4663
        %5245 = vst [vmem:[%s4682] ss:$9 sm:$0xff] %v4664
        %5246 = vst [vmem:[%s4684] ss:$9 sm:$0xff] %v4665
        %5247 = vst [vmem:[%s4686] ss:$9 sm:$0xff] %v4666
        %5248 = vst [vmem:[%s4688] ss:$9 sm:$0xff] %v4667
        %5249 = vst [vmem:[%s4690] ss:$9 sm:$0xff] %v4668
        %v5250 = vld [vmem:[#allocation1] sm:$0xff]
        %5251 = vst [vmem:[#allocation1] ss:$9 sm:$0xff] %v4669
        %5252 = vst [vmem:[%s4678] ss:$9 sm:$0xff] %v4670
        %5253 = vst [vmem:[%s4680] ss:$9 sm:$0xff] %v4671
        %5254 = vst [vmem:[%s4682] ss:$9 sm:$0xff] %v4672
        %5255 = vst [vmem:[%s4684] ss:$9 sm:$0xff] %v4673
        %5256 = vst [vmem:[%s4686] ss:$9 sm:$0xff] %v4674
        %5257 = vst [vmem:[%s4688] ss:$9 sm:$0xff] %v4675
        %5258 = vst [vmem:[%s4690] ss:$9 sm:$0xff] %v4676
        %v5259 = vld [vmem:[#allocation1] sm:$0xff]
        %5260 = vset.pattern.permute.xlu0 0
        %5261 = vperm.xlu0 %5260, %v4692
        %v5262 = vpop.permute.xlu0 %5261
        %5263 = vset.pattern.permute.xlu0 0
        %5264 = vperm.xlu0 %5263, %v4701
        %v5265 = vpop.permute.xlu0 %5264
        %5266 = vset.pattern.permute.xlu0 0
        %5267 = vperm.xlu0 %5266, %v4710
        %v5268 = vpop.permute.xlu0 %5267
        %5269 = vset.pattern.permute.xlu0 0
        %5270 = vperm.xlu0 %5269, %v4719
        %v5271 = vpop.permute.xlu0 %5270
        %5272 = vset.pattern.permute.xlu0 0
        %5273 = vperm.xlu0 %5272, %v4728
        %v5274 = vpop.permute.xlu0 %5273
        %5275 = vset.pattern.permute.xlu0 0
        %5276 = vperm.xlu0 %5275, %v4737
        %v5277 = vpop.permute.xlu0 %5276
        %5278 = vset.pattern.permute.xlu0 0
        %5279 = vperm.xlu0 %5278, %v4746
        %v5280 = vpop.permute.xlu0 %5279
        %5281 = vset.pattern.permute.xlu0 0
        %5282 = vperm.xlu0 %5281, %v4755
        %v5283 = vpop.permute.xlu0 %5282
        %5284 = vset.pattern.permute.xlu0 0
        %5285 = vperm.xlu0 %5284, %v4764
        %v5286 = vpop.permute.xlu0 %5285
        %5287 = vset.pattern.permute.xlu0 0
        %5288 = vperm.xlu0 %5287, %v4773
        %v5289 = vpop.permute.xlu0 %5288
        %5290 = vset.pattern.permute.xlu0 0
        %5291 = vperm.xlu0 %5290, %v4782
        %v5292 = vpop.permute.xlu0 %5291
        %5293 = vset.pattern.permute.xlu0 0
        %5294 = vperm.xlu0 %5293, %v4791
        %v5295 = vpop.permute.xlu0 %5294
        %5296 = vset.pattern.permute.xlu0 0
        %5297 = vperm.xlu0 %5296, %v4800
        %v5298 = vpop.permute.xlu0 %5297
        %5299 = vset.pattern.permute.xlu0 0
        %5300 = vperm.xlu0 %5299, %v4809
        %v5301 = vpop.permute.xlu0 %5300
        %5302 = vset.pattern.permute.xlu0 0
        %5303 = vperm.xlu0 %5302, %v4818
        %v5304 = vpop.permute.xlu0 %5303
        %5305 = vset.pattern.permute.xlu0 0
        %5306 = vperm.xlu0 %5305, %v4827
        %v5307 = vpop.permute.xlu0 %5306
        %5308 = vset.pattern.permute.xlu0 0
        %5309 = vperm.xlu0 %5308, %v4836
        %v5310 = vpop.permute.xlu0 %5309
        %5311 = vset.pattern.permute.xlu0 0
        %5312 = vperm.xlu0 %5311, %v4845
        %v5313 = vpop.permute.xlu0 %5312
        %5314 = vset.pattern.permute.xlu0 0
        %5315 = vperm.xlu0 %5314, %v4854
        %v5316 = vpop.permute.xlu0 %5315
        %5317 = vset.pattern.permute.xlu0 0
        %5318 = vperm.xlu0 %5317, %v4863
        %v5319 = vpop.permute.xlu0 %5318
        %5320 = vset.pattern.permute.xlu0 0
        %5321 = vperm.xlu0 %5320, %v4872
        %v5322 = vpop.permute.xlu0 %5321
        %5323 = vset.pattern.permute.xlu0 0
        %5324 = vperm.xlu0 %5323, %v4881
        %v5325 = vpop.permute.xlu0 %5324
        %5326 = vset.pattern.permute.xlu0 0
        %5327 = vperm.xlu0 %5326, %v4890
        %v5328 = vpop.permute.xlu0 %5327
        %5329 = vset.pattern.permute.xlu0 0
        %5330 = vperm.xlu0 %5329, %v4899
        %v5331 = vpop.permute.xlu0 %5330
        %5332 = vset.pattern.permute.xlu0 0
        %5333 = vperm.xlu0 %5332, %v4908
        %v5334 = vpop.permute.xlu0 %5333
        %5335 = vset.pattern.permute.xlu0 0
        %5336 = vperm.xlu0 %5335, %v4917
        %v5337 = vpop.permute.xlu0 %5336
        %5338 = vset.pattern.permute.xlu0 0
        %5339 = vperm.xlu0 %5338, %v4926
        %v5340 = vpop.permute.xlu0 %5339
        %5341 = vset.pattern.permute.xlu0 0
        %5342 = vperm.xlu0 %5341, %v4935
        %v5343 = vpop.permute.xlu0 %5342
        %5344 = vset.pattern.permute.xlu0 0
        %5345 = vperm.xlu0 %5344, %v4944
        %v5346 = vpop.permute.xlu0 %5345
        %5347 = vset.pattern.permute.xlu0 0
        %5348 = vperm.xlu0 %5347, %v4953
        %v5349 = vpop.permute.xlu0 %5348
        %5350 = vset.pattern.permute.xlu0 0
        %5351 = vperm.xlu0 %5350, %v4962
        %v5352 = vpop.permute.xlu0 %5351
        %5353 = vset.pattern.permute.xlu0 0
        %5354 = vperm.xlu0 %5353, %v4971
        %v5355 = vpop.permute.xlu0 %5354
        %5356 = vset.pattern.permute.xlu0 0
        %5357 = vperm.xlu0 %5356, %v4980
        %v5358 = vpop.permute.xlu0 %5357
        %5359 = vset.pattern.permute.xlu0 0
        %5360 = vperm.xlu0 %5359, %v4989
        %v5361 = vpop.permute.xlu0 %5360
        %5362 = vset.pattern.permute.xlu0 0
        %5363 = vperm.xlu0 %5362, %v4998
        %v5364 = vpop.permute.xlu0 %5363
        %5365 = vset.pattern.permute.xlu0 0
        %5366 = vperm.xlu0 %5365, %v5007
        %v5367 = vpop.permute.xlu0 %5366
        %5368 = vset.pattern.permute.xlu0 0
        %5369 = vperm.xlu0 %5368, %v5016
        %v5370 = vpop.permute.xlu0 %5369
        %5371 = vset.pattern.permute.xlu0 0
        %5372 = vperm.xlu0 %5371, %v5025
        %v5373 = vpop.permute.xlu0 %5372
        %5374 = vset.pattern.permute.xlu0 0
        %5375 = vperm.xlu0 %5374, %v5034
        %v5376 = vpop.permute.xlu0 %5375
        %5377 = vset.pattern.permute.xlu0 0
        %5378 = vperm.xlu0 %5377, %v5043
        %v5379 = vpop.permute.xlu0 %5378
        %5380 = vset.pattern.permute.xlu0 0
        %5381 = vperm.xlu0 %5380, %v5052
        %v5382 = vpop.permute.xlu0 %5381
        %5383 = vset.pattern.permute.xlu0 0
        %5384 = vperm.xlu0 %5383, %v5061
        %v5385 = vpop.permute.xlu0 %5384
        %5386 = vset.pattern.permute.xlu0 0
        %5387 = vperm.xlu0 %5386, %v5070
        %v5388 = vpop.permute.xlu0 %5387
        %5389 = vset.pattern.permute.xlu0 0
        %5390 = vperm.xlu0 %5389, %v5079
        %v5391 = vpop.permute.xlu0 %5390
        %5392 = vset.pattern.permute.xlu0 0
        %5393 = vperm.xlu0 %5392, %v5088
        %v5394 = vpop.permute.xlu0 %5393
        %5395 = vset.pattern.permute.xlu0 0
        %5396 = vperm.xlu0 %5395, %v5097
        %v5397 = vpop.permute.xlu0 %5396
        %5398 = vset.pattern.permute.xlu0 0
        %5399 = vperm.xlu0 %5398, %v5106
        %v5400 = vpop.permute.xlu0 %5399
        %5401 = vset.pattern.permute.xlu0 0
        %5402 = vperm.xlu0 %5401, %v5115
        %v5403 = vpop.permute.xlu0 %5402
        %5404 = vset.pattern.permute.xlu0 0
        %5405 = vperm.xlu0 %5404, %v5124
        %v5406 = vpop.permute.xlu0 %5405
        %5407 = vset.pattern.permute.xlu0 0
        %5408 = vperm.xlu0 %5407, %v5133
        %v5409 = vpop.permute.xlu0 %5408
        %5410 = vset.pattern.permute.xlu0 0
        %5411 = vperm.xlu0 %5410, %v5142
        %v5412 = vpop.permute.xlu0 %5411
        %5413 = vset.pattern.permute.xlu0 0
        %5414 = vperm.xlu0 %5413, %v5151
        %v5415 = vpop.permute.xlu0 %5414
        %5416 = vset.pattern.permute.xlu0 0
        %5417 = vperm.xlu0 %5416, %v5160
        %v5418 = vpop.permute.xlu0 %5417
        %5419 = vset.pattern.permute.xlu0 0
        %5420 = vperm.xlu0 %5419, %v5169
        %v5421 = vpop.permute.xlu0 %5420
        %5422 = vset.pattern.permute.xlu0 0
        %5423 = vperm.xlu0 %5422, %v5178
        %v5424 = vpop.permute.xlu0 %5423
        %5425 = vset.pattern.permute.xlu0 0
        %5426 = vperm.xlu0 %5425, %v5187
        %v5427 = vpop.permute.xlu0 %5426
        %5428 = vset.pattern.permute.xlu0 0
        %5429 = vperm.xlu0 %5428, %v5196
        %v5430 = vpop.permute.xlu0 %5429
        %5431 = vset.pattern.permute.xlu0 0
        %5432 = vperm.xlu0 %5431, %v5205
        %v5433 = vpop.permute.xlu0 %5432
        %5434 = vset.pattern.permute.xlu0 0
        %5435 = vperm.xlu0 %5434, %v5214
        %v5436 = vpop.permute.xlu0 %5435
        %5437 = vset.pattern.permute.xlu0 0
        %5438 = vperm.xlu0 %5437, %v5223
        %v5439 = vpop.permute.xlu0 %5438
        %5440 = vset.pattern.permute.xlu0 0
        %5441 = vperm.xlu0 %5440, %v5232
        %v5442 = vpop.permute.xlu0 %5441
        %5443 = vset.pattern.permute.xlu0 0
        %5444 = vperm.xlu0 %5443, %v5241
        %v5445 = vpop.permute.xlu0 %5444
        %5446 = vset.pattern.permute.xlu0 0
        %5447 = vperm.xlu0 %5446, %v5250
        %v5448 = vpop.permute.xlu0 %5447
        %5449 = vset.pattern.permute.xlu0 0
        %5450 = vperm.xlu0 %5449, %v5259
        %v5451 = vpop.permute.xlu0 %5450
        %v5452 = vlaneseq
        %v5453 = vand.u32 %v5452, 127
        %v5454 = vperm.slane %v5262, %v5453
        %v5455 = vadd.s32 %v5453, 4294967288
        %v5456 = vperm.slane %v5265, %v5455
        %vm5457 = vcmask 130112
        %v5458 = vsel %vm5457, %v5456, %v5454
        %v5459 = vadd.s32 %v5453, 4294967280
        %v5460 = vperm.slane %v5268, %v5459
        %vm5461 = vcmask 195712
        %v5462 = vsel %vm5461, %v5460, %v5458
        %v5463 = vadd.s32 %v5453, 4294967272
        %v5464 = vperm.slane %v5271, %v5463
        %vm5465 = vcmask 261312
        %v5466 = vsel %vm5465, %v5464, %v5462
        %v5467 = vadd.s32 %v5453, 4294967264
        %v5468 = vperm.slane %v5274, %v5467
        %vm5469 = vcmask 326912
        %v5470 = vsel %vm5469, %v5468, %v5466
        %v5471 = vadd.s32 %v5453, 4294967256
        %v5472 = vperm.slane %v5277, %v5471
        %vm5473 = vcmask 392512
        %v5474 = vsel %vm5473, %v5472, %v5470
        %v5475 = vadd.s32 %v5453, 4294967248
        %v5476 = vperm.slane %v5280, %v5475
        %vm5477 = vcmask 458112
        %v5478 = vsel %vm5477, %v5476, %v5474
        %v5479 = vadd.s32 %v5453, 4294967240
        %v5480 = vperm.slane %v5283, %v5479
        %vm5481 = vcmask 523712
        %v5482 = vsel %vm5481, %v5480, %v5478
        %v5483 = vadd.s32 %v5453, 4294967232
        %v5484 = vperm.slane %v5286, %v5483
        %vm5485 = vcmask 589312
        %v5486 = vsel %vm5485, %v5484, %v5482
        %v5487 = vadd.s32 %v5453, 4294967224
        %v5488 = vperm.slane %v5289, %v5487
        %vm5489 = vcmask 654912
        %v5490 = vsel %vm5489, %v5488, %v5486
        %v5491 = vadd.s32 %v5453, 4294967216
        %v5492 = vperm.slane %v5292, %v5491
        %vm5493 = vcmask 720512
        %v5494 = vsel %vm5493, %v5492, %v5490
        %v5495 = vadd.s32 %v5453, 4294967208
        %v5496 = vperm.slane %v5295, %v5495
        %vm5497 = vcmask 786112
        %v5498 = vsel %vm5497, %v5496, %v5494
        %v5499 = vadd.s32 %v5453, 4294967200
        %v5500 = vperm.slane %v5298, %v5499
        %vm5501 = vcmask 851712
        %v5502 = vsel %vm5501, %v5500, %v5498
        %v5503 = vadd.s32 %v5453, 4294967192
        %v5504 = vperm.slane %v5301, %v5503
        %vm5505 = vcmask 917312
        %v5506 = vsel %vm5505, %v5504, %v5502
        %v5507 = vadd.s32 %v5453, 4294967184
        %v5508 = vperm.slane %v5304, %v5507
        %vm5509 = vcmask 982912
        %v5510 = vsel %vm5509, %v5508, %v5506
        %v5511 = vadd.s32 %v5453, 4294967176
        %v5512 = vperm.slane %v5307, %v5511
        %vm5513 = vcmask 1048512
        %v5514 = vsel %vm5513, %v5512, %v5510
        %v5515 = vperm.slane %v5310, %v5453
        %v5516 = vperm.slane %v5313, %v5455
        %v5517 = vsel %vm5457, %v5516, %v5515
        %v5518 = vperm.slane %v5316, %v5459
        %v5519 = vsel %vm5461, %v5518, %v5517
        %v5520 = vperm.slane %v5319, %v5463
        %v5521 = vsel %vm5465, %v5520, %v5519
        %v5522 = vperm.slane %v5322, %v5467
        %v5523 = vsel %vm5469, %v5522, %v5521
        %v5524 = vperm.slane %v5325, %v5471
        %v5525 = vsel %vm5473, %v5524, %v5523
        %v5526 = vperm.slane %v5328, %v5475
        %v5527 = vsel %vm5477, %v5526, %v5525
        %v5528 = vperm.slane %v5331, %v5479
        %v5529 = vsel %vm5481, %v5528, %v5527
        %v5530 = vperm.slane %v5334, %v5483
        %v5531 = vsel %vm5485, %v5530, %v5529
        %v5532 = vperm.slane %v5337, %v5487
        %v5533 = vsel %vm5489, %v5532, %v5531
        %v5534 = vperm.slane %v5340, %v5491
        %v5535 = vsel %vm5493, %v5534, %v5533
        %v5536 = vperm.slane %v5343, %v5495
        %v5537 = vsel %vm5497, %v5536, %v5535
        %v5538 = vperm.slane %v5346, %v5499
        %v5539 = vsel %vm5501, %v5538, %v5537
        %v5540 = vperm.slane %v5349, %v5503
        %v5541 = vsel %vm5505, %v5540, %v5539
        %v5542 = vperm.slane %v5352, %v5507
        %v5543 = vsel %vm5509, %v5542, %v5541
        %v5544 = vperm.slane %v5355, %v5511
        %v5545 = vsel %vm5513, %v5544, %v5543
        %v5546 = vperm.slane %v5358, %v5453
        %v5547 = vperm.slane %v5361, %v5455
        %v5548 = vsel %vm5457, %v5547, %v5546
        %v5549 = vperm.slane %v5364, %v5459
        %v5550 = vsel %vm5461, %v5549, %v5548
        %v5551 = vperm.slane %v5367, %v5463
        %v5552 = vsel %vm5465, %v5551, %v5550
        %v5553 = vperm.slane %v5370, %v5467
        %v5554 = vsel %vm5469, %v5553, %v5552
        %v5555 = vperm.slane %v5373, %v5471
        %v5556 = vsel %vm5473, %v5555, %v5554
        %v5557 = vperm.slane %v5376, %v5475
        %v5558 = vsel %vm5477, %v5557, %v5556
        %v5559 = vperm.slane %v5379, %v5479
        %v5560 = vsel %vm5481, %v5559, %v5558
        %v5561 = vperm.slane %v5382, %v5483
        %v5562 = vsel %vm5485, %v5561, %v5560
        %v5563 = vperm.slane %v5385, %v5487
        %v5564 = vsel %vm5489, %v5563, %v5562
        %v5565 = vperm.slane %v5388, %v5491
        %v5566 = vsel %vm5493, %v5565, %v5564
        %v5567 = vperm.slane %v5391, %v5495
        %v5568 = vsel %vm5497, %v5567, %v5566
        %v5569 = vperm.slane %v5394, %v5499
        %v5570 = vsel %vm5501, %v5569, %v5568
        %v5571 = vperm.slane %v5397, %v5503
        %v5572 = vsel %vm5505, %v5571, %v5570
        %v5573 = vperm.slane %v5400, %v5507
        %v5574 = vsel %vm5509, %v5573, %v5572
        %v5575 = vperm.slane %v5403, %v5511
        %v5576 = vsel %vm5513, %v5575, %v5574
        %v5577 = vperm.slane %v5406, %v5453
        %v5578 = vperm.slane %v5409, %v5455
        %v5579 = vsel %vm5457, %v5578, %v5577
        %v5580 = vperm.slane %v5412, %v5459
        %v5581 = vsel %vm5461, %v5580, %v5579
        %v5582 = vperm.slane %v5415, %v5463
        %v5583 = vsel %vm5465, %v5582, %v5581
        %v5584 = vperm.slane %v5418, %v5467
        %v5585 = vsel %vm5469, %v5584, %v5583
        %v5586 = vperm.slane %v5421, %v5471
        %v5587 = vsel %vm5473, %v5586, %v5585
        %v5588 = vperm.slane %v5424, %v5475
        %v5589 = vsel %vm5477, %v5588, %v5587
        %v5590 = vperm.slane %v5427, %v5479
        %v5591 = vsel %vm5481, %v5590, %v5589
        %v5592 = vperm.slane %v5430, %v5483
        %v5593 = vsel %vm5485, %v5592, %v5591
        %v5594 = vperm.slane %v5433, %v5487
        %v5595 = vsel %vm5489, %v5594, %v5593
        %v5596 = vperm.slane %v5436, %v5491
        %v5597 = vsel %vm5493, %v5596, %v5595
        %v5598 = vperm.slane %v5439, %v5495
        %v5599 = vsel %vm5497, %v5598, %v5597
        %v5600 = vperm.slane %v5442, %v5499
        %v5601 = vsel %vm5501, %v5600, %v5599
        %v5602 = vperm.slane %v5445, %v5503
        %v5603 = vsel %vm5505, %v5602, %v5601
        %v5604 = vperm.slane %v5448, %v5507
        %v5605 = vsel %vm5509, %v5604, %v5603
        %v5606 = vperm.slane %v5451, %v5511
        %v5607 = vsel %vm5513, %v5606, %v5605
        %v5608 = vrot.slane %v5545, 7
        %v5609 = vrot.slane %v5576, 6
        %v5610 = vrot.slane %v5607, 5
        %vm5611 = vcmask 1040384
        %v5612 = vsel %vm5611, %v5514, %v5608
        %vm5613 = vcmask 1042434
        %v5614 = vsel %vm5613, %v5609, %v5610
        %vm5615 = vcmask 1041408
        %v5616 = vsel %vm5615, %v5612, %v5614
        %v5618 = vlaneseq
        %vm5619 = vcmp.ge.s32.totalorder %v5618, 0
        %vm5620 = vcmp.lt.s32.totalorder %v5618, 512
        %vm5621 = vmand %vm5619, %vm5620
        %5622 = vst.msk [vmem:[%s357] sm:$0xf] %vm5621, %v5616
        %s5623 = sand.u32 %s249, 1
        %s5624 = scalar_lea.sflag [#allocation4], %s5623
        %s5625 = sand.u32 %s249, 1
        %s5626 = smul.addr %s5625, 4
        %s5627 = scalar_lea.vmem [#allocation3], %s5626
        // Predicated region
        $region61: #{tpu_custom_call.1} parent=59 // pred_check
          %p5628 = pneg %p259
        $region62: #{tpu_custom_call.1} parent=59 // pred_check_branch
          %5630 = sbr.rel (%p5628) target = $region64
        $region63: #{tpu_custom_call.1} parent=59 // pred_region
          %s5631 = smul.u32 4, %s26
          %5633 = vsyncadd %s5624, 0
          %s5634 = scalar_lea.hbm %s10, %s5631
          %s5636 = sshll.u32 %s5627, 4
          %s5637 = int_to_ptr.vmem [resolvable:$true] %s5636
          %s5638 = sshll.u32 %s5634, 4
          %s5639 = int_to_ptr.hbm [resolvable:$true] %s5638
          %5641 = dma.vmem_to_hbm [thread:$0]  %s5637, 64, %s5639, %s5624
        $region64: #{tpu_custom_call.1} parent=59 // pred_fallthru
          _
      $region60: #{tpu_custom_call.1} parent=5 // pred_fallthru
        _
      %p5642 = scmp.le.s32.totalorder 2, %s21
      // Predicated region
      $region65: #{tpu_custom_call.1} parent=5 // pred_check
        %p5643 = pneg %p5642
      $region66: #{tpu_custom_call.1} parent=5 // pred_check_branch
        %5645 = sbr.rel (%p5643) target = $region68
      $region67: #{tpu_custom_call.1} parent=5 // pred_region
        %s5646 = ssub.s32 %s21, 2
        // Predicated region
        $region69: #{tpu_custom_call.1} parent=67 // pred_check
          %p5647 = pneg %p265
        $region70: #{tpu_custom_call.1} parent=67 // pred_check_branch
          %5649 = sbr.rel (%p5647) target = $region72
        $region71: #{tpu_custom_call.1} parent=67 // pred_region
          %s5650 = sand.u32 %s250, 1
          %s5651 = scalar_lea.sflag [#allocation4], %s5650
          %s5652 = sand.u32 %s250, 1
          %s5653 = smul.addr %s5652, 4
          %s5654 = scalar_lea.vmem [#allocation3], %s5653
          %5656 = dma.done %s5651, 64
        $region72: #{tpu_custom_call.1} parent=67 // pred_fallthru
          _
      $region68: #{tpu_custom_call.1} parent=5 // pred_fallthru
        _
    $region6: #{tpu_custom_call.1} parent=1 // loop_footer
      %s25 = sadd.s32 1, %s21
    $region7: #{tpu_custom_call.1} parent=1 // loop_footer_branch
      %20 = sbr.rel target = $region3
    $region8: #{tpu_custom_call.1} parent=1 // loop_exit
      _
    %5657 = vsyncpa [#allocation4], 1
    %s5658 = scalar_lea.sflag [#allocation4], 1
    %5659 = vsyncpa %s5658, 1

</llo_original>
